<compile_context>
chip_gen: v7x
topology: tpu7x:2x2x1
jax: 0.10.0
libtpu: 0.0.40
codegen_flags: <defaults>
</compile_context>

<pallas_src>
import functools

import numpy as np
import jax
import jax.numpy as jnp
from jax import lax
from jax.experimental import pallas as pl
from jax.experimental.pallas import tpu as pltpu

BOARD_SIZE = 21
BN_EPS = 1e-5
LANES = 128

_VMEM = pl.BlockSpec(memory_space=pltpu.MemorySpace.VMEM)


def _out_dim(w, f, s, p):
    v = (w - f + 2 * p) / s + 1
    assert float(v).is_integer(), f"non-integer conv output dim {v}"
    return int(v)


def _round_up(x, m):
    return -(-x // m) * m


# ----------------------------------------------------------------------------
# Wrapper-side im2col for the FIRST conv only (pure layout plumbing on the raw
# input; everything downstream stays inside the fused kernel).
# Row order: b*Ho*Wo + ho*Wo + wo ; column order: c*K*K + ki*K + kj (torch flatten).
# ----------------------------------------------------------------------------
def _im2col(x_nchw, k, s, p):
    B, C, H, W = x_nchw.shape
    xp = jnp.pad(x_nchw, ((0, 0), (0, 0), (p, p), (p, p)))
    Ho = (H - k + 2 * p) // s + 1
    Wo = (W - k + 2 * p) // s + 1
    cols = []
    for ki in range(k):
        for kj in range(k):
            cols.append(xp[:, :, ki:ki + s * (Ho - 1) + 1:s, kj:kj + s * (Wo - 1) + 1:s])
    pat = jnp.stack(cols, axis=0).reshape(k, k, B, C, Ho, Wo)
    pat = pat.transpose(2, 4, 5, 3, 0, 1).reshape(B * Ho * Wo, C * k * k)
    return pat


# ----------------------------------------------------------------------------
# Synthetic parameters in PyTorch layout (mirrors DQN.__init__, eval mode).
# ----------------------------------------------------------------------------
def init_params(key, channels, conv_layers, fc_layers, fc_volume, filters,
                kernel, stride, pad, ts_ftrs, out_neurons):
    assert conv_layers == 2, "kernel specialized to the 2-conv-layer DQN geometry"
    assert ts_ftrs == 2, "forward() concatenates ts_x[:, 0:2]"
    assert fc_layers >= 1

    params = {"conv": [], "value": [], "adv": []}
    height = _out_dim(BOARD_SIZE, kernel, stride, pad)
    heights = [height]
    c_out = filters
    for i in range(conv_layers):
        c_in = channels if i == 0 else filters * 2 ** (i - 1)
        c_out = filters * 2 ** i
        key, k1, k2, k3, k4, k5, k6 = jax.random.split(key, 7)
        fan_in = c_in * kernel * kernel
        fan_out = c_out * kernel * kernel
        bound = (6.0 / (fan_in + fan_out)) ** 0.5  # xavier_uniform
        w = jax.random.uniform(k1, (c_out, c_in, kernel, kernel), jnp.float32, -bound, bound)
        b = jax.random.uniform(k2, (c_out,), jnp.float32, -1.0 / fan_in ** 0.5, 1.0 / fan_in ** 0.5)
        gamma = 1.0 + 0.1 * jax.random.normal(k3, (c_out,), jnp.float32)
        beta = 0.1 * jax.random.normal(k4, (c_out,), jnp.float32)
        rmean = 0.1 * jax.random.normal(k5, (c_out,), jnp.float32)
        rvar = jnp.abs(jax.random.normal(k6, (c_out,), jnp.float32)) * 0.1 + 0.9
        params["conv"].append((w, b, gamma, beta, rmean, rvar))
        if i != 0:
            height = _out_dim(height, kernel, stride, pad)
            heights.append(height)

    flat_dim = height * height * c_out + ts_ftrs

    def noisy_linear(key, in_f, out_f):
        k1, k2 = jax.random.split(key)
        mu = 1.0 / in_f ** 0.5
        w_mu = jax.random.uniform(k1, (out_f, in_f), jnp.float32, -mu, mu)
        b_mu = jax.random.uniform(k2, (out_f,), jnp.float32, -mu, mu)
        return w_mu, b_mu  # eval-mode NoisyLinear: mu only

    for branch, last_out in (("value", 1), ("adv", out_neurons)):
        for i in range(fc_layers):
            key, sub = jax.random.split(key)
            in_f = flat_dim if i == 0 else fc_volume
            params[branch].append(noisy_linear(sub, in_f, fc_volume))
        key, sub = jax.random.split(key)
        params[branch].append(noisy_linear(sub, fc_volume, last_out))

    return params, heights[0], heights[1], c_out


# ----------------------------------------------------------------------------
# One-time parameter preprocessing: fold BN, merge branches, zero-pad to
# MXU-friendly shapes and build the constant 0/1 selection matrices.
# ----------------------------------------------------------------------------
def preprocess_params(params, *, batch, channels, filters, kernel, stride, pad,
                      fc_layers, fc_volume, out_neurons, h1, h2):
    B, K = batch, kernel
    S1, S2 = h1 * h1, h2 * h2
    M1 = B * S1
    M1P = _round_up(M1, 8)
    M2 = S2 * B
    BP = 8

    c1_in, c1_out = channels, filters
    c2_in, c2_out = filters, filters * 2
    assert c1_in * K * K <= LANES and c1_out <= 16
    assert c2_in <= 16 and c2_out <= 16
    assert 2 * fc_volume <= LANES and out_neurons + 1 <= LANES

    (w1, b1, g1, be1, rm1, rv1) = params["conv"][0]
    (w2, b2, g2, be2, rm2, rv2) = params["conv"][1]

    # conv1: [Cin*K*K, Cout] padded to [128, 128]; BN + conv-bias folded to scale/shift.
    w1mat = np.zeros((LANES, LANES), np.float32)
    w1mat[: c1_in * K * K, :c1_out] = np.asarray(w1).reshape(c1_out, -1).T
    aff1 = np.zeros((2, LANES), np.float32)
    sc1 = np.asarray(g1) / np.sqrt(np.asarray(rv1) + BN_EPS)
    aff1[0, :c1_out] = sc1
    aff1[1, :c1_out] = np.asarray(be1) + (np.asarray(b1) - np.asarray(rm1)) * sc1

    # conv2 tap-selection matrix (im2col as a constant 0/1 matmul).
    # Row r = t*M2 + (s2*B + b) selects conv1-output row b*S1 + h1i*h1 + w1i.
    s2_all = np.zeros((9 * M2, M1P), np.float32)
    for ki in range(K):
        for kj in range(K):
            t = ki * K + kj
            for hh in range(h2):
                for ww in range(h2):
                    hi = stride * hh - pad + ki
                    wi = stride * ww - pad + kj
                    if 0 <= hi < h1 and 0 <= wi < h1:
                        for b in range(B):
                            s2_all[t * M2 + (hh * h2 + ww) * B + b,
                                   b * S1 + hi * h1 + wi] = 1.0

    # conv2 weights, one [16, 128] block per tap.
    w2mat = np.zeros((9 * 16, LANES), np.float32)
    w2np = np.asarray(w2)
    for ki in range(K):
        for kj in range(K):
            t = ki * K + kj
            w2mat[t * 16: t * 16 + c2_in, :c2_out] = w2np[:, :, ki, kj].T
    aff2 = np.zeros((2, LANES), np.float32)
    sc2 = np.asarray(g2) / np.sqrt(np.asarray(rv2) + BN_EPS)
    aff2[0, :c2_out] = sc2
    aff2[1, :c2_out] = np.asarray(be2) + (np.asarray(b2) - np.asarray(rm2)) * sc2

    # Row expansion (s*B + b) -> (s*8 + b): keeps all later slices sublane-aligned.
    e_mat = np.zeros((S2 * BP, M2), np.float32)
    for s in range(S2):
        for b in range(B):
            e_mat[s * BP + b, s * B + b] = 1.0

    # Merged first FC layer (value lanes [0:fc), adv lanes [fc:2fc)); the torch NCHW
    # flatten (index c*S2 + s) is folded into per-spatial-position [16, 128] blocks.
    (wv0, bv0) = params["value"][0]
    (wa0, ba0) = params["adv"][0]
    wv0, wa0 = np.asarray(wv0), np.asarray(wa0)
    v_all = np.zeros((S2 * 16, LANES), np.float32)
    for s in range(S2):
        for c in range(c2_out):
            v_all[s * 16 + c, :fc_volume] = wv0[:, c * S2 + s]
            v_all[s * 16 + c, fc_volume:2 * fc_volume] = wa0[:, c * S2 + s]
    geo_flat = c2_out * S2
    wts = np.zeros((8, LANES), np.float32)
    wts[:2, :fc_volume] = wv0[:, geo_flat:geo_flat + 2].T
    wts[:2, fc_volume:2 * fc_volume] = wa0[:, geo_flat:geo_flat + 2].T
    bias1 = np.zeros((1, LANES), np.float32)
    bias1[0, :fc_volume] = np.asarray(bv0)
    bias1[0, fc_volume:2 * fc_volume] = np.asarray(ba0)

    # Middle FC layers (block-diagonal so both branches stay merged).
    mids = []
    for i in range(1, fc_layers):
        (wv, bv) = params["value"][i]
        (wa, ba) = params["adv"][i]
        wm = np.zeros((LANES, LANES), np.float32)
        wm[:fc_volume, :fc_volume] = np.asarray(wv).T
        wm[fc_volume:2 * fc_volume, fc_volume:2 * fc_volume] = np.asarray(wa).T
        bm = np.zeros((1, LANES), np.float32)
        bm[0, :fc_volume] = np.asarray(bv)
        bm[0, fc_volume:2 * fc_volume] = np.asarray(ba)
        mids.append((jnp.asarray(wm, jnp.bfloat16), jnp.asarray(bm, jnp.float32)))

    # Merged heads: advantage -> output lanes [0:A), value -> lane A.
    (wvh, bvh) = params["value"][fc_layers]
    (wah, bah) = params["adv"][fc_layers]
    whead = np.zeros((LANES, LANES), np.float32)
    whead[fc_volume:2 * fc_volume, :out_neurons] = np.asarray(wah).T
    whead[:fc_volume, out_neurons] = np.asarray(wvh)[0, :]
    bhead = np.zeros((1, LANES), np.float32)
    bhead[0, :out_neurons] = np.asarray(bah)
    bhead[0, out_neurons] = np.asarray(bvh)[0]

    return dict(
        w1=jnp.asarray(w1mat, jnp.bfloat16),
        aff1=jnp.asarray(aff1, jnp.float32),
        s2=jnp.asarray(s2_all, jnp.bfloat16),
        w2=jnp.asarray(w2mat, jnp.bfloat16),
        aff2=jnp.asarray(aff2, jnp.float32),
        e=jnp.asarray(e_mat, jnp.bfloat16),
        vall=jnp.asarray(v_all, jnp.bfloat16),
        wts=jnp.asarray(wts, jnp.bfloat16),
        b1=jnp.asarray(bias1, jnp.float32),
        mids=mids,
        whead=jnp.asarray(whead, jnp.bfloat16),
        bhead=jnp.asarray(bhead, jnp.float32),
    )


# ----------------------------------------------------------------------------
# The single fused kernel: conv1 -> conv2 -> merged FC stack -> dueling combine.
# ----------------------------------------------------------------------------
def make_dqn_kernel(*, batch, out_neurons, s2_sp, m2, n_mid):
    B, A, S2, M2, BP = batch, out_neurons, s2_sp, m2, 8

    def kernel(patches_ref, ts_ref, w1_ref, aff1_ref, s2_ref, w2_ref, aff2_ref,
               e_ref, vall_ref, wts_ref, b1_ref, *rest):
        mid_refs = rest[:2 * n_mid]
        whead_ref = rest[2 * n_mid]
        bhead_ref = rest[2 * n_mid + 1]
        o_ref = rest[2 * n_mid + 2]

        # conv1: im2col patches @ weight, folded BatchNorm + ReLU epilogue.
        a1 = jnp.dot(patches_ref[...], w1_ref[...], preferred_element_type=jnp.float32)
        a1 = jnp.maximum(a1 * aff1_ref[0:1, :] + aff1_ref[1:2, :], 0.0)
        a1b = a1.astype(jnp.bfloat16)

        # conv2: tap gather as one selection matmul, then 9 per-tap weight matmuls.
        p_all = jnp.dot(s2_ref[...], a1b, preferred_element_type=jnp.float32)
        acc2 = jnp.zeros((M2, LANES), jnp.float32)
        for t in range(9):
            pt = p_all[t * M2:(t + 1) * M2, 0:16].astype(jnp.bfloat16)
            acc2 = acc2 + jnp.dot(pt, w2_ref[t * 16:(t + 1) * 16, :],
                                  preferred_element_type=jnp.float32)
        a2 = jnp.maximum(acc2 * aff2_ref[0:1, :] + aff2_ref[1:2, :], 0.0)
        a2b = a2.astype(jnp.bfloat16)

        # Row expansion so the per-spatial-position slices below stay 8-row aligned.
        a2e = jnp.dot(e_ref[...], a2b, preferred_element_type=jnp.float32)

        # Merged first FC layer; the NCHW flatten is folded into the per-position
        # weight blocks (no in-kernel reshape / transpose).
        fc1 = jnp.dot(ts_ref[...], wts_ref[...], preferred_element_type=jnp.float32)
        for s in range(S2):
            xs = a2e[s * BP:(s + 1) * BP, 0:16].astype(jnp.bfloat16)
            fc1 = fc1 + jnp.dot(xs, vall_ref[s * 16:(s + 1) * 16, :],
                                preferred_element_type=jnp.float32)
        h = jnp.maximum(fc1 + b1_ref[...], 0.0)

        # Optional middle FC layers (block-diagonal merged weights).
        for i in range(n_mid):
            wm = mid_refs[2 * i]
            bm = mid_refs[2 * i + 1]
            h = jnp.maximum(
                jnp.dot(h.astype(jnp.bfloat16), wm[...],
                        preferred_element_type=jnp.float32) + bm[...], 0.0)

        # Merged heads: adv -> lanes [0:A), value -> lane A.
        raw = jnp.dot(h.astype(jnp.bfloat16), whead_ref[...],
                      preferred_element_type=jnp.float32) + bhead_ref[...]

        # Dueling combine: value + advantage - advantage.mean() (global scalar mean,
        # exactly as in the torch forward), masked to the real batch/action entries.
        rows = lax.broadcasted_iota(jnp.int32, raw.shape, 0)
        lanes_i = lax.broadcasted_iota(jnp.int32, raw.shape, 1)
        adv_mask = (rows < B) & (lanes_i < A)
        mean = jnp.sum(jnp.where(adv_mask, raw, 0.0)) * (1.0 / (B * A))
        val = raw[:, A:A + 1]
        o_ref[...] = (raw + val - mean).astype(o_ref.dtype)

    return kernel


def make_forward(consts, *, batch, kernel, stride, pad, h1, h2,
                 fc_layers, out_neurons):
    B = batch
    S1, S2 = h1 * h1, h2 * h2
    M1 = B * S1
    M1P = _round_up(M1, 8)
    M2 = S2 * B
    n_mid = fc_layers - 1

    kern = make_dqn_kernel(batch=B, out_neurons=out_neurons, s2_sp=S2, m2=M2,
                           n_mid=n_mid)

    flat_consts = [consts["w1"], consts["aff1"], consts["s2"], consts["w2"],
                   consts["aff2"], consts["e"], consts["vall"], consts["wts"],
                   consts["b1"]]
    for wm, bm in consts["mids"]:
        flat_consts += [wm, bm]
    flat_consts += [consts["whead"], consts["bhead"]]

    call = pl.pallas_call(
        kern,
        out_shape=jax.ShapeDtypeStruct((8, LANES), jnp.float32),
        in_specs=[_VMEM] * (2 + len(flat_consts)),
        out_specs=_VMEM,
    )

    @jax.jit
    def forward(geometric_x, ts_x):
        patches = _im2col(geometric_x.astype(jnp.float32), kernel, stride, pad)
        pat = jnp.zeros((M1P, LANES), jnp.float32)
        pat = pat.at[:M1, :patches.shape[1]].set(patches)
        ts_pad = jnp.zeros((8, 8), jnp.float32)
        ts_pad = ts_pad.at[:B, :2].set(ts_x[:, :2].astype(jnp.float32))
        out_full = call(pat.astype(jnp.bfloat16), ts_pad.astype(jnp.bfloat16),
                        *flat_consts)
        return out_full[:B, :out_neurons]

    return forward


# ----------------------------------------------------------------------------
# Pure-JAX reference (mirrors DQN.forward in eval mode) used for verification.
# ----------------------------------------------------------------------------
def reference_forward(params, geo, ts, *, stride, pad):
    x = geo
    for (w, b, g, be, rm, rv) in params["conv"]:
        x = lax.conv_general_dilated(
            x, w, window_strides=(stride, stride),
            padding=((pad, pad), (pad, pad)),
            dimension_numbers=("NCHW", "OIHW", "NCHW"))
        x = x + b[None, :, None, None]
        x = (x - rm[None, :, None, None]) / jnp.sqrt(rv[None, :, None, None] + BN_EPS)
        x = x * g[None, :, None, None] + be[None, :, None, None]
        x = jnp.maximum(x, 0.0)
    flat = x.reshape(x.shape[0], -1)
    feat = jnp.concatenate([flat, ts[:, :2]], axis=1)

    def branch(layers, inp):
        h = inp
        for (wm, bm) in layers[:-1]:
            h = jnp.maximum(h @ wm.T + bm, 0.0)
        wm, bm = layers[-1]
        return h @ wm.T + bm

    value = branch(params["value"], feat)
    adv = branch(params["adv"], feat)
    return value + adv - jnp.mean(adv)


# ----------------------------------------------------------------------------
if __name__ == "__main__":
    # (21-3+2)/2+1 = 11, (11-3+2)/2+1 = 6 — valid DQN geometry.
    channels, conv_layers, fc_layers = 4, 2, 1
    fc_volume, filters = 32, 4
    kernel, stride, pad = 3, 2, 1
    ts_ftrs, out_neurons = 2, 5
    batch = 2

    key = jax.random.PRNGKey(0)
    key, kp, kx, kt = jax.random.split(key, 4)

    params, h1, h2, c_out = init_params(
        kp, channels, conv_layers, fc_layers, fc_volume, filters,
        kernel, stride, pad, ts_ftrs, out_neurons)

    consts = preprocess_params(
        params, batch=batch, channels=channels, filters=filters, kernel=kernel,
        stride=stride, pad=pad, fc_layers=fc_layers, fc_volume=fc_volume,
        out_neurons=out_neurons, h1=h1, h2=h2)

    forward = make_forward(
        consts, batch=batch, kernel=kernel, stride=stride, pad=pad, h1=h1, h2=h2,
        fc_layers=fc_layers, out_neurons=out_neurons)

    geometric_x = jax.random.normal(kx, (batch, channels, BOARD_SIZE, BOARD_SIZE), jnp.float32)
    ts_x = jax.random.normal(kt, (batch, ts_ftrs), jnp.float32)

    out = jax.block_until_ready(forward(geometric_x, ts_x))
    ref = jax.block_until_ready(
        reference_forward(params, geometric_x, ts_x, stride=stride, pad=pad))

    assert out.shape == (batch, out_neurons), out.shape
    assert bool(jnp.all(jnp.isfinite(out)))
    np.testing.assert_allclose(np.asarray(out), np.asarray(ref), atol=5e-2, rtol=5e-2)
    print("KERNEL_OK")
</pallas_src>

<mosaic_0001>
module attributes {stable_mosaic.version = 11 : i64} {
  func.func @kernel(%arg0: memref<248x128xbf16, #tpu.memory_space<vmem>>, %arg1: memref<8x8xbf16, #tpu.memory_space<vmem>>, %arg2: memref<128x128xbf16, #tpu.memory_space<vmem>>, %arg3: memref<2x128xf32, #tpu.memory_space<vmem>>, %arg4: memref<648x248xbf16, #tpu.memory_space<vmem>>, %arg5: memref<144x128xbf16, #tpu.memory_space<vmem>>, %arg6: memref<2x128xf32, #tpu.memory_space<vmem>>, %arg7: memref<288x72xbf16, #tpu.memory_space<vmem>>, %arg8: memref<576x128xbf16, #tpu.memory_space<vmem>>, %arg9: memref<8x128xbf16, #tpu.memory_space<vmem>>, %arg10: memref<1x128xf32, #tpu.memory_space<vmem>>, %arg11: memref<128x128xbf16, #tpu.memory_space<vmem>>, %arg12: memref<1x128xf32, #tpu.memory_space<vmem>>, %arg13: memref<8x128xf32, #tpu.memory_space<vmem>>) attributes {dimension_semantics = [], scalar_prefetch = 0 : i64, scratch_operands = 0 : i64, tpu.core_type = #tpu.core_type<tc>} {
    %c0 = arith.constant 0 : index
    %c0_0 = arith.constant 0 : index
    %0 = vector.load %arg0[%c0, %c0_0] : memref<248x128xbf16, #tpu.memory_space<vmem>>, vector<248x128xbf16>
    %c0_1 = arith.constant 0 : index
    %c0_2 = arith.constant 0 : index
    %1 = vector.load %arg2[%c0_1, %c0_2] : memref<128x128xbf16, #tpu.memory_space<vmem>>, vector<128x128xbf16>
    %cst = arith.constant dense<0.000000e+00> : vector<248x128xf32>
    %2 = tpu.matmul %0, %1, %cst {dimension_numbers = #tpu.dot_dimension_numbers<[1], [0], [0], [1], [0, 0, 1, 1], [], []>} : vector<248x128xbf16>, vector<128x128xbf16>, vector<248x128xf32> -> vector<248x128xf32>
    %c0_3 = arith.constant 0 : index
    %c0_4 = arith.constant 0 : index
    %3 = vector.load %arg3[%c0_3, %c0_4] : memref<2x128xf32, #tpu.memory_space<vmem>>, vector<1x128xf32>
    %4 = vector.broadcast %3 : vector<1x128xf32> to vector<248x128xf32>
    %5 = arith.mulf %2, %4 : vector<248x128xf32>
    %c1 = arith.constant 1 : index
    %c0_5 = arith.constant 0 : index
    %6 = vector.load %arg3[%c1, %c0_5] : memref<2x128xf32, #tpu.memory_space<vmem>>, vector<1x128xf32>
    %7 = vector.broadcast %6 : vector<1x128xf32> to vector<248x128xf32>
    %8 = arith.addf %5, %7 : vector<248x128xf32>
    %cst_6 = arith.constant 0.000000e+00 : f32
    %9 = vector.broadcast %cst_6 : f32 to vector<248x128xf32>
    %10 = arith.maximumf %8, %9 : vector<248x128xf32>
    %11 = arith.truncf %10 : vector<248x128xf32> to vector<248x128xbf16>
    %c0_7 = arith.constant 0 : index
    %c0_8 = arith.constant 0 : index
    %12 = vector.load %arg4[%c0_7, %c0_8] : memref<648x248xbf16, #tpu.memory_space<vmem>>, vector<648x248xbf16>
    %cst_9 = arith.constant dense<0.000000e+00> : vector<648x128xf32>
    %13 = tpu.matmul %12, %11, %cst_9 {dimension_numbers = #tpu.dot_dimension_numbers<[1], [0], [0], [1], [0, 0, 1, 1], [], []>} : vector<648x248xbf16>, vector<248x128xbf16>, vector<648x128xf32> -> vector<648x128xf32>
    %cst_10 = arith.constant 0.000000e+00 : f32
    %14 = vector.broadcast %cst_10 : f32 to vector<72x128xf32>
    %15 = vector.extract_strided_slice %13 {offsets = [0, 0], sizes = [72, 16], strides = [1, 1]} : vector<648x128xf32> to vector<72x16xf32>
    %16 = arith.truncf %15 : vector<72x16xf32> to vector<72x16xbf16>
    %c0_11 = arith.constant 0 : index
    %c0_12 = arith.constant 0 : index
    %17 = vector.load %arg5[%c0_11, %c0_12] : memref<144x128xbf16, #tpu.memory_space<vmem>>, vector<16x128xbf16>
    %cst_13 = arith.constant dense<0.000000e+00> : vector<72x128xf32>
    %18 = tpu.matmul %16, %17, %cst_13 {dimension_numbers = #tpu.dot_dimension_numbers<[1], [0], [0], [1], [0, 0, 1, 1], [], []>} : vector<72x16xbf16>, vector<16x128xbf16>, vector<72x128xf32> -> vector<72x128xf32>
    %19 = arith.addf %14, %18 : vector<72x128xf32>
    %20 = vector.extract_strided_slice %13 {offsets = [72, 0], sizes = [72, 16], strides = [1, 1]} : vector<648x128xf32> to vector<72x16xf32>
    %21 = arith.truncf %20 : vector<72x16xf32> to vector<72x16xbf16>
    %c16 = arith.constant 16 : index
    %c0_14 = arith.constant 0 : index
    %22 = vector.load %arg5[%c16, %c0_14] : memref<144x128xbf16, #tpu.memory_space<vmem>>, vector<16x128xbf16>
    %cst_15 = arith.constant dense<0.000000e+00> : vector<72x128xf32>
    %23 = tpu.matmul %21, %22, %cst_15 {dimension_numbers = #tpu.dot_dimension_numbers<[1], [0], [0], [1], [0, 0, 1, 1], [], []>} : vector<72x16xbf16>, vector<16x128xbf16>, vector<72x128xf32> -> vector<72x128xf32>
    %24 = arith.addf %19, %23 : vector<72x128xf32>
    %25 = vector.extract_strided_slice %13 {offsets = [144, 0], sizes = [72, 16], strides = [1, 1]} : vector<648x128xf32> to vector<72x16xf32>
    %26 = arith.truncf %25 : vector<72x16xf32> to vector<72x16xbf16>
    %c32 = arith.constant 32 : index
    %c0_16 = arith.constant 0 : index
    %27 = vector.load %arg5[%c32, %c0_16] : memref<144x128xbf16, #tpu.memory_space<vmem>>, vector<16x128xbf16>
    %cst_17 = arith.constant dense<0.000000e+00> : vector<72x128xf32>
    %28 = tpu.matmul %26, %27, %cst_17 {dimension_numbers = #tpu.dot_dimension_numbers<[1], [0], [0], [1], [0, 0, 1, 1], [], []>} : vector<72x16xbf16>, vector<16x128xbf16>, vector<72x128xf32> -> vector<72x128xf32>
    %29 = arith.addf %24, %28 : vector<72x128xf32>
    %30 = vector.extract_strided_slice %13 {offsets = [216, 0], sizes = [72, 16], strides = [1, 1]} : vector<648x128xf32> to vector<72x16xf32>
    %31 = arith.truncf %30 : vector<72x16xf32> to vector<72x16xbf16>
    %c48 = arith.constant 48 : index
    %c0_18 = arith.constant 0 : index
    %32 = vector.load %arg5[%c48, %c0_18] : memref<144x128xbf16, #tpu.memory_space<vmem>>, vector<16x128xbf16>
    %cst_19 = arith.constant dense<0.000000e+00> : vector<72x128xf32>
    %33 = tpu.matmul %31, %32, %cst_19 {dimension_numbers = #tpu.dot_dimension_numbers<[1], [0], [0], [1], [0, 0, 1, 1], [], []>} : vector<72x16xbf16>, vector<16x128xbf16>, vector<72x128xf32> -> vector<72x128xf32>
    %34 = arith.addf %29, %33 : vector<72x128xf32>
    %35 = vector.extract_strided_slice %13 {offsets = [288, 0], sizes = [72, 16], strides = [1, 1]} : vector<648x128xf32> to vector<72x16xf32>
    %36 = arith.truncf %35 : vector<72x16xf32> to vector<72x16xbf16>
    %c64 = arith.constant 64 : index
    %c0_20 = arith.constant 0 : index
    %37 = vector.load %arg5[%c64, %c0_20] : memref<144x128xbf16, #tpu.memory_space<vmem>>, vector<16x128xbf16>
    %cst_21 = arith.constant dense<0.000000e+00> : vector<72x128xf32>
    %38 = tpu.matmul %36, %37, %cst_21 {dimension_numbers = #tpu.dot_dimension_numbers<[1], [0], [0], [1], [0, 0, 1, 1], [], []>} : vector<72x16xbf16>, vector<16x128xbf16>, vector<72x128xf32> -> vector<72x128xf32>
    %39 = arith.addf %34, %38 : vector<72x128xf32>
    %40 = vector.extract_strided_slice %13 {offsets = [360, 0], sizes = [72, 16], strides = [1, 1]} : vector<648x128xf32> to vector<72x16xf32>
    %41 = arith.truncf %40 : vector<72x16xf32> to vector<72x16xbf16>
    %c80 = arith.constant 80 : index
    %c0_22 = arith.constant 0 : index
    %42 = vector.load %arg5[%c80, %c0_22] : memref<144x128xbf16, #tpu.memory_space<vmem>>, vector<16x128xbf16>
    %cst_23 = arith.constant dense<0.000000e+00> : vector<72x128xf32>
    %43 = tpu.matmul %41, %42, %cst_23 {dimension_numbers = #tpu.dot_dimension_numbers<[1], [0], [0], [1], [0, 0, 1, 1], [], []>} : vector<72x16xbf16>, vector<16x128xbf16>, vector<72x128xf32> -> vector<72x128xf32>
    %44 = arith.addf %39, %43 : vector<72x128xf32>
    %45 = vector.extract_strided_slice %13 {offsets = [432, 0], sizes = [72, 16], strides = [1, 1]} : vector<648x128xf32> to vector<72x16xf32>
    %46 = arith.truncf %45 : vector<72x16xf32> to vector<72x16xbf16>
    %c96 = arith.constant 96 : index
    %c0_24 = arith.constant 0 : index
    %47 = vector.load %arg5[%c96, %c0_24] : memref<144x128xbf16, #tpu.memory_space<vmem>>, vector<16x128xbf16>
    %cst_25 = arith.constant dense<0.000000e+00> : vector<72x128xf32>
    %48 = tpu.matmul %46, %47, %cst_25 {dimension_numbers = #tpu.dot_dimension_numbers<[1], [0], [0], [1], [0, 0, 1, 1], [], []>} : vector<72x16xbf16>, vector<16x128xbf16>, vector<72x128xf32> -> vector<72x128xf32>
    %49 = arith.addf %44, %48 : vector<72x128xf32>
    %50 = vector.extract_strided_slice %13 {offsets = [504, 0], sizes = [72, 16], strides = [1, 1]} : vector<648x128xf32> to vector<72x16xf32>
    %51 = arith.truncf %50 : vector<72x16xf32> to vector<72x16xbf16>
    %c112 = arith.constant 112 : index
    %c0_26 = arith.constant 0 : index
    %52 = vector.load %arg5[%c112, %c0_26] : memref<144x128xbf16, #tpu.memory_space<vmem>>, vector<16x128xbf16>
    %cst_27 = arith.constant dense<0.000000e+00> : vector<72x128xf32>
    %53 = tpu.matmul %51, %52, %cst_27 {dimension_numbers = #tpu.dot_dimension_numbers<[1], [0], [0], [1], [0, 0, 1, 1], [], []>} : vector<72x16xbf16>, vector<16x128xbf16>, vector<72x128xf32> -> vector<72x128xf32>
    %54 = arith.addf %49, %53 : vector<72x128xf32>
    %55 = vector.extract_strided_slice %13 {offsets = [576, 0], sizes = [72, 16], strides = [1, 1]} : vector<648x128xf32> to vector<72x16xf32>
    %56 = arith.truncf %55 : vector<72x16xf32> to vector<72x16xbf16>
    %c128 = arith.constant 128 : index
    %c0_28 = arith.constant 0 : index
    %57 = vector.load %arg5[%c128, %c0_28] : memref<144x128xbf16, #tpu.memory_space<vmem>>, vector<16x128xbf16>
    %cst_29 = arith.constant dense<0.000000e+00> : vector<72x128xf32>
    %58 = tpu.matmul %56, %57, %cst_29 {dimension_numbers = #tpu.dot_dimension_numbers<[1], [0], [0], [1], [0, 0, 1, 1], [], []>} : vector<72x16xbf16>, vector<16x128xbf16>, vector<72x128xf32> -> vector<72x128xf32>
    %59 = arith.addf %54, %58 : vector<72x128xf32>
    %c0_30 = arith.constant 0 : index
    %c0_31 = arith.constant 0 : index
    %60 = vector.load %arg6[%c0_30, %c0_31] : memref<2x128xf32, #tpu.memory_space<vmem>>, vector<1x128xf32>
    %61 = vector.broadcast %60 : vector<1x128xf32> to vector<72x128xf32>
    %62 = arith.mulf %59, %61 : vector<72x128xf32>
    %c1_32 = arith.constant 1 : index
    %c0_33 = arith.constant 0 : index
    %63 = vector.load %arg6[%c1_32, %c0_33] : memref<2x128xf32, #tpu.memory_space<vmem>>, vector<1x128xf32>
    %64 = vector.broadcast %63 : vector<1x128xf32> to vector<72x128xf32>
    %65 = arith.addf %62, %64 : vector<72x128xf32>
    %cst_34 = arith.constant 0.000000e+00 : f32
    %66 = vector.broadcast %cst_34 : f32 to vector<72x128xf32>
    %67 = arith.maximumf %65, %66 : vector<72x128xf32>
    %68 = arith.truncf %67 : vector<72x128xf32> to vector<72x128xbf16>
    %c0_35 = arith.constant 0 : index
    %c0_36 = arith.constant 0 : index
    %69 = vector.load %arg7[%c0_35, %c0_36] : memref<288x72xbf16, #tpu.memory_space<vmem>>, vector<288x72xbf16>
    %cst_37 = arith.constant dense<0.000000e+00> : vector<288x128xf32>
    %70 = tpu.matmul %69, %68, %cst_37 {dimension_numbers = #tpu.dot_dimension_numbers<[1], [0], [0], [1], [0, 0, 1, 1], [], []>} : vector<288x72xbf16>, vector<72x128xbf16>, vector<288x128xf32> -> vector<288x128xf32>
    %c0_38 = arith.constant 0 : index
    %c0_39 = arith.constant 0 : index
    %71 = vector.load %arg1[%c0_38, %c0_39] : memref<8x8xbf16, #tpu.memory_space<vmem>>, vector<8x8xbf16>
    %c0_40 = arith.constant 0 : index
    %c0_41 = arith.constant 0 : index
    %72 = vector.load %arg9[%c0_40, %c0_41] : memref<8x128xbf16, #tpu.memory_space<vmem>>, vector<8x128xbf16>
    %cst_42 = arith.constant dense<0.000000e+00> : vector<8x128xf32>
    %73 = tpu.matmul %71, %72, %cst_42 {dimension_numbers = #tpu.dot_dimension_numbers<[1], [0], [0], [1], [0, 0, 1, 1], [], []>} : vector<8x8xbf16>, vector<8x128xbf16>, vector<8x128xf32> -> vector<8x128xf32>
    %74 = vector.extract_strided_slice %70 {offsets = [0, 0], sizes = [8, 16], strides = [1, 1]} : vector<288x128xf32> to vector<8x16xf32>
    %75 = arith.truncf %74 : vector<8x16xf32> to vector<8x16xbf16>
    %c0_43 = arith.constant 0 : index
    %c0_44 = arith.constant 0 : index
    %76 = vector.load %arg8[%c0_43, %c0_44] : memref<576x128xbf16, #tpu.memory_space<vmem>>, vector<16x128xbf16>
    %cst_45 = arith.constant dense<0.000000e+00> : vector<8x128xf32>
    %77 = tpu.matmul %75, %76, %cst_45 {dimension_numbers = #tpu.dot_dimension_numbers<[1], [0], [0], [1], [0, 0, 1, 1], [], []>} : vector<8x16xbf16>, vector<16x128xbf16>, vector<8x128xf32> -> vector<8x128xf32>
    %78 = arith.addf %73, %77 : vector<8x128xf32>
    %79 = vector.extract_strided_slice %70 {offsets = [8, 0], sizes = [8, 16], strides = [1, 1]} : vector<288x128xf32> to vector<8x16xf32>
    %80 = arith.truncf %79 : vector<8x16xf32> to vector<8x16xbf16>
    %c16_46 = arith.constant 16 : index
    %c0_47 = arith.constant 0 : index
    %81 = vector.load %arg8[%c16_46, %c0_47] : memref<576x128xbf16, #tpu.memory_space<vmem>>, vector<16x128xbf16>
    %cst_48 = arith.constant dense<0.000000e+00> : vector<8x128xf32>
    %82 = tpu.matmul %80, %81, %cst_48 {dimension_numbers = #tpu.dot_dimension_numbers<[1], [0], [0], [1], [0, 0, 1, 1], [], []>} : vector<8x16xbf16>, vector<16x128xbf16>, vector<8x128xf32> -> vector<8x128xf32>
    %83 = arith.addf %78, %82 : vector<8x128xf32>
    %84 = vector.extract_strided_slice %70 {offsets = [16, 0], sizes = [8, 16], strides = [1, 1]} : vector<288x128xf32> to vector<8x16xf32>
    %85 = arith.truncf %84 : vector<8x16xf32> to vector<8x16xbf16>
    %c32_49 = arith.constant 32 : index
    %c0_50 = arith.constant 0 : index
    %86 = vector.load %arg8[%c32_49, %c0_50] : memref<576x128xbf16, #tpu.memory_space<vmem>>, vector<16x128xbf16>
    %cst_51 = arith.constant dense<0.000000e+00> : vector<8x128xf32>
    %87 = tpu.matmul %85, %86, %cst_51 {dimension_numbers = #tpu.dot_dimension_numbers<[1], [0], [0], [1], [0, 0, 1, 1], [], []>} : vector<8x16xbf16>, vector<16x128xbf16>, vector<8x128xf32> -> vector<8x128xf32>
    %88 = arith.addf %83, %87 : vector<8x128xf32>
    %89 = vector.extract_strided_slice %70 {offsets = [24, 0], sizes = [8, 16], strides = [1, 1]} : vector<288x128xf32> to vector<8x16xf32>
    %90 = arith.truncf %89 : vector<8x16xf32> to vector<8x16xbf16>
    %c48_52 = arith.constant 48 : index
    %c0_53 = arith.constant 0 : index
    %91 = vector.load %arg8[%c48_52, %c0_53] : memref<576x128xbf16, #tpu.memory_space<vmem>>, vector<16x128xbf16>
    %cst_54 = arith.constant dense<0.000000e+00> : vector<8x128xf32>
    %92 = tpu.matmul %90, %91, %cst_54 {dimension_numbers = #tpu.dot_dimension_numbers<[1], [0], [0], [1], [0, 0, 1, 1], [], []>} : vector<8x16xbf16>, vector<16x128xbf16>, vector<8x128xf32> -> vector<8x128xf32>
    %93 = arith.addf %88, %92 : vector<8x128xf32>
    %94 = vector.extract_strided_slice %70 {offsets = [32, 0], sizes = [8, 16], strides = [1, 1]} : vector<288x128xf32> to vector<8x16xf32>
    %95 = arith.truncf %94 : vector<8x16xf32> to vector<8x16xbf16>
    %c64_55 = arith.constant 64 : index
    %c0_56 = arith.constant 0 : index
    %96 = vector.load %arg8[%c64_55, %c0_56] : memref<576x128xbf16, #tpu.memory_space<vmem>>, vector<16x128xbf16>
    %cst_57 = arith.constant dense<0.000000e+00> : vector<8x128xf32>
    %97 = tpu.matmul %95, %96, %cst_57 {dimension_numbers = #tpu.dot_dimension_numbers<[1], [0], [0], [1], [0, 0, 1, 1], [], []>} : vector<8x16xbf16>, vector<16x128xbf16>, vector<8x128xf32> -> vector<8x128xf32>
    %98 = arith.addf %93, %97 : vector<8x128xf32>
    %99 = vector.extract_strided_slice %70 {offsets = [40, 0], sizes = [8, 16], strides = [1, 1]} : vector<288x128xf32> to vector<8x16xf32>
    %100 = arith.truncf %99 : vector<8x16xf32> to vector<8x16xbf16>
    %c80_58 = arith.constant 80 : index
    %c0_59 = arith.constant 0 : index
    %101 = vector.load %arg8[%c80_58, %c0_59] : memref<576x128xbf16, #tpu.memory_space<vmem>>, vector<16x128xbf16>
    %cst_60 = arith.constant dense<0.000000e+00> : vector<8x128xf32>
    %102 = tpu.matmul %100, %101, %cst_60 {dimension_numbers = #tpu.dot_dimension_numbers<[1], [0], [0], [1], [0, 0, 1, 1], [], []>} : vector<8x16xbf16>, vector<16x128xbf16>, vector<8x128xf32> -> vector<8x128xf32>
    %103 = arith.addf %98, %102 : vector<8x128xf32>
    %104 = vector.extract_strided_slice %70 {offsets = [48, 0], sizes = [8, 16], strides = [1, 1]} : vector<288x128xf32> to vector<8x16xf32>
    %105 = arith.truncf %104 : vector<8x16xf32> to vector<8x16xbf16>
    %c96_61 = arith.constant 96 : index
    %c0_62 = arith.constant 0 : index
    %106 = vector.load %arg8[%c96_61, %c0_62] : memref<576x128xbf16, #tpu.memory_space<vmem>>, vector<16x128xbf16>
    %cst_63 = arith.constant dense<0.000000e+00> : vector<8x128xf32>
    %107 = tpu.matmul %105, %106, %cst_63 {dimension_numbers = #tpu.dot_dimension_numbers<[1], [0], [0], [1], [0, 0, 1, 1], [], []>} : vector<8x16xbf16>, vector<16x128xbf16>, vector<8x128xf32> -> vector<8x128xf32>
    %108 = arith.addf %103, %107 : vector<8x128xf32>
    %109 = vector.extract_strided_slice %70 {offsets = [56, 0], sizes = [8, 16], strides = [1, 1]} : vector<288x128xf32> to vector<8x16xf32>
    %110 = arith.truncf %109 : vector<8x16xf32> to vector<8x16xbf16>
    %c112_64 = arith.constant 112 : index
    %c0_65 = arith.constant 0 : index
    %111 = vector.load %arg8[%c112_64, %c0_65] : memref<576x128xbf16, #tpu.memory_space<vmem>>, vector<16x128xbf16>
    %cst_66 = arith.constant dense<0.000000e+00> : vector<8x128xf32>
    %112 = tpu.matmul %110, %111, %cst_66 {dimension_numbers = #tpu.dot_dimension_numbers<[1], [0], [0], [1], [0, 0, 1, 1], [], []>} : vector<8x16xbf16>, vector<16x128xbf16>, vector<8x128xf32> -> vector<8x128xf32>
    %113 = arith.addf %108, %112 : vector<8x128xf32>
    %114 = vector.extract_strided_slice %70 {offsets = [64, 0], sizes = [8, 16], strides = [1, 1]} : vector<288x128xf32> to vector<8x16xf32>
    %115 = arith.truncf %114 : vector<8x16xf32> to vector<8x16xbf16>
    %c128_67 = arith.constant 128 : index
    %c0_68 = arith.constant 0 : index
    %116 = vector.load %arg8[%c128_67, %c0_68] : memref<576x128xbf16, #tpu.memory_space<vmem>>, vector<16x128xbf16>
    %cst_69 = arith.constant dense<0.000000e+00> : vector<8x128xf32>
    %117 = tpu.matmul %115, %116, %cst_69 {dimension_numbers = #tpu.dot_dimension_numbers<[1], [0], [0], [1], [0, 0, 1, 1], [], []>} : vector<8x16xbf16>, vector<16x128xbf16>, vector<8x128xf32> -> vector<8x128xf32>
    %118 = arith.addf %113, %117 : vector<8x128xf32>
    %119 = vector.extract_strided_slice %70 {offsets = [72, 0], sizes = [8, 16], strides = [1, 1]} : vector<288x128xf32> to vector<8x16xf32>
    %120 = arith.truncf %119 : vector<8x16xf32> to vector<8x16xbf16>
    %c144 = arith.constant 144 : index
    %c0_70 = arith.constant 0 : index
    %121 = vector.load %arg8[%c144, %c0_70] : memref<576x128xbf16, #tpu.memory_space<vmem>>, vector<16x128xbf16>
    %cst_71 = arith.constant dense<0.000000e+00> : vector<8x128xf32>
    %122 = tpu.matmul %120, %121, %cst_71 {dimension_numbers = #tpu.dot_dimension_numbers<[1], [0], [0], [1], [0, 0, 1, 1], [], []>} : vector<8x16xbf16>, vector<16x128xbf16>, vector<8x128xf32> -> vector<8x128xf32>
    %123 = arith.addf %118, %122 : vector<8x128xf32>
    %124 = vector.extract_strided_slice %70 {offsets = [80, 0], sizes = [8, 16], strides = [1, 1]} : vector<288x128xf32> to vector<8x16xf32>
    %125 = arith.truncf %124 : vector<8x16xf32> to vector<8x16xbf16>
    %c160 = arith.constant 160 : index
    %c0_72 = arith.constant 0 : index
    %126 = vector.load %arg8[%c160, %c0_72] : memref<576x128xbf16, #tpu.memory_space<vmem>>, vector<16x128xbf16>
    %cst_73 = arith.constant dense<0.000000e+00> : vector<8x128xf32>
    %127 = tpu.matmul %125, %126, %cst_73 {dimension_numbers = #tpu.dot_dimension_numbers<[1], [0], [0], [1], [0, 0, 1, 1], [], []>} : vector<8x16xbf16>, vector<16x128xbf16>, vector<8x128xf32> -> vector<8x128xf32>
    %128 = arith.addf %123, %127 : vector<8x128xf32>
    %129 = vector.extract_strided_slice %70 {offsets = [88, 0], sizes = [8, 16], strides = [1, 1]} : vector<288x128xf32> to vector<8x16xf32>
    %130 = arith.truncf %129 : vector<8x16xf32> to vector<8x16xbf16>
    %c176 = arith.constant 176 : index
    %c0_74 = arith.constant 0 : index
    %131 = vector.load %arg8[%c176, %c0_74] : memref<576x128xbf16, #tpu.memory_space<vmem>>, vector<16x128xbf16>
    %cst_75 = arith.constant dense<0.000000e+00> : vector<8x128xf32>
    %132 = tpu.matmul %130, %131, %cst_75 {dimension_numbers = #tpu.dot_dimension_numbers<[1], [0], [0], [1], [0, 0, 1, 1], [], []>} : vector<8x16xbf16>, vector<16x128xbf16>, vector<8x128xf32> -> vector<8x128xf32>
    %133 = arith.addf %128, %132 : vector<8x128xf32>
    %134 = vector.extract_strided_slice %70 {offsets = [96, 0], sizes = [8, 16], strides = [1, 1]} : vector<288x128xf32> to vector<8x16xf32>
    %135 = arith.truncf %134 : vector<8x16xf32> to vector<8x16xbf16>
    %c192 = arith.constant 192 : index
    %c0_76 = arith.constant 0 : index
    %136 = vector.load %arg8[%c192, %c0_76] : memref<576x128xbf16, #tpu.memory_space<vmem>>, vector<16x128xbf16>
    %cst_77 = arith.constant dense<0.000000e+00> : vector<8x128xf32>
    %137 = tpu.matmul %135, %136, %cst_77 {dimension_numbers = #tpu.dot_dimension_numbers<[1], [0], [0], [1], [0, 0, 1, 1], [], []>} : vector<8x16xbf16>, vector<16x128xbf16>, vector<8x128xf32> -> vector<8x128xf32>
    %138 = arith.addf %133, %137 : vector<8x128xf32>
    %139 = vector.extract_strided_slice %70 {offsets = [104, 0], sizes = [8, 16], strides = [1, 1]} : vector<288x128xf32> to vector<8x16xf32>
    %140 = arith.truncf %139 : vector<8x16xf32> to vector<8x16xbf16>
    %c208 = arith.constant 208 : index
    %c0_78 = arith.constant 0 : index
    %141 = vector.load %arg8[%c208, %c0_78] : memref<576x128xbf16, #tpu.memory_space<vmem>>, vector<16x128xbf16>
    %cst_79 = arith.constant dense<0.000000e+00> : vector<8x128xf32>
    %142 = tpu.matmul %140, %141, %cst_79 {dimension_numbers = #tpu.dot_dimension_numbers<[1], [0], [0], [1], [0, 0, 1, 1], [], []>} : vector<8x16xbf16>, vector<16x128xbf16>, vector<8x128xf32> -> vector<8x128xf32>
    %143 = arith.addf %138, %142 : vector<8x128xf32>
    %144 = vector.extract_strided_slice %70 {offsets = [112, 0], sizes = [8, 16], strides = [1, 1]} : vector<288x128xf32> to vector<8x16xf32>
    %145 = arith.truncf %144 : vector<8x16xf32> to vector<8x16xbf16>
    %c224 = arith.constant 224 : index
    %c0_80 = arith.constant 0 : index
    %146 = vector.load %arg8[%c224, %c0_80] : memref<576x128xbf16, #tpu.memory_space<vmem>>, vector<16x128xbf16>
    %cst_81 = arith.constant dense<0.000000e+00> : vector<8x128xf32>
    %147 = tpu.matmul %145, %146, %cst_81 {dimension_numbers = #tpu.dot_dimension_numbers<[1], [0], [0], [1], [0, 0, 1, 1], [], []>} : vector<8x16xbf16>, vector<16x128xbf16>, vector<8x128xf32> -> vector<8x128xf32>
    %148 = arith.addf %143, %147 : vector<8x128xf32>
    %149 = vector.extract_strided_slice %70 {offsets = [120, 0], sizes = [8, 16], strides = [1, 1]} : vector<288x128xf32> to vector<8x16xf32>
    %150 = arith.truncf %149 : vector<8x16xf32> to vector<8x16xbf16>
    %c240 = arith.constant 240 : index
    %c0_82 = arith.constant 0 : index
    %151 = vector.load %arg8[%c240, %c0_82] : memref<576x128xbf16, #tpu.memory_space<vmem>>, vector<16x128xbf16>
    %cst_83 = arith.constant dense<0.000000e+00> : vector<8x128xf32>
    %152 = tpu.matmul %150, %151, %cst_83 {dimension_numbers = #tpu.dot_dimension_numbers<[1], [0], [0], [1], [0, 0, 1, 1], [], []>} : vector<8x16xbf16>, vector<16x128xbf16>, vector<8x128xf32> -> vector<8x128xf32>
    %153 = arith.addf %148, %152 : vector<8x128xf32>
    %154 = vector.extract_strided_slice %70 {offsets = [128, 0], sizes = [8, 16], strides = [1, 1]} : vector<288x128xf32> to vector<8x16xf32>
    %155 = arith.truncf %154 : vector<8x16xf32> to vector<8x16xbf16>
    %c256 = arith.constant 256 : index
    %c0_84 = arith.constant 0 : index
    %156 = vector.load %arg8[%c256, %c0_84] : memref<576x128xbf16, #tpu.memory_space<vmem>>, vector<16x128xbf16>
    %cst_85 = arith.constant dense<0.000000e+00> : vector<8x128xf32>
    %157 = tpu.matmul %155, %156, %cst_85 {dimension_numbers = #tpu.dot_dimension_numbers<[1], [0], [0], [1], [0, 0, 1, 1], [], []>} : vector<8x16xbf16>, vector<16x128xbf16>, vector<8x128xf32> -> vector<8x128xf32>
    %158 = arith.addf %153, %157 : vector<8x128xf32>
    %159 = vector.extract_strided_slice %70 {offsets = [136, 0], sizes = [8, 16], strides = [1, 1]} : vector<288x128xf32> to vector<8x16xf32>
    %160 = arith.truncf %159 : vector<8x16xf32> to vector<8x16xbf16>
    %c272 = arith.constant 272 : index
    %c0_86 = arith.constant 0 : index
    %161 = vector.load %arg8[%c272, %c0_86] : memref<576x128xbf16, #tpu.memory_space<vmem>>, vector<16x128xbf16>
    %cst_87 = arith.constant dense<0.000000e+00> : vector<8x128xf32>
    %162 = tpu.matmul %160, %161, %cst_87 {dimension_numbers = #tpu.dot_dimension_numbers<[1], [0], [0], [1], [0, 0, 1, 1], [], []>} : vector<8x16xbf16>, vector<16x128xbf16>, vector<8x128xf32> -> vector<8x128xf32>
    %163 = arith.addf %158, %162 : vector<8x128xf32>
    %164 = vector.extract_strided_slice %70 {offsets = [144, 0], sizes = [8, 16], strides = [1, 1]} : vector<288x128xf32> to vector<8x16xf32>
    %165 = arith.truncf %164 : vector<8x16xf32> to vector<8x16xbf16>
    %c288 = arith.constant 288 : index
    %c0_88 = arith.constant 0 : index
    %166 = vector.load %arg8[%c288, %c0_88] : memref<576x128xbf16, #tpu.memory_space<vmem>>, vector<16x128xbf16>
    %cst_89 = arith.constant dense<0.000000e+00> : vector<8x128xf32>
    %167 = tpu.matmul %165, %166, %cst_89 {dimension_numbers = #tpu.dot_dimension_numbers<[1], [0], [0], [1], [0, 0, 1, 1], [], []>} : vector<8x16xbf16>, vector<16x128xbf16>, vector<8x128xf32> -> vector<8x128xf32>
    %168 = arith.addf %163, %167 : vector<8x128xf32>
    %169 = vector.extract_strided_slice %70 {offsets = [152, 0], sizes = [8, 16], strides = [1, 1]} : vector<288x128xf32> to vector<8x16xf32>
    %170 = arith.truncf %169 : vector<8x16xf32> to vector<8x16xbf16>
    %c304 = arith.constant 304 : index
    %c0_90 = arith.constant 0 : index
    %171 = vector.load %arg8[%c304, %c0_90] : memref<576x128xbf16, #tpu.memory_space<vmem>>, vector<16x128xbf16>
    %cst_91 = arith.constant dense<0.000000e+00> : vector<8x128xf32>
    %172 = tpu.matmul %170, %171, %cst_91 {dimension_numbers = #tpu.dot_dimension_numbers<[1], [0], [0], [1], [0, 0, 1, 1], [], []>} : vector<8x16xbf16>, vector<16x128xbf16>, vector<8x128xf32> -> vector<8x128xf32>
    %173 = arith.addf %168, %172 : vector<8x128xf32>
    %174 = vector.extract_strided_slice %70 {offsets = [160, 0], sizes = [8, 16], strides = [1, 1]} : vector<288x128xf32> to vector<8x16xf32>
    %175 = arith.truncf %174 : vector<8x16xf32> to vector<8x16xbf16>
    %c320 = arith.constant 320 : index
    %c0_92 = arith.constant 0 : index
    %176 = vector.load %arg8[%c320, %c0_92] : memref<576x128xbf16, #tpu.memory_space<vmem>>, vector<16x128xbf16>
    %cst_93 = arith.constant dense<0.000000e+00> : vector<8x128xf32>
    %177 = tpu.matmul %175, %176, %cst_93 {dimension_numbers = #tpu.dot_dimension_numbers<[1], [0], [0], [1], [0, 0, 1, 1], [], []>} : vector<8x16xbf16>, vector<16x128xbf16>, vector<8x128xf32> -> vector<8x128xf32>
    %178 = arith.addf %173, %177 : vector<8x128xf32>
    %179 = vector.extract_strided_slice %70 {offsets = [168, 0], sizes = [8, 16], strides = [1, 1]} : vector<288x128xf32> to vector<8x16xf32>
    %180 = arith.truncf %179 : vector<8x16xf32> to vector<8x16xbf16>
    %c336 = arith.constant 336 : index
    %c0_94 = arith.constant 0 : index
    %181 = vector.load %arg8[%c336, %c0_94] : memref<576x128xbf16, #tpu.memory_space<vmem>>, vector<16x128xbf16>
    %cst_95 = arith.constant dense<0.000000e+00> : vector<8x128xf32>
    %182 = tpu.matmul %180, %181, %cst_95 {dimension_numbers = #tpu.dot_dimension_numbers<[1], [0], [0], [1], [0, 0, 1, 1], [], []>} : vector<8x16xbf16>, vector<16x128xbf16>, vector<8x128xf32> -> vector<8x128xf32>
    %183 = arith.addf %178, %182 : vector<8x128xf32>
    %184 = vector.extract_strided_slice %70 {offsets = [176, 0], sizes = [8, 16], strides = [1, 1]} : vector<288x128xf32> to vector<8x16xf32>
    %185 = arith.truncf %184 : vector<8x16xf32> to vector<8x16xbf16>
    %c352 = arith.constant 352 : index
    %c0_96 = arith.constant 0 : index
    %186 = vector.load %arg8[%c352, %c0_96] : memref<576x128xbf16, #tpu.memory_space<vmem>>, vector<16x128xbf16>
    %cst_97 = arith.constant dense<0.000000e+00> : vector<8x128xf32>
    %187 = tpu.matmul %185, %186, %cst_97 {dimension_numbers = #tpu.dot_dimension_numbers<[1], [0], [0], [1], [0, 0, 1, 1], [], []>} : vector<8x16xbf16>, vector<16x128xbf16>, vector<8x128xf32> -> vector<8x128xf32>
    %188 = arith.addf %183, %187 : vector<8x128xf32>
    %189 = vector.extract_strided_slice %70 {offsets = [184, 0], sizes = [8, 16], strides = [1, 1]} : vector<288x128xf32> to vector<8x16xf32>
    %190 = arith.truncf %189 : vector<8x16xf32> to vector<8x16xbf16>
    %c368 = arith.constant 368 : index
    %c0_98 = arith.constant 0 : index
    %191 = vector.load %arg8[%c368, %c0_98] : memref<576x128xbf16, #tpu.memory_space<vmem>>, vector<16x128xbf16>
    %cst_99 = arith.constant dense<0.000000e+00> : vector<8x128xf32>
    %192 = tpu.matmul %190, %191, %cst_99 {dimension_numbers = #tpu.dot_dimension_numbers<[1], [0], [0], [1], [0, 0, 1, 1], [], []>} : vector<8x16xbf16>, vector<16x128xbf16>, vector<8x128xf32> -> vector<8x128xf32>
    %193 = arith.addf %188, %192 : vector<8x128xf32>
    %194 = vector.extract_strided_slice %70 {offsets = [192, 0], sizes = [8, 16], strides = [1, 1]} : vector<288x128xf32> to vector<8x16xf32>
    %195 = arith.truncf %194 : vector<8x16xf32> to vector<8x16xbf16>
    %c384 = arith.constant 384 : index
    %c0_100 = arith.constant 0 : index
    %196 = vector.load %arg8[%c384, %c0_100] : memref<576x128xbf16, #tpu.memory_space<vmem>>, vector<16x128xbf16>
    %cst_101 = arith.constant dense<0.000000e+00> : vector<8x128xf32>
    %197 = tpu.matmul %195, %196, %cst_101 {dimension_numbers = #tpu.dot_dimension_numbers<[1], [0], [0], [1], [0, 0, 1, 1], [], []>} : vector<8x16xbf16>, vector<16x128xbf16>, vector<8x128xf32> -> vector<8x128xf32>
    %198 = arith.addf %193, %197 : vector<8x128xf32>
    %199 = vector.extract_strided_slice %70 {offsets = [200, 0], sizes = [8, 16], strides = [1, 1]} : vector<288x128xf32> to vector<8x16xf32>
    %200 = arith.truncf %199 : vector<8x16xf32> to vector<8x16xbf16>
    %c400 = arith.constant 400 : index
    %c0_102 = arith.constant 0 : index
    %201 = vector.load %arg8[%c400, %c0_102] : memref<576x128xbf16, #tpu.memory_space<vmem>>, vector<16x128xbf16>
    %cst_103 = arith.constant dense<0.000000e+00> : vector<8x128xf32>
    %202 = tpu.matmul %200, %201, %cst_103 {dimension_numbers = #tpu.dot_dimension_numbers<[1], [0], [0], [1], [0, 0, 1, 1], [], []>} : vector<8x16xbf16>, vector<16x128xbf16>, vector<8x128xf32> -> vector<8x128xf32>
    %203 = arith.addf %198, %202 : vector<8x128xf32>
    %204 = vector.extract_strided_slice %70 {offsets = [208, 0], sizes = [8, 16], strides = [1, 1]} : vector<288x128xf32> to vector<8x16xf32>
    %205 = arith.truncf %204 : vector<8x16xf32> to vector<8x16xbf16>
    %c416 = arith.constant 416 : index
    %c0_104 = arith.constant 0 : index
    %206 = vector.load %arg8[%c416, %c0_104] : memref<576x128xbf16, #tpu.memory_space<vmem>>, vector<16x128xbf16>
    %cst_105 = arith.constant dense<0.000000e+00> : vector<8x128xf32>
    %207 = tpu.matmul %205, %206, %cst_105 {dimension_numbers = #tpu.dot_dimension_numbers<[1], [0], [0], [1], [0, 0, 1, 1], [], []>} : vector<8x16xbf16>, vector<16x128xbf16>, vector<8x128xf32> -> vector<8x128xf32>
    %208 = arith.addf %203, %207 : vector<8x128xf32>
    %209 = vector.extract_strided_slice %70 {offsets = [216, 0], sizes = [8, 16], strides = [1, 1]} : vector<288x128xf32> to vector<8x16xf32>
    %210 = arith.truncf %209 : vector<8x16xf32> to vector<8x16xbf16>
    %c432 = arith.constant 432 : index
    %c0_106 = arith.constant 0 : index
    %211 = vector.load %arg8[%c432, %c0_106] : memref<576x128xbf16, #tpu.memory_space<vmem>>, vector<16x128xbf16>
    %cst_107 = arith.constant dense<0.000000e+00> : vector<8x128xf32>
    %212 = tpu.matmul %210, %211, %cst_107 {dimension_numbers = #tpu.dot_dimension_numbers<[1], [0], [0], [1], [0, 0, 1, 1], [], []>} : vector<8x16xbf16>, vector<16x128xbf16>, vector<8x128xf32> -> vector<8x128xf32>
    %213 = arith.addf %208, %212 : vector<8x128xf32>
    %214 = vector.extract_strided_slice %70 {offsets = [224, 0], sizes = [8, 16], strides = [1, 1]} : vector<288x128xf32> to vector<8x16xf32>
    %215 = arith.truncf %214 : vector<8x16xf32> to vector<8x16xbf16>
    %c448 = arith.constant 448 : index
    %c0_108 = arith.constant 0 : index
    %216 = vector.load %arg8[%c448, %c0_108] : memref<576x128xbf16, #tpu.memory_space<vmem>>, vector<16x128xbf16>
    %cst_109 = arith.constant dense<0.000000e+00> : vector<8x128xf32>
    %217 = tpu.matmul %215, %216, %cst_109 {dimension_numbers = #tpu.dot_dimension_numbers<[1], [0], [0], [1], [0, 0, 1, 1], [], []>} : vector<8x16xbf16>, vector<16x128xbf16>, vector<8x128xf32> -> vector<8x128xf32>
    %218 = arith.addf %213, %217 : vector<8x128xf32>
    %219 = vector.extract_strided_slice %70 {offsets = [232, 0], sizes = [8, 16], strides = [1, 1]} : vector<288x128xf32> to vector<8x16xf32>
    %220 = arith.truncf %219 : vector<8x16xf32> to vector<8x16xbf16>
    %c464 = arith.constant 464 : index
    %c0_110 = arith.constant 0 : index
    %221 = vector.load %arg8[%c464, %c0_110] : memref<576x128xbf16, #tpu.memory_space<vmem>>, vector<16x128xbf16>
    %cst_111 = arith.constant dense<0.000000e+00> : vector<8x128xf32>
    %222 = tpu.matmul %220, %221, %cst_111 {dimension_numbers = #tpu.dot_dimension_numbers<[1], [0], [0], [1], [0, 0, 1, 1], [], []>} : vector<8x16xbf16>, vector<16x128xbf16>, vector<8x128xf32> -> vector<8x128xf32>
    %223 = arith.addf %218, %222 : vector<8x128xf32>
    %224 = vector.extract_strided_slice %70 {offsets = [240, 0], sizes = [8, 16], strides = [1, 1]} : vector<288x128xf32> to vector<8x16xf32>
    %225 = arith.truncf %224 : vector<8x16xf32> to vector<8x16xbf16>
    %c480 = arith.constant 480 : index
    %c0_112 = arith.constant 0 : index
    %226 = vector.load %arg8[%c480, %c0_112] : memref<576x128xbf16, #tpu.memory_space<vmem>>, vector<16x128xbf16>
    %cst_113 = arith.constant dense<0.000000e+00> : vector<8x128xf32>
    %227 = tpu.matmul %225, %226, %cst_113 {dimension_numbers = #tpu.dot_dimension_numbers<[1], [0], [0], [1], [0, 0, 1, 1], [], []>} : vector<8x16xbf16>, vector<16x128xbf16>, vector<8x128xf32> -> vector<8x128xf32>
    %228 = arith.addf %223, %227 : vector<8x128xf32>
    %229 = vector.extract_strided_slice %70 {offsets = [248, 0], sizes = [8, 16], strides = [1, 1]} : vector<288x128xf32> to vector<8x16xf32>
    %230 = arith.truncf %229 : vector<8x16xf32> to vector<8x16xbf16>
    %c496 = arith.constant 496 : index
    %c0_114 = arith.constant 0 : index
    %231 = vector.load %arg8[%c496, %c0_114] : memref<576x128xbf16, #tpu.memory_space<vmem>>, vector<16x128xbf16>
    %cst_115 = arith.constant dense<0.000000e+00> : vector<8x128xf32>
    %232 = tpu.matmul %230, %231, %cst_115 {dimension_numbers = #tpu.dot_dimension_numbers<[1], [0], [0], [1], [0, 0, 1, 1], [], []>} : vector<8x16xbf16>, vector<16x128xbf16>, vector<8x128xf32> -> vector<8x128xf32>
    %233 = arith.addf %228, %232 : vector<8x128xf32>
    %234 = vector.extract_strided_slice %70 {offsets = [256, 0], sizes = [8, 16], strides = [1, 1]} : vector<288x128xf32> to vector<8x16xf32>
    %235 = arith.truncf %234 : vector<8x16xf32> to vector<8x16xbf16>
    %c512 = arith.constant 512 : index
    %c0_116 = arith.constant 0 : index
    %236 = vector.load %arg8[%c512, %c0_116] : memref<576x128xbf16, #tpu.memory_space<vmem>>, vector<16x128xbf16>
    %cst_117 = arith.constant dense<0.000000e+00> : vector<8x128xf32>
    %237 = tpu.matmul %235, %236, %cst_117 {dimension_numbers = #tpu.dot_dimension_numbers<[1], [0], [0], [1], [0, 0, 1, 1], [], []>} : vector<8x16xbf16>, vector<16x128xbf16>, vector<8x128xf32> -> vector<8x128xf32>
    %238 = arith.addf %233, %237 : vector<8x128xf32>
    %239 = vector.extract_strided_slice %70 {offsets = [264, 0], sizes = [8, 16], strides = [1, 1]} : vector<288x128xf32> to vector<8x16xf32>
    %240 = arith.truncf %239 : vector<8x16xf32> to vector<8x16xbf16>
    %c528 = arith.constant 528 : index
    %c0_118 = arith.constant 0 : index
    %241 = vector.load %arg8[%c528, %c0_118] : memref<576x128xbf16, #tpu.memory_space<vmem>>, vector<16x128xbf16>
    %cst_119 = arith.constant dense<0.000000e+00> : vector<8x128xf32>
    %242 = tpu.matmul %240, %241, %cst_119 {dimension_numbers = #tpu.dot_dimension_numbers<[1], [0], [0], [1], [0, 0, 1, 1], [], []>} : vector<8x16xbf16>, vector<16x128xbf16>, vector<8x128xf32> -> vector<8x128xf32>
    %243 = arith.addf %238, %242 : vector<8x128xf32>
    %244 = vector.extract_strided_slice %70 {offsets = [272, 0], sizes = [8, 16], strides = [1, 1]} : vector<288x128xf32> to vector<8x16xf32>
    %245 = arith.truncf %244 : vector<8x16xf32> to vector<8x16xbf16>
    %c544 = arith.constant 544 : index
    %c0_120 = arith.constant 0 : index
    %246 = vector.load %arg8[%c544, %c0_120] : memref<576x128xbf16, #tpu.memory_space<vmem>>, vector<16x128xbf16>
    %cst_121 = arith.constant dense<0.000000e+00> : vector<8x128xf32>
    %247 = tpu.matmul %245, %246, %cst_121 {dimension_numbers = #tpu.dot_dimension_numbers<[1], [0], [0], [1], [0, 0, 1, 1], [], []>} : vector<8x16xbf16>, vector<16x128xbf16>, vector<8x128xf32> -> vector<8x128xf32>
    %248 = arith.addf %243, %247 : vector<8x128xf32>
    %249 = vector.extract_strided_slice %70 {offsets = [280, 0], sizes = [8, 16], strides = [1, 1]} : vector<288x128xf32> to vector<8x16xf32>
    %250 = arith.truncf %249 : vector<8x16xf32> to vector<8x16xbf16>
    %c560 = arith.constant 560 : index
    %c0_122 = arith.constant 0 : index
    %251 = vector.load %arg8[%c560, %c0_122] : memref<576x128xbf16, #tpu.memory_space<vmem>>, vector<16x128xbf16>
    %cst_123 = arith.constant dense<0.000000e+00> : vector<8x128xf32>
    %252 = tpu.matmul %250, %251, %cst_123 {dimension_numbers = #tpu.dot_dimension_numbers<[1], [0], [0], [1], [0, 0, 1, 1], [], []>} : vector<8x16xbf16>, vector<16x128xbf16>, vector<8x128xf32> -> vector<8x128xf32>
    %253 = arith.addf %248, %252 : vector<8x128xf32>
    %c0_124 = arith.constant 0 : index
    %c0_125 = arith.constant 0 : index
    %254 = vector.load %arg10[%c0_124, %c0_125] : memref<1x128xf32, #tpu.memory_space<vmem>>, vector<1x128xf32>
    %255 = vector.broadcast %254 : vector<1x128xf32> to vector<8x128xf32>
    %256 = arith.addf %253, %255 : vector<8x128xf32>
    %cst_126 = arith.constant 0.000000e+00 : f32
    %257 = vector.broadcast %cst_126 : f32 to vector<8x128xf32>
    %258 = arith.maximumf %256, %257 : vector<8x128xf32>
    %259 = arith.truncf %258 : vector<8x128xf32> to vector<8x128xbf16>
    %c0_127 = arith.constant 0 : index
    %c0_128 = arith.constant 0 : index
    %260 = vector.load %arg11[%c0_127, %c0_128] : memref<128x128xbf16, #tpu.memory_space<vmem>>, vector<128x128xbf16>
    %cst_129 = arith.constant dense<0.000000e+00> : vector<8x128xf32>
    %261 = tpu.matmul %259, %260, %cst_129 {dimension_numbers = #tpu.dot_dimension_numbers<[1], [0], [0], [1], [0, 0, 1, 1], [], []>} : vector<8x128xbf16>, vector<128x128xbf16>, vector<8x128xf32> -> vector<8x128xf32>
    %c0_130 = arith.constant 0 : index
    %c0_131 = arith.constant 0 : index
    %262 = vector.load %arg12[%c0_130, %c0_131] : memref<1x128xf32, #tpu.memory_space<vmem>>, vector<1x128xf32>
    %263 = vector.broadcast %262 : vector<1x128xf32> to vector<8x128xf32>
    %264 = arith.addf %261, %263 : vector<8x128xf32>
    %265 = tpu.iota {dimensions = array<i32: 0>} : vector<8x128xi32>
    %266 = tpu.iota {dimensions = array<i32: 1>} : vector<8x128xi32>
    %c2_i32 = arith.constant 2 : i32
    %267 = vector.broadcast %c2_i32 : i32 to vector<8x128xi32>
    %268 = arith.cmpi slt, %265, %267 : vector<8x128xi32>
    %c5_i32 = arith.constant 5 : i32
    %269 = vector.broadcast %c5_i32 : i32 to vector<8x128xi32>
    %270 = arith.cmpi slt, %266, %269 : vector<8x128xi32>
    %271 = arith.andi %268, %270 : vector<8x128xi1>
    %cst_132 = arith.constant 0.000000e+00 : f32
    %272 = vector.broadcast %cst_132 : f32 to vector<8x128xf32>
    %273 = arith.select %271, %264, %272 : vector<8x128xi1>, vector<8x128xf32>
    %274 = vector.shape_cast %273 : vector<8x128xf32> to vector<1x8x128xf32>
    %cst_133 = arith.constant dense<0.000000e+00> : vector<1xf32>
    %275 = vector.multi_reduction <add>, %274, %cst_133 [1, 2] : vector<1x8x128xf32> to vector<1xf32>
    %276 = vector.shape_cast %275 : vector<1xf32> to vector<1x1x1xf32>
    %277 = vector.extract %276[0, 0, 0] : f32 from vector<1x1x1xf32>
    %cst_134 = arith.constant 1.000000e-01 : f32
    %278 = arith.mulf %277, %cst_134 : f32
    %279 = vector.extract_strided_slice %264 {offsets = [0, 5], sizes = [8, 1], strides = [1, 1]} : vector<8x128xf32> to vector<8x1xf32>
    %280 = vector.broadcast %279 : vector<8x1xf32> to vector<8x128xf32>
    %281 = arith.addf %264, %280 : vector<8x128xf32>
    %282 = vector.broadcast %278 : f32 to vector<8x128xf32>
    %283 = arith.subf %281, %282 : vector<8x128xf32>
    %c0_135 = arith.constant 0 : index
    %c0_136 = arith.constant 0 : index
    %284 = vector.load %arg13[%c0_135, %c0_136] : memref<8x128xf32, #tpu.memory_space<vmem>>, vector<8x128xf32>
    tpu.vector_store %arg13[%c0_135, %c0_136], %283 {strides = array<i32>} : memref<8x128xf32, #tpu.memory_space<vmem>>, vector<8x128xf32>,
    return
  }
}

</mosaic_0001>

<llo_original>
// kernel: forward.1
$region0: #{forward.1}
  #allocation0 [shape = 'u32[]', space=smem, size = 0x4, offset = 0x4, fixed_abs, tag = 'smem constant byte address 0x4 - core index']
  #allocation1 [shape = 'u32[144,128]{1,0:T(1,128)}', space=vmem, size = 0x12000, scoped, tag = 'internal scratch']
  %s0 = inlined_call_operand.vmem [shape: bf16[248,128], index: 0, kind: input, shape index: {}]
  %s1 = inlined_call_operand.vmem [shape: bf16[8,8], index: 1, kind: input, shape index: {}]
  %s2 = inlined_call_operand.vmem [shape: bf16[128,128], index: 2, kind: input, shape index: {}]
  %s3 = inlined_call_operand.vmem [shape: f32[2,128], index: 3, kind: input, shape index: {}]
  %s4 = inlined_call_operand.vmem [shape: bf16[648,248], index: 4, kind: input, shape index: {}]
  %s5 = inlined_call_operand.vmem [shape: bf16[144,128], index: 5, kind: input, shape index: {}]
  %s6 = inlined_call_operand.vmem [shape: f32[2,128], index: 6, kind: input, shape index: {}]
  %s7 = inlined_call_operand.vmem [shape: bf16[288,72], index: 7, kind: input, shape index: {}]
  %s8 = inlined_call_operand.vmem [shape: bf16[576,128], index: 8, kind: input, shape index: {}]
  %s9 = inlined_call_operand.vmem [shape: bf16[8,128], index: 9, kind: input, shape index: {}]
  %s10 = inlined_call_operand.vmem [shape: f32[1,128], index: 10, kind: input, shape index: {}]
  %s11 = inlined_call_operand.vmem [shape: bf16[128,128], index: 11, kind: input, shape index: {}]
  %s12 = inlined_call_operand.vmem [shape: f32[1,128], index: 12, kind: input, shape index: {}]
  %s13 = inlined_call_operand.vmem [shape: f32[8,128], index: 13, kind: output, shape index: {}]
  %s14 = sld [smem:[#allocation0]]
  $region62: #{forward.1} parent=0
    _
  %s16 = ssub.s32 1, %s14
  %s17 = scalar_select 0, %s16, %s14
  // Predicated region
  $region2: #{forward.1} parent=0 // pred_check
    _
  $region3: #{forward.1} parent=0 // pred_check_branch
    %19 = sbr.rel (0) target = $region5
  $region4: #{forward.1} parent=0 // pred_region
    _
  $region5: #{forward.1} parent=0 // pred_fallthru
    _
  // Predicated region
  $region6: #{forward.1} parent=0 // pred_check
    _
  $region7: #{forward.1} parent=0 // pred_check_branch
    %21 = sbr.rel (0) target = $region9
  $region8: #{forward.1} parent=0 // pred_region
    _
  $region9: #{forward.1} parent=0 // pred_fallthru
    _
  // Predicated region
  $region10: #{forward.1} parent=0 // pred_check
    _
  $region11: #{forward.1} parent=0 // pred_check_branch
    %23 = sbr.rel (0) target = $region13
  $region12: #{forward.1} parent=0 // pred_region
    _
  $region13: #{forward.1} parent=0 // pred_fallthru
    _
  // Predicated region
  $region14: #{forward.1} parent=0 // pred_check
    _
  $region15: #{forward.1} parent=0 // pred_check_branch
    %25 = sbr.rel (0) target = $region17
  $region16: #{forward.1} parent=0 // pred_region
    _
  $region17: #{forward.1} parent=0 // pred_fallthru
    _
  // Predicated region
  $region18: #{forward.1} parent=0 // pred_check
    _
  $region19: #{forward.1} parent=0 // pred_check_branch
    %27 = sbr.rel (0) target = $region21
  $region20: #{forward.1} parent=0 // pred_region
    _
  $region21: #{forward.1} parent=0 // pred_fallthru
    _
  // Predicated region
  $region22: #{forward.1} parent=0 // pred_check
    _
  $region23: #{forward.1} parent=0 // pred_check_branch
    %29 = sbr.rel (0) target = $region25
  $region24: #{forward.1} parent=0 // pred_region
    _
  $region25: #{forward.1} parent=0 // pred_fallthru
    _
  // Predicated region
  $region26: #{forward.1} parent=0 // pred_check
    _
  $region27: #{forward.1} parent=0 // pred_check_branch
    %31 = sbr.rel (0) target = $region29
  $region28: #{forward.1} parent=0 // pred_region
    _
  $region29: #{forward.1} parent=0 // pred_fallthru
    _
  // Predicated region
  $region30: #{forward.1} parent=0 // pred_check
    _
  $region31: #{forward.1} parent=0 // pred_check_branch
    %33 = sbr.rel (0) target = $region33
  $region32: #{forward.1} parent=0 // pred_region
    _
  $region33: #{forward.1} parent=0 // pred_fallthru
    _
  // Predicated region
  $region34: #{forward.1} parent=0 // pred_check
    _
  $region35: #{forward.1} parent=0 // pred_check_branch
    %35 = sbr.rel (0) target = $region37
  $region36: #{forward.1} parent=0 // pred_region
    _
  $region37: #{forward.1} parent=0 // pred_fallthru
    _
  // Predicated region
  $region38: #{forward.1} parent=0 // pred_check
    _
  $region39: #{forward.1} parent=0 // pred_check_branch
    %37 = sbr.rel (0) target = $region41
  $region40: #{forward.1} parent=0 // pred_region
    _
  $region41: #{forward.1} parent=0 // pred_fallthru
    _
  // Predicated region
  $region42: #{forward.1} parent=0 // pred_check
    _
  $region43: #{forward.1} parent=0 // pred_check_branch
    %39 = sbr.rel (0) target = $region45
  $region44: #{forward.1} parent=0 // pred_region
    _
  $region45: #{forward.1} parent=0 // pred_fallthru
    _
  // Predicated region
  $region46: #{forward.1} parent=0 // pred_check
    _
  $region47: #{forward.1} parent=0 // pred_check_branch
    %41 = sbr.rel (0) target = $region49
  $region48: #{forward.1} parent=0 // pred_region
    _
  $region49: #{forward.1} parent=0 // pred_fallthru
    _
  // Predicated region
  $region50: #{forward.1} parent=0 // pred_check
    _
  $region51: #{forward.1} parent=0 // pred_check_branch
    %43 = sbr.rel (0) target = $region53
  $region52: #{forward.1} parent=0 // pred_region
    _
  $region53: #{forward.1} parent=0 // pred_fallthru
    _
  %v45 = vld [vmem:[%s0] sm:$0xf]
  %v46 = vld [vmem:[%s0 + $0x4] sm:$0xf]
  %v47 = vld [vmem:[%s0 + $0x8] sm:$0xf]
  %v48 = vld [vmem:[%s0 + $0xc] sm:$0xf]
  %v49 = vld [vmem:[%s0 + $0x10] sm:$0xf]
  %v50 = vld [vmem:[%s0 + $0x14] sm:$0xf]
  %v51 = vld [vmem:[%s0 + $0x18] sm:$0xf]
  %v52 = vld [vmem:[%s0 + $0x1c] sm:$0xf]
  %v53 = vld [vmem:[%s0 + $0x20] sm:$0xf]
  %v54 = vld [vmem:[%s0 + $0x24] sm:$0xf]
  %v55 = vld [vmem:[%s0 + $0x28] sm:$0xf]
  %v56 = vld [vmem:[%s0 + $0x2c] sm:$0xf]
  %v57 = vld [vmem:[%s0 + $0x30] sm:$0xf]
  %v58 = vld [vmem:[%s0 + $0x34] sm:$0xf]
  %v59 = vld [vmem:[%s0 + $0x38] sm:$0xf]
  %v60 = vld [vmem:[%s0 + $0x3c] sm:$0xf]
  %v61 = vld [vmem:[%s0 + $0x40] sm:$0xf]
  %v62 = vld [vmem:[%s0 + $0x44] sm:$0xf]
  %v63 = vld [vmem:[%s0 + $0x48] sm:$0xf]
  %v64 = vld [vmem:[%s0 + $0x4c] sm:$0xf]
  %v65 = vld [vmem:[%s0 + $0x50] sm:$0xf]
  %v66 = vld [vmem:[%s0 + $0x54] sm:$0xf]
  %v67 = vld [vmem:[%s0 + $0x58] sm:$0xf]
  %v68 = vld [vmem:[%s0 + $0x5c] sm:$0xf]
  %v69 = vld [vmem:[%s0 + $0x60] sm:$0xf]
  %v70 = vld [vmem:[%s0 + $0x64] sm:$0xf]
  %v71 = vld [vmem:[%s0 + $0x68] sm:$0xf]
  %v72 = vld [vmem:[%s0 + $0x6c] sm:$0xf]
  %v73 = vld [vmem:[%s0 + $0x70] sm:$0xf]
  %v74 = vld [vmem:[%s0 + $0x74] sm:$0xf]
  %v75 = vld [vmem:[%s0 + $0x78] sm:$0xf]
  %v76 = vld [vmem:[%s2] sm:$0xf]
  %v77 = vld [vmem:[%s2 + $0x4] sm:$0xf]
  %v78 = vld [vmem:[%s2 + $0x8] sm:$0xf]
  %v79 = vld [vmem:[%s2 + $0xc] sm:$0xf]
  %v80 = vld [vmem:[%s2 + $0x10] sm:$0xf]
  %v81 = vld [vmem:[%s2 + $0x14] sm:$0xf]
  %v82 = vld [vmem:[%s2 + $0x18] sm:$0xf]
  %v83 = vld [vmem:[%s2 + $0x1c] sm:$0xf]
  %v84 = vld [vmem:[%s2 + $0x20] sm:$0xf]
  %v85 = vld [vmem:[%s2 + $0x24] sm:$0xf]
  %v86 = vld [vmem:[%s2 + $0x28] sm:$0xf]
  %v87 = vld [vmem:[%s2 + $0x2c] sm:$0xf]
  %v88 = vld [vmem:[%s2 + $0x30] sm:$0xf]
  %v89 = vld [vmem:[%s2 + $0x34] sm:$0xf]
  %v90 = vld [vmem:[%s2 + $0x38] sm:$0xf]
  %v91 = vld [vmem:[%s2 + $0x3c] sm:$0xf]
  %v123 = vunpack.c.l.b16 %v45
  %v124 = vunpack.c.l.b16 %v46
  %v125 = vunpack.c.l.b16 %v47
  %v126 = vunpack.c.l.b16 %v48
  %v127 = vunpack.c.l.b16 %v49
  %v128 = vunpack.c.l.b16 %v50
  %v129 = vunpack.c.l.b16 %v51
  %v130 = vunpack.c.l.b16 %v52
  %v131 = vunpack.c.l.b16 %v53
  %v132 = vunpack.c.l.b16 %v54
  %v133 = vunpack.c.l.b16 %v55
  %v134 = vunpack.c.l.b16 %v56
  %v135 = vunpack.c.l.b16 %v57
  %v136 = vunpack.c.l.b16 %v58
  %v137 = vunpack.c.l.b16 %v59
  %v138 = vunpack.c.l.b16 %v60
  %v139 = vunpack.c.l.b16 %v61
  %v140 = vunpack.c.l.b16 %v62
  %v141 = vunpack.c.l.b16 %v63
  %v142 = vunpack.c.l.b16 %v64
  %v143 = vunpack.c.l.b16 %v65
  %v144 = vunpack.c.l.b16 %v66
  %v145 = vunpack.c.l.b16 %v67
  %v146 = vunpack.c.l.b16 %v68
  %v147 = vunpack.c.l.b16 %v69
  %v148 = vunpack.c.l.b16 %v70
  %v149 = vunpack.c.l.b16 %v71
  %v150 = vunpack.c.l.b16 %v72
  %v151 = vunpack.c.l.b16 %v73
  %v152 = vunpack.c.l.b16 %v74
  %v153 = vunpack.c.l.b16 %v75
  %v154 = vpack.c.b16 %v124, %v123
  %v155 = vpack.c.b16 %v126, %v125
  %v156 = vpack.c.b16 %v128, %v127
  %v157 = vpack.c.b16 %v130, %v129
  %v158 = vpack.c.b16 %v132, %v131
  %v159 = vpack.c.b16 %v134, %v133
  %v160 = vpack.c.b16 %v136, %v135
  %v161 = vpack.c.b16 %v138, %v137
  %v162 = vpack.c.b16 %v140, %v139
  %v163 = vpack.c.b16 %v142, %v141
  %v164 = vpack.c.b16 %v144, %v143
  %v165 = vpack.c.b16 %v146, %v145
  %v166 = vpack.c.b16 %v148, %v147
  %v167 = vpack.c.b16 %v150, %v149
  %v168 = vpack.c.b16 %v152, %v151
  %v169 = vpack.c.b16 %v153, %v153
  %v202 = vunpack.c.l.b16 %v76
  %v203 = vunpack.c.l.b16 %v77
  %v204 = vunpack.c.l.b16 %v78
  %v205 = vunpack.c.l.b16 %v79
  %v206 = vunpack.c.l.b16 %v80
  %v207 = vunpack.c.l.b16 %v81
  %v208 = vunpack.c.l.b16 %v82
  %v209 = vunpack.c.l.b16 %v83
  %v210 = vunpack.c.l.b16 %v84
  %v211 = vunpack.c.l.b16 %v85
  %v212 = vunpack.c.l.b16 %v86
  %v213 = vunpack.c.l.b16 %v87
  %v214 = vunpack.c.l.b16 %v88
  %v215 = vunpack.c.l.b16 %v89
  %v216 = vunpack.c.l.b16 %v90
  %v217 = vunpack.c.l.b16 %v91
  %v218 = vpack.c.b16 %v203, %v202
  %v219 = vpack.c.b16 %v205, %v204
  %v220 = vpack.c.b16 %v207, %v206
  %v221 = vpack.c.b16 %v209, %v208
  %v222 = vpack.c.b16 %v211, %v210
  %v223 = vpack.c.b16 %v213, %v212
  %v224 = vpack.c.b16 %v215, %v214
  %v225 = vpack.c.b16 %v217, %v216
  %234 = vmatprep.subr.bf16.mxu0 0
  %235 = vmatpush1.bf16.msra.mxu0 %v218
  %236 = vmatprep.subr.bf16.mxu0 0
  %237 = vmatpush1.bf16.msra.mxu0 %v219
  %238 = vmatprep.subr.bf16.mxu0 0
  %239 = vmatpush1.bf16.msra.mxu0 %v220
  %240 = vmatprep.subr.bf16.mxu0 0
  %241 = vmatpush1.bf16.msra.mxu0 %v221
  %242 = vmatprep.subr.bf16.mxu0 0
  %243 = vmatpush1.bf16.msra.mxu0 %v222
  %244 = vmatprep.subr.bf16.mxu0 0
  %245 = vmatpush1.bf16.msra.mxu0 %v223
  %246 = vmatprep.subr.bf16.mxu0 0
  %247 = vmatpush1.bf16.msra.mxu0 %v224
  %248 = vmatprep.subr.bf16.mxu0 0
  %249 = vmatpush1.bf16.msra.mxu0 %v225
  %250 = vmatprep.subr.bf16.mxu0 0
  %251 = vmatpush1.bf16.msra.mxu0 0
  %252 = vmatprep.subr.bf16.mxu0 0
  %253 = vmatpush1.bf16.msra.mxu0 0
  %254 = vmatprep.subr.bf16.mxu0 0
  %255 = vmatpush1.bf16.msra.mxu0 0
  %256 = vmatprep.subr.bf16.mxu0 0
  %257 = vmatpush1.bf16.msra.mxu0 0
  %258 = vmatprep.subr.bf16.mxu0 0
  %259 = vmatpush1.bf16.msra.mxu0 0
  %260 = vmatprep.subr.bf16.mxu0 0
  %261 = vmatpush1.bf16.msra.mxu0 0
  %262 = vmatprep.subr.bf16.mxu0 0
  %263 = vmatpush1.bf16.msra.mxu0 0
  %264 = vmatprep.subr.bf16.mxu0 0
  %265 = vmatpush1.bf16.msra.mxu0 0
  %266 = vmatprep.mubr.bf16.mxu0 0
  %267 = vmatmul.mubr.bf16.gmra.mrb[0].mxu0 %v154
  %v268 = vpop.f32.mrb[0].mxu0
  %v269 = vadd.f32 0.0, %v268
  %v270 = vpop.f32.mrb[0].mxu0
  %v271 = vpop.f32.mrb[0].mxu0
  %v272 = vadd.f32 0.0, %v271
  %v273 = vpop.f32.mrb[0].mxu0
  %274 = vmatprep.mubr.bf16.mxu0 0
  %275 = vmatmul.mubr.bf16.gmra.mrb[0].mxu0 %v155
  %v276 = vpop.f32.mrb[0].mxu0
  %v277 = vadd.f32 0.0, %v276
  %v278 = vpop.f32.mrb[0].mxu0
  %v279 = vpop.f32.mrb[0].mxu0
  %v280 = vadd.f32 0.0, %v279
  %v281 = vpop.f32.mrb[0].mxu0
  %282 = vmatprep.mubr.bf16.mxu0 0
  %283 = vmatmul.mubr.bf16.gmra.mrb[0].mxu0 %v156
  %v284 = vpop.f32.mrb[0].mxu0
  %v285 = vadd.f32 0.0, %v284
  %v286 = vpop.f32.mrb[0].mxu0
  %v287 = vpop.f32.mrb[0].mxu0
  %v288 = vadd.f32 0.0, %v287
  %v289 = vpop.f32.mrb[0].mxu0
  %290 = vmatprep.mubr.bf16.mxu0 0
  %291 = vmatmul.mubr.bf16.gmra.mrb[0].mxu0 %v157
  %v292 = vpop.f32.mrb[0].mxu0
  %v293 = vadd.f32 0.0, %v292
  %v294 = vpop.f32.mrb[0].mxu0
  %v295 = vpop.f32.mrb[0].mxu0
  %v296 = vadd.f32 0.0, %v295
  %v297 = vpop.f32.mrb[0].mxu0
  %298 = vmatprep.mubr.bf16.mxu0 0
  %299 = vmatmul.mubr.bf16.gmra.mrb[0].mxu0 %v158
  %v300 = vpop.f32.mrb[0].mxu0
  %v301 = vadd.f32 0.0, %v300
  %v302 = vpop.f32.mrb[0].mxu0
  %v303 = vpop.f32.mrb[0].mxu0
  %v304 = vadd.f32 0.0, %v303
  %v305 = vpop.f32.mrb[0].mxu0
  %306 = vmatprep.mubr.bf16.mxu0 0
  %307 = vmatmul.mubr.bf16.gmra.mrb[0].mxu0 %v159
  %v308 = vpop.f32.mrb[0].mxu0
  %v309 = vadd.f32 0.0, %v308
  %v310 = vpop.f32.mrb[0].mxu0
  %v311 = vpop.f32.mrb[0].mxu0
  %v312 = vadd.f32 0.0, %v311
  %v313 = vpop.f32.mrb[0].mxu0
  %314 = vmatprep.mubr.bf16.mxu0 0
  %315 = vmatmul.mubr.bf16.gmra.mrb[0].mxu0 %v160
  %v316 = vpop.f32.mrb[0].mxu0
  %v317 = vadd.f32 0.0, %v316
  %v318 = vpop.f32.mrb[0].mxu0
  %v319 = vpop.f32.mrb[0].mxu0
  %v320 = vadd.f32 0.0, %v319
  %v321 = vpop.f32.mrb[0].mxu0
  %322 = vmatprep.mubr.bf16.mxu0 0
  %323 = vmatmul.mubr.bf16.gmra.mrb[0].mxu0 %v161
  %v324 = vpop.f32.mrb[0].mxu0
  %v325 = vadd.f32 0.0, %v324
  %v326 = vpop.f32.mrb[0].mxu0
  %v327 = vpop.f32.mrb[0].mxu0
  %v328 = vadd.f32 0.0, %v327
  %v329 = vpop.f32.mrb[0].mxu0
  %330 = vmatprep.mubr.bf16.mxu0 0
  %331 = vmatmul.mubr.bf16.gmra.mrb[0].mxu0 %v162
  %v332 = vpop.f32.mrb[0].mxu0
  %v333 = vadd.f32 0.0, %v332
  %v334 = vpop.f32.mrb[0].mxu0
  %v335 = vpop.f32.mrb[0].mxu0
  %v336 = vadd.f32 0.0, %v335
  %v337 = vpop.f32.mrb[0].mxu0
  %338 = vmatprep.mubr.bf16.mxu0 0
  %339 = vmatmul.mubr.bf16.gmra.mrb[0].mxu0 %v163
  %v340 = vpop.f32.mrb[0].mxu0
  %v341 = vadd.f32 0.0, %v340
  %v342 = vpop.f32.mrb[0].mxu0
  %v343 = vpop.f32.mrb[0].mxu0
  %v344 = vadd.f32 0.0, %v343
  %v345 = vpop.f32.mrb[0].mxu0
  %346 = vmatprep.mubr.bf16.mxu0 0
  %347 = vmatmul.mubr.bf16.gmra.mrb[0].mxu0 %v164
  %v348 = vpop.f32.mrb[0].mxu0
  %v349 = vadd.f32 0.0, %v348
  %v350 = vpop.f32.mrb[0].mxu0
  %v351 = vpop.f32.mrb[0].mxu0
  %v352 = vadd.f32 0.0, %v351
  %v353 = vpop.f32.mrb[0].mxu0
  %354 = vmatprep.mubr.bf16.mxu0 0
  %355 = vmatmul.mubr.bf16.gmra.mrb[0].mxu0 %v165
  %v356 = vpop.f32.mrb[0].mxu0
  %v357 = vadd.f32 0.0, %v356
  %v358 = vpop.f32.mrb[0].mxu0
  %v359 = vpop.f32.mrb[0].mxu0
  %v360 = vadd.f32 0.0, %v359
  %v361 = vpop.f32.mrb[0].mxu0
  %362 = vmatprep.mubr.bf16.mxu0 0
  %363 = vmatmul.mubr.bf16.gmra.mrb[0].mxu0 %v166
  %v364 = vpop.f32.mrb[0].mxu0
  %v365 = vadd.f32 0.0, %v364
  %v366 = vpop.f32.mrb[0].mxu0
  %v367 = vpop.f32.mrb[0].mxu0
  %v368 = vadd.f32 0.0, %v367
  %v369 = vpop.f32.mrb[0].mxu0
  %370 = vmatprep.mubr.bf16.mxu0 0
  %371 = vmatmul.mubr.bf16.gmra.mrb[0].mxu0 %v167
  %v372 = vpop.f32.mrb[0].mxu0
  %v373 = vadd.f32 0.0, %v372
  %v374 = vpop.f32.mrb[0].mxu0
  %v375 = vpop.f32.mrb[0].mxu0
  %v376 = vadd.f32 0.0, %v375
  %v377 = vpop.f32.mrb[0].mxu0
  %378 = vmatprep.mubr.bf16.mxu0 0
  %379 = vmatmul.mubr.bf16.gmra.mrb[0].mxu0 %v168
  %v380 = vpop.f32.mrb[0].mxu0
  %v381 = vadd.f32 0.0, %v380
  %v382 = vpop.f32.mrb[0].mxu0
  %v383 = vpop.f32.mrb[0].mxu0
  %v384 = vadd.f32 0.0, %v383
  %v385 = vpop.f32.mrb[0].mxu0
  %386 = vmatprep.mubr.bf16.mxu0 0
  %387 = vmatmul.mubr.bf16.gmra.mrb[0].mxu0 %v169
  %v388 = vpop.f32.mrb[0].mxu0
  %v389 = vadd.f32 0.0, %v388
  %v390 = vpop.f32.mrb[0].mxu0
  %v391 = vpop.f32.mrb[0].mxu0
  %v392 = vpop.f32.mrb[0].mxu0
  %393 = vdwg.mxu0
  %v394 = vld [vmem:[%s3] sm:$0x1]
  %v395 = vlaneseq
  %v396 = vshrl.u32 %v395, 7
  %v397 = vsub.s32 0, %v396
  %v398 = vrot.slane %v394, %v397
  %v399 = vmul.f32 %v269, %v398
  %v400 = vmul.f32 %v272, %v398
  %v401 = vmul.f32 %v277, %v398
  %v402 = vmul.f32 %v280, %v398
  %v403 = vmul.f32 %v285, %v398
  %v404 = vmul.f32 %v288, %v398
  %v405 = vmul.f32 %v293, %v398
  %v406 = vmul.f32 %v296, %v398
  %v407 = vmul.f32 %v301, %v398
  %v408 = vmul.f32 %v304, %v398
  %v409 = vmul.f32 %v309, %v398
  %v410 = vmul.f32 %v312, %v398
  %v411 = vmul.f32 %v317, %v398
  %v412 = vmul.f32 %v320, %v398
  %v413 = vmul.f32 %v325, %v398
  %v414 = vmul.f32 %v328, %v398
  %v415 = vmul.f32 %v333, %v398
  %v416 = vmul.f32 %v336, %v398
  %v417 = vmul.f32 %v341, %v398
  %v418 = vmul.f32 %v344, %v398
  %v419 = vmul.f32 %v349, %v398
  %v420 = vmul.f32 %v352, %v398
  %v421 = vmul.f32 %v357, %v398
  %v422 = vmul.f32 %v360, %v398
  %v423 = vmul.f32 %v365, %v398
  %v424 = vmul.f32 %v368, %v398
  %v425 = vmul.f32 %v373, %v398
  %v426 = vmul.f32 %v376, %v398
  %v427 = vmul.f32 %v381, %v398
  %v428 = vmul.f32 %v384, %v398
  %v429 = vmul.f32 %v389, %v398
  %v430 = vld [vmem:[%s3 + $0x1] sm:$0x1]
  %v431 = vlaneseq
  %v432 = vshrl.u32 %v431, 7
  %v433 = vsub.s32 0, %v432
  %v434 = vrot.slane %v430, %v433
  %v435 = vadd.f32 %v399, %v434
  %v436 = vadd.f32 %v400, %v434
  %v437 = vadd.f32 %v401, %v434
  %v438 = vadd.f32 %v402, %v434
  %v439 = vadd.f32 %v403, %v434
  %v440 = vadd.f32 %v404, %v434
  %v441 = vadd.f32 %v405, %v434
  %v442 = vadd.f32 %v406, %v434
  %v443 = vadd.f32 %v407, %v434
  %v444 = vadd.f32 %v408, %v434
  %v445 = vadd.f32 %v409, %v434
  %v446 = vadd.f32 %v410, %v434
  %v447 = vadd.f32 %v411, %v434
  %v448 = vadd.f32 %v412, %v434
  %v449 = vadd.f32 %v413, %v434
  %v450 = vadd.f32 %v414, %v434
  %v451 = vadd.f32 %v415, %v434
  %v452 = vadd.f32 %v416, %v434
  %v453 = vadd.f32 %v417, %v434
  %v454 = vadd.f32 %v418, %v434
  %v455 = vadd.f32 %v419, %v434
  %v456 = vadd.f32 %v420, %v434
  %v457 = vadd.f32 %v421, %v434
  %v458 = vadd.f32 %v422, %v434
  %v459 = vadd.f32 %v423, %v434
  %v460 = vadd.f32 %v424, %v434
  %v461 = vadd.f32 %v425, %v434
  %v462 = vadd.f32 %v426, %v434
  %v463 = vadd.f32 %v427, %v434
  %v464 = vadd.f32 %v428, %v434
  %v465 = vadd.f32 %v429, %v434
  %v466 = vmax.f32 %v435, 0.0
  %v467 = vmax.f32 %v436, 0.0
  %v468 = vmax.f32 %v437, 0.0
  %v469 = vmax.f32 %v438, 0.0
  %v470 = vmax.f32 %v439, 0.0
  %v471 = vmax.f32 %v440, 0.0
  %v472 = vmax.f32 %v441, 0.0
  %v473 = vmax.f32 %v442, 0.0
  %v474 = vmax.f32 %v443, 0.0
  %v475 = vmax.f32 %v444, 0.0
  %v476 = vmax.f32 %v445, 0.0
  %v477 = vmax.f32 %v446, 0.0
  %v478 = vmax.f32 %v447, 0.0
  %v479 = vmax.f32 %v448, 0.0
  %v480 = vmax.f32 %v449, 0.0
  %v481 = vmax.f32 %v450, 0.0
  %v482 = vmax.f32 %v451, 0.0
  %v483 = vmax.f32 %v452, 0.0
  %v484 = vmax.f32 %v453, 0.0
  %v485 = vmax.f32 %v454, 0.0
  %v486 = vmax.f32 %v455, 0.0
  %v487 = vmax.f32 %v456, 0.0
  %v488 = vmax.f32 %v457, 0.0
  %v489 = vmax.f32 %v458, 0.0
  %v490 = vmax.f32 %v459, 0.0
  %v491 = vmax.f32 %v460, 0.0
  %v492 = vmax.f32 %v461, 0.0
  %v493 = vmax.f32 %v462, 0.0
  %v494 = vmax.f32 %v463, 0.0
  %v495 = vmax.f32 %v464, 0.0
  %v496 = vmax.f32 %v465, 0.0
  %v497 = vpack.c.bf16 %v467, %v466
  %v498 = vpack.c.bf16 %v469, %v468
  %v499 = vpack.c.bf16 %v471, %v470
  %v500 = vpack.c.bf16 %v473, %v472
  %v501 = vpack.c.bf16 %v475, %v474
  %v502 = vpack.c.bf16 %v477, %v476
  %v503 = vpack.c.bf16 %v479, %v478
  %v504 = vpack.c.bf16 %v481, %v480
  %v505 = vpack.c.bf16 %v483, %v482
  %v506 = vpack.c.bf16 %v485, %v484
  %v507 = vpack.c.bf16 %v487, %v486
  %v508 = vpack.c.bf16 %v489, %v488
  %v509 = vpack.c.bf16 %v491, %v490
  %v510 = vpack.c.bf16 %v493, %v492
  %v511 = vpack.c.bf16 %v495, %v494
  %v512 = vpack.c.bf16 %v496, %v496
  %v513 = vld [vmem:[%s4] sm:$0xff]
  %v514 = vld [vmem:[%s4 + $0x8] sm:$0xff]
  %v515 = vld [vmem:[%s4 + $0x10] sm:$0xff]
  %v516 = vld [vmem:[%s4 + $0x18] sm:$0xff]
  %v517 = vld [vmem:[%s4 + $0x20] sm:$0xff]
  %v518 = vld [vmem:[%s4 + $0x28] sm:$0xff]
  %v519 = vld [vmem:[%s4 + $0x30] sm:$0xff]
  %v520 = vld [vmem:[%s4 + $0x38] sm:$0xff]
  %v521 = vld [vmem:[%s4 + $0x40] sm:$0xff]
  %v522 = vld [vmem:[%s4 + $0x48] sm:$0xff]
  %v523 = vld [vmem:[%s4 + $0x50] sm:$0xff]
  %v524 = vld [vmem:[%s4 + $0x58] sm:$0xff]
  %v525 = vld [vmem:[%s4 + $0x60] sm:$0xff]
  %v526 = vld [vmem:[%s4 + $0x68] sm:$0xff]
  %v527 = vld [vmem:[%s4 + $0x70] sm:$0xff]
  %v528 = vld [vmem:[%s4 + $0x78] sm:$0xff]
  %v529 = vld [vmem:[%s4 + $0x80] sm:$0xff]
  %v530 = vld [vmem:[%s4 + $0x88] sm:$0xff]
  %v531 = vld [vmem:[%s4 + $0x90] sm:$0xff]
  %v532 = vld [vmem:[%s4 + $0x98] sm:$0xff]
  %v533 = vld [vmem:[%s4 + $0xa0] sm:$0xff]
  %v534 = vld [vmem:[%s4 + $0xa8] sm:$0xff]
  %v535 = vld [vmem:[%s4 + $0xb0] sm:$0xff]
  %v536 = vld [vmem:[%s4 + $0xb8] sm:$0xff]
  %v537 = vld [vmem:[%s4 + $0xc0] sm:$0xff]
  %v538 = vld [vmem:[%s4 + $0xc8] sm:$0xff]
  %v539 = vld [vmem:[%s4 + $0xd0] sm:$0xff]
  %v540 = vld [vmem:[%s4 + $0xd8] sm:$0xff]
  %v541 = vld [vmem:[%s4 + $0xe0] sm:$0xff]
  %v542 = vld [vmem:[%s4 + $0xe8] sm:$0xff]
  %v543 = vld [vmem:[%s4 + $0xf0] sm:$0xff]
  %v544 = vld [vmem:[%s4 + $0xf8] sm:$0xff]
  %v545 = vld [vmem:[%s4 + $0x100] sm:$0xff]
  %v546 = vld [vmem:[%s4 + $0x108] sm:$0xff]
  %v547 = vld [vmem:[%s4 + $0x110] sm:$0xff]
  %v548 = vld [vmem:[%s4 + $0x118] sm:$0xff]
  %v549 = vld [vmem:[%s4 + $0x120] sm:$0xff]
  %v550 = vld [vmem:[%s4 + $0x128] sm:$0xff]
  %v551 = vld [vmem:[%s4 + $0x130] sm:$0xff]
  %v552 = vld [vmem:[%s4 + $0x138] sm:$0xff]
  %v553 = vld [vmem:[%s4 + $0x140] sm:$0xff]
  %v554 = vld [vmem:[%s4 + $0x148] sm:$0xff]
  %v555 = vld [vmem:[%s4 + $0x150] sm:$0xff]
  %v556 = vld [vmem:[%s4 + $0x158] sm:$0xff]
  %v557 = vld [vmem:[%s4 + $0x160] sm:$0xff]
  %v558 = vld [vmem:[%s4 + $0x168] sm:$0xff]
  %v559 = vld [vmem:[%s4 + $0x170] sm:$0xff]
  %v560 = vld [vmem:[%s4 + $0x178] sm:$0xff]
  %v561 = vld [vmem:[%s4 + $0x180] sm:$0xff]
  %v562 = vld [vmem:[%s4 + $0x188] sm:$0xff]
  %v563 = vld [vmem:[%s4 + $0x190] sm:$0xff]
  %v564 = vld [vmem:[%s4 + $0x198] sm:$0xff]
  %v565 = vld [vmem:[%s4 + $0x1a0] sm:$0xff]
  %v566 = vld [vmem:[%s4 + $0x1a8] sm:$0xff]
  %v567 = vld [vmem:[%s4 + $0x1b0] sm:$0xff]
  %v568 = vld [vmem:[%s4 + $0x1b8] sm:$0xff]
  %v569 = vld [vmem:[%s4 + $0x1c0] sm:$0xff]
  %v570 = vld [vmem:[%s4 + $0x1c8] sm:$0xff]
  %v571 = vld [vmem:[%s4 + $0x1d0] sm:$0xff]
  %v572 = vld [vmem:[%s4 + $0x1d8] sm:$0xff]
  %v573 = vld [vmem:[%s4 + $0x1e0] sm:$0xff]
  %v574 = vld [vmem:[%s4 + $0x1e8] sm:$0xff]
  %v575 = vld [vmem:[%s4 + $0x1f0] sm:$0xff]
  %v576 = vld [vmem:[%s4 + $0x1f8] sm:$0xff]
  %v577 = vld [vmem:[%s4 + $0x200] sm:$0xff]
  %v578 = vld [vmem:[%s4 + $0x208] sm:$0xff]
  %v579 = vld [vmem:[%s4 + $0x210] sm:$0xff]
  %v580 = vld [vmem:[%s4 + $0x218] sm:$0xff]
  %v581 = vld [vmem:[%s4 + $0x220] sm:$0xff]
  %v582 = vld [vmem:[%s4 + $0x228] sm:$0xff]
  %v583 = vld [vmem:[%s4 + $0x230] sm:$0xff]
  %v584 = vld [vmem:[%s4 + $0x238] sm:$0xff]
  %v585 = vld [vmem:[%s4 + $0x240] sm:$0xff]
  %v586 = vld [vmem:[%s4 + $0x248] sm:$0xff]
  %v587 = vld [vmem:[%s4 + $0x250] sm:$0xff]
  %v588 = vld [vmem:[%s4 + $0x258] sm:$0xff]
  %v589 = vld [vmem:[%s4 + $0x260] sm:$0xff]
  %v590 = vld [vmem:[%s4 + $0x268] sm:$0xff]
  %v591 = vld [vmem:[%s4 + $0x270] sm:$0xff]
  %v592 = vld [vmem:[%s4 + $0x278] sm:$0xff]
  %v593 = vld [vmem:[%s4 + $0x280] sm:$0xff]
  %v675 = vunpack.c.l.b16 %v513
  %v676 = vunpack.c.h.b16 %v513
  %v677 = vunpack.c.l.b16 %v514
  %v678 = vunpack.c.h.b16 %v514
  %v679 = vunpack.c.l.b16 %v515
  %v680 = vunpack.c.h.b16 %v515
  %v681 = vunpack.c.l.b16 %v516
  %v682 = vunpack.c.h.b16 %v516
  %v683 = vunpack.c.l.b16 %v517
  %v684 = vunpack.c.h.b16 %v517
  %v685 = vunpack.c.l.b16 %v518
  %v686 = vunpack.c.h.b16 %v518
  %v687 = vunpack.c.l.b16 %v519
  %v688 = vunpack.c.h.b16 %v519
  %v689 = vunpack.c.l.b16 %v520
  %v690 = vunpack.c.h.b16 %v520
  %v691 = vunpack.c.l.b16 %v521
  %v692 = vunpack.c.h.b16 %v521
  %v693 = vunpack.c.l.b16 %v522
  %v694 = vunpack.c.h.b16 %v522
  %v695 = vunpack.c.l.b16 %v523
  %v696 = vunpack.c.h.b16 %v523
  %v697 = vunpack.c.l.b16 %v524
  %v698 = vunpack.c.h.b16 %v524
  %v699 = vunpack.c.l.b16 %v525
  %v700 = vunpack.c.h.b16 %v525
  %v701 = vunpack.c.l.b16 %v526
  %v702 = vunpack.c.h.b16 %v526
  %v703 = vunpack.c.l.b16 %v527
  %v704 = vunpack.c.h.b16 %v527
  %v705 = vunpack.c.l.b16 %v528
  %v706 = vunpack.c.h.b16 %v528
  %v707 = vunpack.c.l.b16 %v529
  %v708 = vunpack.c.h.b16 %v529
  %v709 = vunpack.c.l.b16 %v530
  %v710 = vunpack.c.h.b16 %v530
  %v711 = vunpack.c.l.b16 %v531
  %v712 = vunpack.c.h.b16 %v531
  %v713 = vunpack.c.l.b16 %v532
  %v714 = vunpack.c.h.b16 %v532
  %v715 = vunpack.c.l.b16 %v533
  %v716 = vunpack.c.h.b16 %v533
  %v717 = vunpack.c.l.b16 %v534
  %v718 = vunpack.c.h.b16 %v534
  %v719 = vunpack.c.l.b16 %v535
  %v720 = vunpack.c.h.b16 %v535
  %v721 = vunpack.c.l.b16 %v536
  %v722 = vunpack.c.h.b16 %v536
  %v723 = vunpack.c.l.b16 %v537
  %v724 = vunpack.c.h.b16 %v537
  %v725 = vunpack.c.l.b16 %v538
  %v726 = vunpack.c.h.b16 %v538
  %v727 = vunpack.c.l.b16 %v539
  %v728 = vunpack.c.h.b16 %v539
  %v729 = vunpack.c.l.b16 %v540
  %v730 = vunpack.c.h.b16 %v540
  %v731 = vunpack.c.l.b16 %v541
  %v732 = vunpack.c.h.b16 %v541
  %v733 = vunpack.c.l.b16 %v542
  %v734 = vunpack.c.h.b16 %v542
  %v735 = vunpack.c.l.b16 %v543
  %v736 = vunpack.c.h.b16 %v543
  %v737 = vunpack.c.l.b16 %v544
  %v738 = vunpack.c.h.b16 %v544
  %v739 = vunpack.c.l.b16 %v545
  %v740 = vunpack.c.h.b16 %v545
  %v741 = vunpack.c.l.b16 %v546
  %v742 = vunpack.c.h.b16 %v546
  %v743 = vunpack.c.l.b16 %v547
  %v744 = vunpack.c.h.b16 %v547
  %v745 = vunpack.c.l.b16 %v548
  %v746 = vunpack.c.h.b16 %v548
  %v747 = vunpack.c.l.b16 %v549
  %v748 = vunpack.c.h.b16 %v549
  %v749 = vunpack.c.l.b16 %v550
  %v750 = vunpack.c.h.b16 %v550
  %v751 = vunpack.c.l.b16 %v551
  %v752 = vunpack.c.h.b16 %v551
  %v753 = vunpack.c.l.b16 %v552
  %v754 = vunpack.c.h.b16 %v552
  %v755 = vunpack.c.l.b16 %v553
  %v756 = vunpack.c.h.b16 %v553
  %v757 = vunpack.c.l.b16 %v554
  %v758 = vunpack.c.h.b16 %v554
  %v759 = vunpack.c.l.b16 %v555
  %v760 = vunpack.c.h.b16 %v555
  %v761 = vunpack.c.l.b16 %v556
  %v762 = vunpack.c.h.b16 %v556
  %v763 = vunpack.c.l.b16 %v557
  %v764 = vunpack.c.h.b16 %v557
  %v765 = vunpack.c.l.b16 %v558
  %v766 = vunpack.c.h.b16 %v558
  %v767 = vunpack.c.l.b16 %v559
  %v768 = vunpack.c.h.b16 %v559
  %v769 = vunpack.c.l.b16 %v560
  %v770 = vunpack.c.h.b16 %v560
  %v771 = vunpack.c.l.b16 %v561
  %v772 = vunpack.c.h.b16 %v561
  %v773 = vunpack.c.l.b16 %v562
  %v774 = vunpack.c.h.b16 %v562
  %v775 = vunpack.c.l.b16 %v563
  %v776 = vunpack.c.h.b16 %v563
  %v777 = vunpack.c.l.b16 %v564
  %v778 = vunpack.c.h.b16 %v564
  %v779 = vunpack.c.l.b16 %v565
  %v780 = vunpack.c.h.b16 %v565
  %v781 = vunpack.c.l.b16 %v566
  %v782 = vunpack.c.h.b16 %v566
  %v783 = vunpack.c.l.b16 %v567
  %v784 = vunpack.c.h.b16 %v567
  %v785 = vunpack.c.l.b16 %v568
  %v786 = vunpack.c.h.b16 %v568
  %v787 = vunpack.c.l.b16 %v569
  %v788 = vunpack.c.h.b16 %v569
  %v789 = vunpack.c.l.b16 %v570
  %v790 = vunpack.c.h.b16 %v570
  %v791 = vunpack.c.l.b16 %v571
  %v792 = vunpack.c.h.b16 %v571
  %v793 = vunpack.c.l.b16 %v572
  %v794 = vunpack.c.h.b16 %v572
  %v795 = vunpack.c.l.b16 %v573
  %v796 = vunpack.c.h.b16 %v573
  %v797 = vunpack.c.l.b16 %v574
  %v798 = vunpack.c.h.b16 %v574
  %v799 = vunpack.c.l.b16 %v575
  %v800 = vunpack.c.h.b16 %v575
  %v801 = vunpack.c.l.b16 %v576
  %v802 = vunpack.c.h.b16 %v576
  %v803 = vunpack.c.l.b16 %v577
  %v804 = vunpack.c.h.b16 %v577
  %v805 = vunpack.c.l.b16 %v578
  %v806 = vunpack.c.h.b16 %v578
  %v807 = vunpack.c.l.b16 %v579
  %v808 = vunpack.c.h.b16 %v579
  %v809 = vunpack.c.l.b16 %v580
  %v810 = vunpack.c.h.b16 %v580
  %v811 = vunpack.c.l.b16 %v581
  %v812 = vunpack.c.h.b16 %v581
  %v813 = vunpack.c.l.b16 %v582
  %v814 = vunpack.c.h.b16 %v582
  %v815 = vunpack.c.l.b16 %v583
  %v816 = vunpack.c.h.b16 %v583
  %v817 = vunpack.c.l.b16 %v584
  %v818 = vunpack.c.h.b16 %v584
  %v819 = vunpack.c.l.b16 %v585
  %v820 = vunpack.c.h.b16 %v585
  %v821 = vunpack.c.l.b16 %v586
  %v822 = vunpack.c.h.b16 %v586
  %v823 = vunpack.c.l.b16 %v587
  %v824 = vunpack.c.h.b16 %v587
  %v825 = vunpack.c.l.b16 %v588
  %v826 = vunpack.c.h.b16 %v588
  %v827 = vunpack.c.l.b16 %v589
  %v828 = vunpack.c.h.b16 %v589
  %v829 = vunpack.c.l.b16 %v590
  %v830 = vunpack.c.h.b16 %v590
  %v831 = vunpack.c.l.b16 %v591
  %v832 = vunpack.c.h.b16 %v591
  %v833 = vunpack.c.l.b16 %v592
  %v834 = vunpack.c.h.b16 %v592
  %v835 = vunpack.c.l.b16 %v593
  %v836 = vunpack.c.h.b16 %v593
  %v837 = vpack.c.b16 %v677, %v675
  %v838 = vpack.c.b16 %v678, %v676
  %v839 = vpack.c.b16 %v681, %v679
  %v840 = vpack.c.b16 %v682, %v680
  %v841 = vpack.c.b16 %v685, %v683
  %v842 = vpack.c.b16 %v686, %v684
  %v843 = vpack.c.b16 %v689, %v687
  %v844 = vpack.c.b16 %v690, %v688
  %v845 = vpack.c.b16 %v693, %v691
  %v846 = vpack.c.b16 %v694, %v692
  %v847 = vpack.c.b16 %v697, %v695
  %v848 = vpack.c.b16 %v698, %v696
  %v849 = vpack.c.b16 %v701, %v699
  %v850 = vpack.c.b16 %v702, %v700
  %v851 = vpack.c.b16 %v705, %v703
  %v852 = vpack.c.b16 %v706, %v704
  %v853 = vpack.c.b16 %v709, %v707
  %v854 = vpack.c.b16 %v710, %v708
  %v855 = vpack.c.b16 %v713, %v711
  %v856 = vpack.c.b16 %v714, %v712
  %v857 = vpack.c.b16 %v717, %v715
  %v858 = vpack.c.b16 %v718, %v716
  %v859 = vpack.c.b16 %v721, %v719
  %v860 = vpack.c.b16 %v722, %v720
  %v861 = vpack.c.b16 %v725, %v723
  %v862 = vpack.c.b16 %v726, %v724
  %v863 = vpack.c.b16 %v729, %v727
  %v864 = vpack.c.b16 %v730, %v728
  %v865 = vpack.c.b16 %v733, %v731
  %v866 = vpack.c.b16 %v734, %v732
  %v867 = vpack.c.b16 %v737, %v735
  %v868 = vpack.c.b16 %v738, %v736
  %v869 = vpack.c.b16 %v741, %v739
  %v870 = vpack.c.b16 %v742, %v740
  %v871 = vpack.c.b16 %v745, %v743
  %v872 = vpack.c.b16 %v746, %v744
  %v873 = vpack.c.b16 %v749, %v747
  %v874 = vpack.c.b16 %v750, %v748
  %v875 = vpack.c.b16 %v753, %v751
  %v876 = vpack.c.b16 %v754, %v752
  %v877 = vpack.c.b16 %v757, %v755
  %v878 = vpack.c.b16 %v758, %v756
  %v879 = vpack.c.b16 %v761, %v759
  %v880 = vpack.c.b16 %v762, %v760
  %v881 = vpack.c.b16 %v765, %v763
  %v882 = vpack.c.b16 %v766, %v764
  %v883 = vpack.c.b16 %v769, %v767
  %v884 = vpack.c.b16 %v770, %v768
  %v885 = vpack.c.b16 %v773, %v771
  %v886 = vpack.c.b16 %v774, %v772
  %v887 = vpack.c.b16 %v777, %v775
  %v888 = vpack.c.b16 %v778, %v776
  %v889 = vpack.c.b16 %v781, %v779
  %v890 = vpack.c.b16 %v782, %v780
  %v891 = vpack.c.b16 %v785, %v783
  %v892 = vpack.c.b16 %v786, %v784
  %v893 = vpack.c.b16 %v789, %v787
  %v894 = vpack.c.b16 %v790, %v788
  %v895 = vpack.c.b16 %v793, %v791
  %v896 = vpack.c.b16 %v794, %v792
  %v897 = vpack.c.b16 %v797, %v795
  %v898 = vpack.c.b16 %v798, %v796
  %v899 = vpack.c.b16 %v801, %v799
  %v900 = vpack.c.b16 %v802, %v800
  %v901 = vpack.c.b16 %v805, %v803
  %v902 = vpack.c.b16 %v806, %v804
  %v903 = vpack.c.b16 %v809, %v807
  %v904 = vpack.c.b16 %v810, %v808
  %v905 = vpack.c.b16 %v813, %v811
  %v906 = vpack.c.b16 %v814, %v812
  %v907 = vpack.c.b16 %v817, %v815
  %v908 = vpack.c.b16 %v818, %v816
  %v909 = vpack.c.b16 %v821, %v819
  %v910 = vpack.c.b16 %v822, %v820
  %v911 = vpack.c.b16 %v825, %v823
  %v912 = vpack.c.b16 %v826, %v824
  %v913 = vpack.c.b16 %v829, %v827
  %v914 = vpack.c.b16 %v830, %v828
  %v915 = vpack.c.b16 %v833, %v831
  %v916 = vpack.c.b16 %v834, %v832
  %v917 = vpack.c.b16 %v835, %v835
  %v918 = vpack.c.b16 %v836, %v836
  %vm960 = vcmask 982016
  %v962 = vsel %vm960, %v838, 0
  %v965 = vsel %vm960, %v840, 0
  %v968 = vsel %vm960, %v842, 0
  %v971 = vsel %vm960, %v844, 0
  %v974 = vsel %vm960, %v846, 0
  %v977 = vsel %vm960, %v848, 0
  %v980 = vsel %vm960, %v850, 0
  %v983 = vsel %vm960, %v852, 0
  %v986 = vsel %vm960, %v854, 0
  %v989 = vsel %vm960, %v856, 0
  %v992 = vsel %vm960, %v858, 0
  %v995 = vsel %vm960, %v860, 0
  %v998 = vsel %vm960, %v862, 0
  %v1001 = vsel %vm960, %v864, 0
  %v1004 = vsel %vm960, %v866, 0
  %v1007 = vsel %vm960, %v868, 0
  %v1010 = vsel %vm960, %v870, 0
  %v1013 = vsel %vm960, %v872, 0
  %v1016 = vsel %vm960, %v874, 0
  %v1019 = vsel %vm960, %v876, 0
  %v1022 = vsel %vm960, %v878, 0
  %v1025 = vsel %vm960, %v880, 0
  %v1028 = vsel %vm960, %v882, 0
  %v1031 = vsel %vm960, %v884, 0
  %v1034 = vsel %vm960, %v886, 0
  %v1037 = vsel %vm960, %v888, 0
  %v1040 = vsel %vm960, %v890, 0
  %v1043 = vsel %vm960, %v892, 0
  %v1046 = vsel %vm960, %v894, 0
  %v1049 = vsel %vm960, %v896, 0
  %v1052 = vsel %vm960, %v898, 0
  %v1055 = vsel %vm960, %v900, 0
  %v1058 = vsel %vm960, %v902, 0
  %v1061 = vsel %vm960, %v904, 0
  %v1064 = vsel %vm960, %v906, 0
  %v1067 = vsel %vm960, %v908, 0
  %v1070 = vsel %vm960, %v910, 0
  %v1073 = vsel %vm960, %v912, 0
  %v1076 = vsel %vm960, %v914, 0
  %v1079 = vsel %vm960, %v916, 0
  %v1082 = vsel %vm960, %v918, 0
  %vm1084 = vcmask 1043456
  %v1086 = vsel %vm1084, %v512, 0
  %1088 = vmatprep.subr.bf16.mxu0 0
  %1089 = vmatpush1.bf16.msra.mxu0 %v497
  %1090 = vmatprep.subr.bf16.mxu0 0
  %1091 = vmatpush1.bf16.msra.mxu0 %v498
  %1092 = vmatprep.subr.bf16.mxu0 0
  %1093 = vmatpush1.bf16.msra.mxu0 %v499
  %1094 = vmatprep.subr.bf16.mxu0 0
  %1095 = vmatpush1.bf16.msra.mxu0 %v500
  %1096 = vmatprep.subr.bf16.mxu0 0
  %1097 = vmatpush1.bf16.msra.mxu0 %v501
  %1098 = vmatprep.subr.bf16.mxu0 0
  %1099 = vmatpush1.bf16.msra.mxu0 %v502
  %1100 = vmatprep.subr.bf16.mxu0 0
  %1101 = vmatpush1.bf16.msra.mxu0 %v503
  %1102 = vmatprep.subr.bf16.mxu0 0
  %1103 = vmatpush1.bf16.msra.mxu0 %v504
  %1104 = vmatprep.subr.bf16.mxu0 0
  %1105 = vmatpush1.bf16.msra.mxu0 %v505
  %1106 = vmatprep.subr.bf16.mxu0 0
  %1107 = vmatpush1.bf16.msra.mxu0 %v506
  %1108 = vmatprep.subr.bf16.mxu0 0
  %1109 = vmatpush1.bf16.msra.mxu0 %v507
  %1110 = vmatprep.subr.bf16.mxu0 0
  %1111 = vmatpush1.bf16.msra.mxu0 %v508
  %1112 = vmatprep.subr.bf16.mxu0 0
  %1113 = vmatpush1.bf16.msra.mxu0 %v509
  %1114 = vmatprep.subr.bf16.mxu0 0
  %1115 = vmatpush1.bf16.msra.mxu0 %v510
  %1116 = vmatprep.subr.bf16.mxu0 0
  %1117 = vmatpush1.bf16.msra.mxu0 %v511
  %1118 = vmatprep.subr.bf16.mxu0 0
  %1119 = vmatpush1.bf16.msra.mxu0 %v1086
  %1120 = vmatprep.mubr.bf16.mxu0 %v962
  %1121 = vmatmul.mubr.bf16.gmra.mrb[0].mxu0 %v837
  %v1122 = vpop.f32.mrb[0].mxu0
  %v1123 = vadd.f32 0.0, %v1122
  %v1124 = vpop.f32.mrb[0].mxu0
  %v1125 = vpop.f32.mrb[0].mxu0
  %v1126 = vadd.f32 0.0, %v1125
  %v1127 = vpop.f32.mrb[0].mxu0
  %1128 = vmatprep.mubr.bf16.mxu0 %v965
  %1129 = vmatmul.mubr.bf16.gmra.mrb[0].mxu0 %v839
  %v1130 = vpop.f32.mrb[0].mxu0
  %v1131 = vadd.f32 0.0, %v1130
  %v1132 = vpop.f32.mrb[0].mxu0
  %v1133 = vpop.f32.mrb[0].mxu0
  %v1134 = vadd.f32 0.0, %v1133
  %v1135 = vpop.f32.mrb[0].mxu0
  %1136 = vmatprep.mubr.bf16.mxu0 %v968
  %1137 = vmatmul.mubr.bf16.gmra.mrb[0].mxu0 %v841
  %v1138 = vpop.f32.mrb[0].mxu0
  %v1139 = vadd.f32 0.0, %v1138
  %v1140 = vpop.f32.mrb[0].mxu0
  %v1141 = vpop.f32.mrb[0].mxu0
  %v1142 = vadd.f32 0.0, %v1141
  %v1143 = vpop.f32.mrb[0].mxu0
  %1144 = vmatprep.mubr.bf16.mxu0 %v971
  %1145 = vmatmul.mubr.bf16.gmra.mrb[0].mxu0 %v843
  %v1146 = vpop.f32.mrb[0].mxu0
  %v1147 = vadd.f32 0.0, %v1146
  %v1148 = vpop.f32.mrb[0].mxu0
  %v1149 = vpop.f32.mrb[0].mxu0
  %v1150 = vadd.f32 0.0, %v1149
  %v1151 = vpop.f32.mrb[0].mxu0
  %1152 = vmatprep.mubr.bf16.mxu0 %v974
  %1153 = vmatmul.mubr.bf16.gmra.mrb[0].mxu0 %v845
  %v1154 = vpop.f32.mrb[0].mxu0
  %v1155 = vadd.f32 0.0, %v1154
  %v1156 = vpop.f32.mrb[0].mxu0
  %v1157 = vpop.f32.mrb[0].mxu0
  %v1158 = vadd.f32 0.0, %v1157
  %v1159 = vpop.f32.mrb[0].mxu0
  %1160 = vmatprep.mubr.bf16.mxu0 %v977
  %1161 = vmatmul.mubr.bf16.gmra.mrb[0].mxu0 %v847
  %v1162 = vpop.f32.mrb[0].mxu0
  %v1163 = vadd.f32 0.0, %v1162
  %v1164 = vpop.f32.mrb[0].mxu0
  %v1165 = vpop.f32.mrb[0].mxu0
  %v1166 = vadd.f32 0.0, %v1165
  %v1167 = vpop.f32.mrb[0].mxu0
  %1168 = vmatprep.mubr.bf16.mxu0 %v980
  %1169 = vmatmul.mubr.bf16.gmra.mrb[0].mxu0 %v849
  %v1170 = vpop.f32.mrb[0].mxu0
  %v1171 = vadd.f32 0.0, %v1170
  %v1172 = vpop.f32.mrb[0].mxu0
  %v1173 = vpop.f32.mrb[0].mxu0
  %v1174 = vadd.f32 0.0, %v1173
  %v1175 = vpop.f32.mrb[0].mxu0
  %1176 = vmatprep.mubr.bf16.mxu0 %v983
  %1177 = vmatmul.mubr.bf16.gmra.mrb[0].mxu0 %v851
  %v1178 = vpop.f32.mrb[0].mxu0
  %v1179 = vadd.f32 0.0, %v1178
  %v1180 = vpop.f32.mrb[0].mxu0
  %v1181 = vpop.f32.mrb[0].mxu0
  %v1182 = vadd.f32 0.0, %v1181
  %v1183 = vpop.f32.mrb[0].mxu0
  %1184 = vmatprep.mubr.bf16.mxu0 %v986
  %1185 = vmatmul.mubr.bf16.gmra.mrb[0].mxu0 %v853
  %v1186 = vpop.f32.mrb[0].mxu0
  %v1187 = vadd.f32 0.0, %v1186
  %v1188 = vpop.f32.mrb[0].mxu0
  %v1189 = vpop.f32.mrb[0].mxu0
  %v1190 = vadd.f32 0.0, %v1189
  %v1191 = vpop.f32.mrb[0].mxu0
  %1192 = vmatprep.mubr.bf16.mxu0 %v989
  %1193 = vmatmul.mubr.bf16.gmra.mrb[0].mxu0 %v855
  %v1194 = vpop.f32.mrb[0].mxu0
  %v1195 = vadd.f32 0.0, %v1194
  %v1196 = vpop.f32.mrb[0].mxu0
  %v1197 = vpop.f32.mrb[0].mxu0
  %v1198 = vadd.f32 0.0, %v1197
  %v1199 = vpop.f32.mrb[0].mxu0
  %1200 = vmatprep.mubr.bf16.mxu0 %v992
  %1201 = vmatmul.mubr.bf16.gmra.mrb[0].mxu0 %v857
  %v1202 = vpop.f32.mrb[0].mxu0
  %v1203 = vadd.f32 0.0, %v1202
  %v1204 = vpop.f32.mrb[0].mxu0
  %v1205 = vpop.f32.mrb[0].mxu0
  %v1206 = vadd.f32 0.0, %v1205
  %v1207 = vpop.f32.mrb[0].mxu0
  %1208 = vmatprep.mubr.bf16.mxu0 %v995
  %1209 = vmatmul.mubr.bf16.gmra.mrb[0].mxu0 %v859
  %v1210 = vpop.f32.mrb[0].mxu0
  %v1211 = vadd.f32 0.0, %v1210
  %v1212 = vpop.f32.mrb[0].mxu0
  %v1213 = vpop.f32.mrb[0].mxu0
  %v1214 = vadd.f32 0.0, %v1213
  %v1215 = vpop.f32.mrb[0].mxu0
  %1216 = vmatprep.mubr.bf16.mxu0 %v998
  %1217 = vmatmul.mubr.bf16.gmra.mrb[0].mxu0 %v861
  %v1218 = vpop.f32.mrb[0].mxu0
  %v1219 = vadd.f32 0.0, %v1218
  %v1220 = vpop.f32.mrb[0].mxu0
  %v1221 = vpop.f32.mrb[0].mxu0
  %v1222 = vadd.f32 0.0, %v1221
  %v1223 = vpop.f32.mrb[0].mxu0
  %1224 = vmatprep.mubr.bf16.mxu0 %v1001
  %1225 = vmatmul.mubr.bf16.gmra.mrb[0].mxu0 %v863
  %v1226 = vpop.f32.mrb[0].mxu0
  %v1227 = vadd.f32 0.0, %v1226
  %v1228 = vpop.f32.mrb[0].mxu0
  %v1229 = vpop.f32.mrb[0].mxu0
  %v1230 = vadd.f32 0.0, %v1229
  %v1231 = vpop.f32.mrb[0].mxu0
  %1232 = vmatprep.mubr.bf16.mxu0 %v1004
  %1233 = vmatmul.mubr.bf16.gmra.mrb[0].mxu0 %v865
  %v1234 = vpop.f32.mrb[0].mxu0
  %v1235 = vadd.f32 0.0, %v1234
  %v1236 = vpop.f32.mrb[0].mxu0
  %v1237 = vpop.f32.mrb[0].mxu0
  %v1238 = vadd.f32 0.0, %v1237
  %v1239 = vpop.f32.mrb[0].mxu0
  %1240 = vmatprep.mubr.bf16.mxu0 %v1007
  %1241 = vmatmul.mubr.bf16.gmra.mrb[0].mxu0 %v867
  %v1242 = vpop.f32.mrb[0].mxu0
  %v1243 = vadd.f32 0.0, %v1242
  %v1244 = vpop.f32.mrb[0].mxu0
  %v1245 = vpop.f32.mrb[0].mxu0
  %v1246 = vadd.f32 0.0, %v1245
  %v1247 = vpop.f32.mrb[0].mxu0
  %1248 = vmatprep.mubr.bf16.mxu0 %v1010
  %1249 = vmatmul.mubr.bf16.gmra.mrb[0].mxu0 %v869
  %v1250 = vpop.f32.mrb[0].mxu0
  %v1251 = vadd.f32 0.0, %v1250
  %v1252 = vpop.f32.mrb[0].mxu0
  %v1253 = vpop.f32.mrb[0].mxu0
  %v1254 = vadd.f32 0.0, %v1253
  %v1255 = vpop.f32.mrb[0].mxu0
  %1256 = vmatprep.mubr.bf16.mxu0 %v1013
  %1257 = vmatmul.mubr.bf16.gmra.mrb[0].mxu0 %v871
  %v1258 = vpop.f32.mrb[0].mxu0
  %v1259 = vadd.f32 0.0, %v1258
  %v1260 = vpop.f32.mrb[0].mxu0
  %v1261 = vpop.f32.mrb[0].mxu0
  %v1262 = vadd.f32 0.0, %v1261
  %v1263 = vpop.f32.mrb[0].mxu0
  %1264 = vmatprep.mubr.bf16.mxu0 %v1016
  %1265 = vmatmul.mubr.bf16.gmra.mrb[0].mxu0 %v873
  %v1266 = vpop.f32.mrb[0].mxu0
  %v1267 = vadd.f32 0.0, %v1266
  %v1268 = vpop.f32.mrb[0].mxu0
  %v1269 = vpop.f32.mrb[0].mxu0
  %v1270 = vadd.f32 0.0, %v1269
  %v1271 = vpop.f32.mrb[0].mxu0
  %1272 = vmatprep.mubr.bf16.mxu0 %v1019
  %1273 = vmatmul.mubr.bf16.gmra.mrb[0].mxu0 %v875
  %v1274 = vpop.f32.mrb[0].mxu0
  %v1275 = vadd.f32 0.0, %v1274
  %v1276 = vpop.f32.mrb[0].mxu0
  %v1277 = vpop.f32.mrb[0].mxu0
  %v1278 = vadd.f32 0.0, %v1277
  %v1279 = vpop.f32.mrb[0].mxu0
  %1280 = vmatprep.mubr.bf16.mxu0 %v1022
  %1281 = vmatmul.mubr.bf16.gmra.mrb[0].mxu0 %v877
  %v1282 = vpop.f32.mrb[0].mxu0
  %v1283 = vadd.f32 0.0, %v1282
  %v1284 = vpop.f32.mrb[0].mxu0
  %v1285 = vpop.f32.mrb[0].mxu0
  %v1286 = vadd.f32 0.0, %v1285
  %v1287 = vpop.f32.mrb[0].mxu0
  %1288 = vmatprep.mubr.bf16.mxu0 %v1025
  %1289 = vmatmul.mubr.bf16.gmra.mrb[0].mxu0 %v879
  %v1290 = vpop.f32.mrb[0].mxu0
  %v1291 = vadd.f32 0.0, %v1290
  %v1292 = vpop.f32.mrb[0].mxu0
  %v1293 = vpop.f32.mrb[0].mxu0
  %v1294 = vadd.f32 0.0, %v1293
  %v1295 = vpop.f32.mrb[0].mxu0
  %1296 = vmatprep.mubr.bf16.mxu0 %v1028
  %1297 = vmatmul.mubr.bf16.gmra.mrb[0].mxu0 %v881
  %v1298 = vpop.f32.mrb[0].mxu0
  %v1299 = vadd.f32 0.0, %v1298
  %v1300 = vpop.f32.mrb[0].mxu0
  %v1301 = vpop.f32.mrb[0].mxu0
  %v1302 = vadd.f32 0.0, %v1301
  %v1303 = vpop.f32.mrb[0].mxu0
  %1304 = vmatprep.mubr.bf16.mxu0 %v1031
  %1305 = vmatmul.mubr.bf16.gmra.mrb[0].mxu0 %v883
  %v1306 = vpop.f32.mrb[0].mxu0
  %v1307 = vadd.f32 0.0, %v1306
  %v1308 = vpop.f32.mrb[0].mxu0
  %v1309 = vpop.f32.mrb[0].mxu0
  %v1310 = vadd.f32 0.0, %v1309
  %v1311 = vpop.f32.mrb[0].mxu0
  %1312 = vmatprep.mubr.bf16.mxu0 %v1034
  %1313 = vmatmul.mubr.bf16.gmra.mrb[0].mxu0 %v885
  %v1314 = vpop.f32.mrb[0].mxu0
  %v1315 = vadd.f32 0.0, %v1314
  %v1316 = vpop.f32.mrb[0].mxu0
  %v1317 = vpop.f32.mrb[0].mxu0
  %v1318 = vadd.f32 0.0, %v1317
  %v1319 = vpop.f32.mrb[0].mxu0
  %1320 = vmatprep.mubr.bf16.mxu0 %v1037
  %1321 = vmatmul.mubr.bf16.gmra.mrb[0].mxu0 %v887
  %v1322 = vpop.f32.mrb[0].mxu0
  %v1323 = vadd.f32 0.0, %v1322
  %v1324 = vpop.f32.mrb[0].mxu0
  %v1325 = vpop.f32.mrb[0].mxu0
  %v1326 = vadd.f32 0.0, %v1325
  %v1327 = vpop.f32.mrb[0].mxu0
  %1328 = vmatprep.mubr.bf16.mxu0 %v1040
  %1329 = vmatmul.mubr.bf16.gmra.mrb[0].mxu0 %v889
  %v1330 = vpop.f32.mrb[0].mxu0
  %v1331 = vadd.f32 0.0, %v1330
  %v1332 = vpop.f32.mrb[0].mxu0
  %v1333 = vpop.f32.mrb[0].mxu0
  %v1334 = vadd.f32 0.0, %v1333
  %v1335 = vpop.f32.mrb[0].mxu0
  %1336 = vmatprep.mubr.bf16.mxu0 %v1043
  %1337 = vmatmul.mubr.bf16.gmra.mrb[0].mxu0 %v891
  %v1338 = vpop.f32.mrb[0].mxu0
  %v1339 = vadd.f32 0.0, %v1338
  %v1340 = vpop.f32.mrb[0].mxu0
  %v1341 = vpop.f32.mrb[0].mxu0
  %v1342 = vadd.f32 0.0, %v1341
  %v1343 = vpop.f32.mrb[0].mxu0
  %1344 = vmatprep.mubr.bf16.mxu0 %v1046
  %1345 = vmatmul.mubr.bf16.gmra.mrb[0].mxu0 %v893
  %v1346 = vpop.f32.mrb[0].mxu0
  %v1347 = vadd.f32 0.0, %v1346
  %v1348 = vpop.f32.mrb[0].mxu0
  %v1349 = vpop.f32.mrb[0].mxu0
  %v1350 = vadd.f32 0.0, %v1349
  %v1351 = vpop.f32.mrb[0].mxu0
  %1352 = vmatprep.mubr.bf16.mxu0 %v1049
  %1353 = vmatmul.mubr.bf16.gmra.mrb[0].mxu0 %v895
  %v1354 = vpop.f32.mrb[0].mxu0
  %v1355 = vadd.f32 0.0, %v1354
  %v1356 = vpop.f32.mrb[0].mxu0
  %v1357 = vpop.f32.mrb[0].mxu0
  %v1358 = vadd.f32 0.0, %v1357
  %v1359 = vpop.f32.mrb[0].mxu0
  %1360 = vmatprep.mubr.bf16.mxu0 %v1052
  %1361 = vmatmul.mubr.bf16.gmra.mrb[0].mxu0 %v897
  %v1362 = vpop.f32.mrb[0].mxu0
  %v1363 = vadd.f32 0.0, %v1362
  %v1364 = vpop.f32.mrb[0].mxu0
  %v1365 = vpop.f32.mrb[0].mxu0
  %v1366 = vadd.f32 0.0, %v1365
  %v1367 = vpop.f32.mrb[0].mxu0
  %1368 = vmatprep.mubr.bf16.mxu0 %v1055
  %1369 = vmatmul.mubr.bf16.gmra.mrb[0].mxu0 %v899
  %v1370 = vpop.f32.mrb[0].mxu0
  %v1371 = vadd.f32 0.0, %v1370
  %v1372 = vpop.f32.mrb[0].mxu0
  %v1373 = vpop.f32.mrb[0].mxu0
  %v1374 = vadd.f32 0.0, %v1373
  %v1375 = vpop.f32.mrb[0].mxu0
  %1376 = vmatprep.mubr.bf16.mxu0 %v1058
  %1377 = vmatmul.mubr.bf16.gmra.mrb[0].mxu0 %v901
  %v1378 = vpop.f32.mrb[0].mxu0
  %v1379 = vadd.f32 0.0, %v1378
  %v1380 = vpop.f32.mrb[0].mxu0
  %v1381 = vpop.f32.mrb[0].mxu0
  %v1382 = vadd.f32 0.0, %v1381
  %v1383 = vpop.f32.mrb[0].mxu0
  %1384 = vmatprep.mubr.bf16.mxu0 %v1061
  %1385 = vmatmul.mubr.bf16.gmra.mrb[0].mxu0 %v903
  %v1386 = vpop.f32.mrb[0].mxu0
  %v1387 = vadd.f32 0.0, %v1386
  %v1388 = vpop.f32.mrb[0].mxu0
  %v1389 = vpop.f32.mrb[0].mxu0
  %v1390 = vadd.f32 0.0, %v1389
  %v1391 = vpop.f32.mrb[0].mxu0
  %1392 = vmatprep.mubr.bf16.mxu0 %v1064
  %1393 = vmatmul.mubr.bf16.gmra.mrb[0].mxu0 %v905
  %v1394 = vpop.f32.mrb[0].mxu0
  %v1395 = vadd.f32 0.0, %v1394
  %v1396 = vpop.f32.mrb[0].mxu0
  %v1397 = vpop.f32.mrb[0].mxu0
  %v1398 = vadd.f32 0.0, %v1397
  %v1399 = vpop.f32.mrb[0].mxu0
  %1400 = vmatprep.mubr.bf16.mxu0 %v1067
  %1401 = vmatmul.mubr.bf16.gmra.mrb[0].mxu0 %v907
  %v1402 = vpop.f32.mrb[0].mxu0
  %v1403 = vadd.f32 0.0, %v1402
  %v1404 = vpop.f32.mrb[0].mxu0
  %v1405 = vpop.f32.mrb[0].mxu0
  %v1406 = vadd.f32 0.0, %v1405
  %v1407 = vpop.f32.mrb[0].mxu0
  %1408 = vmatprep.mubr.bf16.mxu0 %v1070
  %1409 = vmatmul.mubr.bf16.gmra.mrb[0].mxu0 %v909
  %v1410 = vpop.f32.mrb[0].mxu0
  %v1411 = vadd.f32 0.0, %v1410
  %v1412 = vpop.f32.mrb[0].mxu0
  %v1413 = vpop.f32.mrb[0].mxu0
  %v1414 = vadd.f32 0.0, %v1413
  %v1415 = vpop.f32.mrb[0].mxu0
  %1416 = vmatprep.mubr.bf16.mxu0 %v1073
  %1417 = vmatmul.mubr.bf16.gmra.mrb[0].mxu0 %v911
  %v1418 = vpop.f32.mrb[0].mxu0
  %v1419 = vadd.f32 0.0, %v1418
  %v1420 = vpop.f32.mrb[0].mxu0
  %v1421 = vpop.f32.mrb[0].mxu0
  %v1422 = vadd.f32 0.0, %v1421
  %v1423 = vpop.f32.mrb[0].mxu0
  %1424 = vmatprep.mubr.bf16.mxu0 %v1076
  %1425 = vmatmul.mubr.bf16.gmra.mrb[0].mxu0 %v913
  %v1426 = vpop.f32.mrb[0].mxu0
  %v1427 = vadd.f32 0.0, %v1426
  %v1428 = vpop.f32.mrb[0].mxu0
  %v1429 = vpop.f32.mrb[0].mxu0
  %v1430 = vadd.f32 0.0, %v1429
  %v1431 = vpop.f32.mrb[0].mxu0
  %1432 = vmatprep.mubr.bf16.mxu0 %v1079
  %1433 = vmatmul.mubr.bf16.gmra.mrb[0].mxu0 %v915
  %v1434 = vpop.f32.mrb[0].mxu0
  %v1435 = vadd.f32 0.0, %v1434
  %v1436 = vpop.f32.mrb[0].mxu0
  %v1437 = vpop.f32.mrb[0].mxu0
  %v1438 = vadd.f32 0.0, %v1437
  %v1439 = vpop.f32.mrb[0].mxu0
  %1440 = vmatprep.mubr.bf16.mxu0 %v1082
  %1441 = vmatmul.mubr.bf16.gmra.mrb[0].mxu0 %v917
  %v1442 = vpop.f32.mrb[0].mxu0
  %v1443 = vadd.f32 0.0, %v1442
  %v1444 = vpop.f32.mrb[0].mxu0
  %v1445 = vpop.f32.mrb[0].mxu0
  %v1446 = vpop.f32.mrb[0].mxu0
  %1447 = vdwg.mxu0
  %v1448 = vpack.c.bf16 %v1126, %v1123
  %v1449 = vpack.c.bf16 %v1134, %v1131
  %v1450 = vpack.c.bf16 %v1142, %v1139
  %v1451 = vpack.c.bf16 %v1150, %v1147
  %v1452 = vpack.c.bf16 %v1155, %v1155
  %v1453 = vld [vmem:[%s5] sm:$0xf]
  %v1454 = vld [vmem:[%s5 + $0x4] sm:$0xf]
  %v1455 = vpack.c.bf16 %v1163, %v1158
  %v1456 = vpack.c.bf16 %v1171, %v1166
  %v1457 = vpack.c.bf16 %v1179, %v1174
  %v1458 = vpack.c.bf16 %v1187, %v1182
  %v1459 = vpack.c.bf16 %v1190, %v1190
  %v1460 = vld [vmem:[%s5 + $0x8] sm:$0xf]
  %v1461 = vld [vmem:[%s5 + $0xc] sm:$0xf]
  %v1464 = vunpack.c.l.b16 %v1460
  %v1465 = vunpack.c.l.b16 %v1461
  %v1466 = vpack.c.b16 %v1465, %v1464
  %vm1468 = vcmask 130048
  %v1470 = vsel %vm1468, %v1455, 0
  %v1473 = vsel %vm1468, %v1456, 0
  %v1476 = vsel %vm1468, %v1457, 0
  %v1479 = vsel %vm1468, %v1458, 0
  %v1482 = vsel %vm1468, %v1459, 0
  %1484 = vmatprep.subr.bf16.mxu0 0
  %1485 = vmatpush1.bf16.msra.mxu0 %v1466
  %1486 = vmatprep.subr.bf16.mxu0 0
  %1487 = vmatpush1.bf16.msra.mxu0 0
  %1488 = vmatprep.subr.bf16.mxu0 0
  %1489 = vmatpush1.bf16.msra.mxu0 0
  %1490 = vmatprep.subr.bf16.mxu0 0
  %1491 = vmatpush1.bf16.msra.mxu0 0
  %1492 = vmatprep.subr.bf16.mxu0 0
  %1493 = vmatpush1.bf16.msra.mxu0 0
  %1494 = vmatprep.subr.bf16.mxu0 0
  %1495 = vmatpush1.bf16.msra.mxu0 0
  %1496 = vmatprep.subr.bf16.mxu0 0
  %1497 = vmatpush1.bf16.msra.mxu0 0
  %1498 = vmatprep.subr.bf16.mxu0 0
  %1499 = vmatpush1.bf16.msra.mxu0 0
  %1500 = vmatprep.subr.bf16.mxu0 0
  %1501 = vmatpush1.bf16.msra.mxu0 0
  %1502 = vmatprep.subr.bf16.mxu0 0
  %1503 = vmatpush1.bf16.msra.mxu0 0
  %1504 = vmatprep.subr.bf16.mxu0 0
  %1505 = vmatpush1.bf16.msra.mxu0 0
  %1506 = vmatprep.subr.bf16.mxu0 0
  %1507 = vmatpush1.bf16.msra.mxu0 0
  %1508 = vmatprep.subr.bf16.mxu0 0
  %1509 = vmatpush1.bf16.msra.mxu0 0
  %1510 = vmatprep.subr.bf16.mxu0 0
  %1511 = vmatpush1.bf16.msra.mxu0 0
  %1512 = vmatprep.subr.bf16.mxu0 0
  %1513 = vmatpush1.bf16.msra.mxu0 0
  %1514 = vmatprep.subr.bf16.mxu0 0
  %1515 = vmatpush1.bf16.msra.mxu0 0
  %1516 = vmatprep.mubr.bf16.mxu0 0
  %1517 = vmatmul.mubr.bf16.gmra.mrb[0].mxu0 %v1470
  %v1518 = vpop.f32.mrb[0].mxu0
  %v1519 = vadd.f32 0.0, %v1518
  %v1520 = vpop.f32.mrb[0].mxu0
  %v1521 = vpop.f32.mrb[0].mxu0
  %v1522 = vadd.f32 0.0, %v1521
  %v1523 = vpop.f32.mrb[0].mxu0
  %1524 = vmatprep.mubr.bf16.mxu0 0
  %1525 = vmatmul.mubr.bf16.gmra.mrb[0].mxu0 %v1473
  %v1526 = vpop.f32.mrb[0].mxu0
  %v1527 = vadd.f32 0.0, %v1526
  %v1528 = vpop.f32.mrb[0].mxu0
  %v1529 = vpop.f32.mrb[0].mxu0
  %v1530 = vadd.f32 0.0, %v1529
  %v1531 = vpop.f32.mrb[0].mxu0
  %1532 = vmatprep.mubr.bf16.mxu0 0
  %1533 = vmatmul.mubr.bf16.gmra.mrb[0].mxu0 %v1476
  %v1534 = vpop.f32.mrb[0].mxu0
  %v1535 = vadd.f32 0.0, %v1534
  %v1536 = vpop.f32.mrb[0].mxu0
  %v1537 = vpop.f32.mrb[0].mxu0
  %v1538 = vadd.f32 0.0, %v1537
  %v1539 = vpop.f32.mrb[0].mxu0
  %1540 = vmatprep.mubr.bf16.mxu0 0
  %1541 = vmatmul.mubr.bf16.gmra.mrb[0].mxu0 %v1479
  %v1542 = vpop.f32.mrb[0].mxu0
  %v1543 = vadd.f32 0.0, %v1542
  %v1544 = vpop.f32.mrb[0].mxu0
  %v1545 = vpop.f32.mrb[0].mxu0
  %v1546 = vadd.f32 0.0, %v1545
  %v1547 = vpop.f32.mrb[0].mxu0
  %1548 = vmatprep.mubr.bf16.mxu0 0
  %1549 = vmatmul.mubr.bf16.gmra.mrb[0].mxu0 %v1482
  %v1550 = vpop.f32.mrb[0].mxu0
  %v1551 = vadd.f32 0.0, %v1550
  %v1552 = vpop.f32.mrb[0].mxu0
  %v1553 = vpop.f32.mrb[0].mxu0
  %v1554 = vpop.f32.mrb[0].mxu0
  %1555 = vdwg.mxu0
  %v1558 = vunpack.c.l.b16 %v1453
  %v1559 = vunpack.c.l.b16 %v1454
  %v1560 = vpack.c.b16 %v1559, %v1558
  %v1563 = vsel %vm1468, %v1448, 0
  %v1566 = vsel %vm1468, %v1449, 0
  %v1569 = vsel %vm1468, %v1450, 0
  %v1572 = vsel %vm1468, %v1451, 0
  %v1575 = vsel %vm1468, %v1452, 0
  %1577 = vmatprep.subr.bf16.mxu0 0
  %1578 = vmatpush1.bf16.msra.mxu0 %v1560
  %1579 = vmatprep.subr.bf16.mxu0 0
  %1580 = vmatpush1.bf16.msra.mxu0 0
  %1581 = vmatprep.subr.bf16.mxu0 0
  %1582 = vmatpush1.bf16.msra.mxu0 0
  %1583 = vmatprep.subr.bf16.mxu0 0
  %1584 = vmatpush1.bf16.msra.mxu0 0
  %1585 = vmatprep.subr.bf16.mxu0 0
  %1586 = vmatpush1.bf16.msra.mxu0 0
  %1587 = vmatprep.subr.bf16.mxu0 0
  %1588 = vmatpush1.bf16.msra.mxu0 0
  %1589 = vmatprep.subr.bf16.mxu0 0
  %1590 = vmatpush1.bf16.msra.mxu0 0
  %1591 = vmatprep.subr.bf16.mxu0 0
  %1592 = vmatpush1.bf16.msra.mxu0 0
  %1593 = vmatprep.subr.bf16.mxu0 0
  %1594 = vmatpush1.bf16.msra.mxu0 0
  %1595 = vmatprep.subr.bf16.mxu0 0
  %1596 = vmatpush1.bf16.msra.mxu0 0
  %1597 = vmatprep.subr.bf16.mxu0 0
  %1598 = vmatpush1.bf16.msra.mxu0 0
  %1599 = vmatprep.subr.bf16.mxu0 0
  %1600 = vmatpush1.bf16.msra.mxu0 0
  %1601 = vmatprep.subr.bf16.mxu0 0
  %1602 = vmatpush1.bf16.msra.mxu0 0
  %1603 = vmatprep.subr.bf16.mxu0 0
  %1604 = vmatpush1.bf16.msra.mxu0 0
  %1605 = vmatprep.subr.bf16.mxu0 0
  %1606 = vmatpush1.bf16.msra.mxu0 0
  %1607 = vmatprep.subr.bf16.mxu0 0
  %1608 = vmatpush1.bf16.msra.mxu0 0
  %1609 = vmatprep.mubr.bf16.mxu0 0
  %1610 = vmatmul.mubr.bf16.gmra.mrb[0].mxu0 %v1563
  %v1611 = vpop.f32.mrb[0].mxu0
  %v1612 = vadd.f32 %v1519, %v1611
  %v1613 = vpop.f32.mrb[0].mxu0
  %v1614 = vpop.f32.mrb[0].mxu0
  %v1615 = vadd.f32 %v1522, %v1614
  %v1616 = vpop.f32.mrb[0].mxu0
  %1617 = vmatprep.mubr.bf16.mxu0 0
  %1618 = vmatmul.mubr.bf16.gmra.mrb[0].mxu0 %v1566
  %v1619 = vpop.f32.mrb[0].mxu0
  %v1620 = vadd.f32 %v1527, %v1619
  %v1621 = vpop.f32.mrb[0].mxu0
  %v1622 = vpop.f32.mrb[0].mxu0
  %v1623 = vadd.f32 %v1530, %v1622
  %v1624 = vpop.f32.mrb[0].mxu0
  %1625 = vmatprep.mubr.bf16.mxu0 0
  %1626 = vmatmul.mubr.bf16.gmra.mrb[0].mxu0 %v1569
  %v1627 = vpop.f32.mrb[0].mxu0
  %v1628 = vadd.f32 %v1535, %v1627
  %v1629 = vpop.f32.mrb[0].mxu0
  %v1630 = vpop.f32.mrb[0].mxu0
  %v1631 = vadd.f32 %v1538, %v1630
  %v1632 = vpop.f32.mrb[0].mxu0
  %1633 = vmatprep.mubr.bf16.mxu0 0
  %1634 = vmatmul.mubr.bf16.gmra.mrb[0].mxu0 %v1572
  %v1635 = vpop.f32.mrb[0].mxu0
  %v1636 = vadd.f32 %v1543, %v1635
  %v1637 = vpop.f32.mrb[0].mxu0
  %v1638 = vpop.f32.mrb[0].mxu0
  %v1639 = vadd.f32 %v1546, %v1638
  %v1640 = vpop.f32.mrb[0].mxu0
  %1641 = vmatprep.mubr.bf16.mxu0 0
  %1642 = vmatmul.mubr.bf16.gmra.mrb[0].mxu0 %v1575
  %v1643 = vpop.f32.mrb[0].mxu0
  %v1644 = vadd.f32 %v1551, %v1643
  %v1645 = vpop.f32.mrb[0].mxu0
  %v1646 = vpop.f32.mrb[0].mxu0
  %v1647 = vpop.f32.mrb[0].mxu0
  %1648 = vdwg.mxu0
  %v1649 = vpack.c.bf16 %v1198, %v1195
  %v1650 = vpack.c.bf16 %v1206, %v1203
  %v1651 = vpack.c.bf16 %v1214, %v1211
  %v1652 = vpack.c.bf16 %v1222, %v1219
  %v1653 = vpack.c.bf16 %v1227, %v1227
  %v1654 = vld [vmem:[%s5 + $0x10] sm:$0xf]
  %v1655 = vld [vmem:[%s5 + $0x14] sm:$0xf]
  %v1658 = vunpack.c.l.b16 %v1654
  %v1659 = vunpack.c.l.b16 %v1655
  %v1660 = vpack.c.b16 %v1659, %v1658
  %v1663 = vsel %vm1468, %v1649, 0
  %v1666 = vsel %vm1468, %v1650, 0
  %v1669 = vsel %vm1468, %v1651, 0
  %v1672 = vsel %vm1468, %v1652, 0
  %v1675 = vsel %vm1468, %v1653, 0
  %1677 = vmatprep.subr.bf16.mxu0 0
  %1678 = vmatpush1.bf16.msra.mxu0 %v1660
  %1679 = vmatprep.subr.bf16.mxu0 0
  %1680 = vmatpush1.bf16.msra.mxu0 0
  %1681 = vmatprep.subr.bf16.mxu0 0
  %1682 = vmatpush1.bf16.msra.mxu0 0
  %1683 = vmatprep.subr.bf16.mxu0 0
  %1684 = vmatpush1.bf16.msra.mxu0 0
  %1685 = vmatprep.subr.bf16.mxu0 0
  %1686 = vmatpush1.bf16.msra.mxu0 0
  %1687 = vmatprep.subr.bf16.mxu0 0
  %1688 = vmatpush1.bf16.msra.mxu0 0
  %1689 = vmatprep.subr.bf16.mxu0 0
  %1690 = vmatpush1.bf16.msra.mxu0 0
  %1691 = vmatprep.subr.bf16.mxu0 0
  %1692 = vmatpush1.bf16.msra.mxu0 0
  %1693 = vmatprep.subr.bf16.mxu0 0
  %1694 = vmatpush1.bf16.msra.mxu0 0
  %1695 = vmatprep.subr.bf16.mxu0 0
  %1696 = vmatpush1.bf16.msra.mxu0 0
  %1697 = vmatprep.subr.bf16.mxu0 0
  %1698 = vmatpush1.bf16.msra.mxu0 0
  %1699 = vmatprep.subr.bf16.mxu0 0
  %1700 = vmatpush1.bf16.msra.mxu0 0
  %1701 = vmatprep.subr.bf16.mxu0 0
  %1702 = vmatpush1.bf16.msra.mxu0 0
  %1703 = vmatprep.subr.bf16.mxu0 0
  %1704 = vmatpush1.bf16.msra.mxu0 0
  %1705 = vmatprep.subr.bf16.mxu0 0
  %1706 = vmatpush1.bf16.msra.mxu0 0
  %1707 = vmatprep.subr.bf16.mxu0 0
  %1708 = vmatpush1.bf16.msra.mxu0 0
  %1709 = vmatprep.mubr.bf16.mxu0 0
  %1710 = vmatmul.mubr.bf16.gmra.mrb[0].mxu0 %v1663
  %v1711 = vpop.f32.mrb[0].mxu0
  %v1712 = vadd.f32 0.0, %v1711
  %v1713 = vpop.f32.mrb[0].mxu0
  %v1714 = vpop.f32.mrb[0].mxu0
  %v1715 = vadd.f32 0.0, %v1714
  %v1716 = vpop.f32.mrb[0].mxu0
  %1717 = vmatprep.mubr.bf16.mxu0 0
  %1718 = vmatmul.mubr.bf16.gmra.mrb[0].mxu0 %v1666
  %v1719 = vpop.f32.mrb[0].mxu0
  %v1720 = vadd.f32 0.0, %v1719
  %v1721 = vpop.f32.mrb[0].mxu0
  %v1722 = vpop.f32.mrb[0].mxu0
  %v1723 = vadd.f32 0.0, %v1722
  %v1724 = vpop.f32.mrb[0].mxu0
  %1725 = vmatprep.mubr.bf16.mxu0 0
  %1726 = vmatmul.mubr.bf16.gmra.mrb[0].mxu0 %v1669
  %v1727 = vpop.f32.mrb[0].mxu0
  %v1728 = vadd.f32 0.0, %v1727
  %v1729 = vpop.f32.mrb[0].mxu0
  %v1730 = vpop.f32.mrb[0].mxu0
  %v1731 = vadd.f32 0.0, %v1730
  %v1732 = vpop.f32.mrb[0].mxu0
  %1733 = vmatprep.mubr.bf16.mxu0 0
  %1734 = vmatmul.mubr.bf16.gmra.mrb[0].mxu0 %v1672
  %v1735 = vpop.f32.mrb[0].mxu0
  %v1736 = vadd.f32 0.0, %v1735
  %v1737 = vpop.f32.mrb[0].mxu0
  %v1738 = vpop.f32.mrb[0].mxu0
  %v1739 = vadd.f32 0.0, %v1738
  %v1740 = vpop.f32.mrb[0].mxu0
  %1741 = vmatprep.mubr.bf16.mxu0 0
  %1742 = vmatmul.mubr.bf16.gmra.mrb[0].mxu0 %v1675
  %v1743 = vpop.f32.mrb[0].mxu0
  %v1744 = vadd.f32 0.0, %v1743
  %v1745 = vpop.f32.mrb[0].mxu0
  %v1746 = vpop.f32.mrb[0].mxu0
  %v1747 = vpop.f32.mrb[0].mxu0
  %1748 = vdwg.mxu0
  %v1749 = vadd.f32 %v1612, %v1712
  %v1750 = vadd.f32 %v1615, %v1715
  %v1751 = vadd.f32 %v1620, %v1720
  %v1752 = vadd.f32 %v1623, %v1723
  %v1753 = vadd.f32 %v1628, %v1728
  %v1754 = vadd.f32 %v1631, %v1731
  %v1755 = vadd.f32 %v1636, %v1736
  %v1756 = vadd.f32 %v1639, %v1739
  %v1757 = vadd.f32 %v1644, %v1744
  %v1758 = vpack.c.bf16 %v1235, %v1230
  %v1759 = vpack.c.bf16 %v1243, %v1238
  %v1760 = vpack.c.bf16 %v1251, %v1246
  %v1761 = vpack.c.bf16 %v1259, %v1254
  %v1762 = vpack.c.bf16 %v1262, %v1262
  %v1763 = vld [vmem:[%s5 + $0x18] sm:$0xf]
  %v1764 = vld [vmem:[%s5 + $0x1c] sm:$0xf]
  %v1767 = vunpack.c.l.b16 %v1763
  %v1768 = vunpack.c.l.b16 %v1764
  %v1769 = vpack.c.b16 %v1768, %v1767
  %v1772 = vsel %vm1468, %v1758, 0
  %v1775 = vsel %vm1468, %v1759, 0
  %v1778 = vsel %vm1468, %v1760, 0
  %v1781 = vsel %vm1468, %v1761, 0
  %v1784 = vsel %vm1468, %v1762, 0
  %1786 = vmatprep.subr.bf16.mxu0 0
  %1787 = vmatpush1.bf16.msra.mxu0 %v1769
  %1788 = vmatprep.subr.bf16.mxu0 0
  %1789 = vmatpush1.bf16.msra.mxu0 0
  %1790 = vmatprep.subr.bf16.mxu0 0
  %1791 = vmatpush1.bf16.msra.mxu0 0
  %1792 = vmatprep.subr.bf16.mxu0 0
  %1793 = vmatpush1.bf16.msra.mxu0 0
  %1794 = vmatprep.subr.bf16.mxu0 0
  %1795 = vmatpush1.bf16.msra.mxu0 0
  %1796 = vmatprep.subr.bf16.mxu0 0
  %1797 = vmatpush1.bf16.msra.mxu0 0
  %1798 = vmatprep.subr.bf16.mxu0 0
  %1799 = vmatpush1.bf16.msra.mxu0 0
  %1800 = vmatprep.subr.bf16.mxu0 0
  %1801 = vmatpush1.bf16.msra.mxu0 0
  %1802 = vmatprep.subr.bf16.mxu0 0
  %1803 = vmatpush1.bf16.msra.mxu0 0
  %1804 = vmatprep.subr.bf16.mxu0 0
  %1805 = vmatpush1.bf16.msra.mxu0 0
  %1806 = vmatprep.subr.bf16.mxu0 0
  %1807 = vmatpush1.bf16.msra.mxu0 0
  %1808 = vmatprep.subr.bf16.mxu0 0
  %1809 = vmatpush1.bf16.msra.mxu0 0
  %1810 = vmatprep.subr.bf16.mxu0 0
  %1811 = vmatpush1.bf16.msra.mxu0 0
  %1812 = vmatprep.subr.bf16.mxu0 0
  %1813 = vmatpush1.bf16.msra.mxu0 0
  %1814 = vmatprep.subr.bf16.mxu0 0
  %1815 = vmatpush1.bf16.msra.mxu0 0
  %1816 = vmatprep.subr.bf16.mxu0 0
  %1817 = vmatpush1.bf16.msra.mxu0 0
  %1818 = vmatprep.mubr.bf16.mxu0 0
  %1819 = vmatmul.mubr.bf16.gmra.mrb[0].mxu0 %v1772
  %v1820 = vpop.f32.mrb[0].mxu0
  %v1821 = vadd.f32 0.0, %v1820
  %v1822 = vpop.f32.mrb[0].mxu0
  %v1823 = vpop.f32.mrb[0].mxu0
  %v1824 = vadd.f32 0.0, %v1823
  %v1825 = vpop.f32.mrb[0].mxu0
  %1826 = vmatprep.mubr.bf16.mxu0 0
  %1827 = vmatmul.mubr.bf16.gmra.mrb[0].mxu0 %v1775
  %v1828 = vpop.f32.mrb[0].mxu0
  %v1829 = vadd.f32 0.0, %v1828
  %v1830 = vpop.f32.mrb[0].mxu0
  %v1831 = vpop.f32.mrb[0].mxu0
  %v1832 = vadd.f32 0.0, %v1831
  %v1833 = vpop.f32.mrb[0].mxu0
  %1834 = vmatprep.mubr.bf16.mxu0 0
  %1835 = vmatmul.mubr.bf16.gmra.mrb[0].mxu0 %v1778
  %v1836 = vpop.f32.mrb[0].mxu0
  %v1837 = vadd.f32 0.0, %v1836
  %v1838 = vpop.f32.mrb[0].mxu0
  %v1839 = vpop.f32.mrb[0].mxu0
  %v1840 = vadd.f32 0.0, %v1839
  %v1841 = vpop.f32.mrb[0].mxu0
  %1842 = vmatprep.mubr.bf16.mxu0 0
  %1843 = vmatmul.mubr.bf16.gmra.mrb[0].mxu0 %v1781
  %v1844 = vpop.f32.mrb[0].mxu0
  %v1845 = vadd.f32 0.0, %v1844
  %v1846 = vpop.f32.mrb[0].mxu0
  %v1847 = vpop.f32.mrb[0].mxu0
  %v1848 = vadd.f32 0.0, %v1847
  %v1849 = vpop.f32.mrb[0].mxu0
  %1850 = vmatprep.mubr.bf16.mxu0 0
  %1851 = vmatmul.mubr.bf16.gmra.mrb[0].mxu0 %v1784
  %v1852 = vpop.f32.mrb[0].mxu0
  %v1853 = vadd.f32 0.0, %v1852
  %v1854 = vpop.f32.mrb[0].mxu0
  %v1855 = vpop.f32.mrb[0].mxu0
  %v1856 = vpop.f32.mrb[0].mxu0
  %1857 = vdwg.mxu0
  %v1858 = vadd.f32 %v1749, %v1821
  %v1859 = vadd.f32 %v1750, %v1824
  %v1860 = vadd.f32 %v1751, %v1829
  %v1861 = vadd.f32 %v1752, %v1832
  %v1862 = vadd.f32 %v1753, %v1837
  %v1863 = vadd.f32 %v1754, %v1840
  %v1864 = vadd.f32 %v1755, %v1845
  %v1865 = vadd.f32 %v1756, %v1848
  %v1866 = vadd.f32 %v1757, %v1853
  %v1867 = vpack.c.bf16 %v1270, %v1267
  %v1868 = vpack.c.bf16 %v1278, %v1275
  %v1869 = vpack.c.bf16 %v1286, %v1283
  %v1870 = vpack.c.bf16 %v1294, %v1291
  %v1871 = vpack.c.bf16 %v1299, %v1299
  %v1872 = vld [vmem:[%s5 + $0x20] sm:$0xf]
  %v1873 = vld [vmem:[%s5 + $0x24] sm:$0xf]
  %v1876 = vunpack.c.l.b16 %v1872
  %v1877 = vunpack.c.l.b16 %v1873
  %v1878 = vpack.c.b16 %v1877, %v1876
  %v1881 = vsel %vm1468, %v1867, 0
  %v1884 = vsel %vm1468, %v1868, 0
  %v1887 = vsel %vm1468, %v1869, 0
  %v1890 = vsel %vm1468, %v1870, 0
  %v1893 = vsel %vm1468, %v1871, 0
  %1895 = vmatprep.subr.bf16.mxu0 0
  %1896 = vmatpush1.bf16.msra.mxu0 %v1878
  %1897 = vmatprep.subr.bf16.mxu0 0
  %1898 = vmatpush1.bf16.msra.mxu0 0
  %1899 = vmatprep.subr.bf16.mxu0 0
  %1900 = vmatpush1.bf16.msra.mxu0 0
  %1901 = vmatprep.subr.bf16.mxu0 0
  %1902 = vmatpush1.bf16.msra.mxu0 0
  %1903 = vmatprep.subr.bf16.mxu0 0
  %1904 = vmatpush1.bf16.msra.mxu0 0
  %1905 = vmatprep.subr.bf16.mxu0 0
  %1906 = vmatpush1.bf16.msra.mxu0 0
  %1907 = vmatprep.subr.bf16.mxu0 0
  %1908 = vmatpush1.bf16.msra.mxu0 0
  %1909 = vmatprep.subr.bf16.mxu0 0
  %1910 = vmatpush1.bf16.msra.mxu0 0
  %1911 = vmatprep.subr.bf16.mxu0 0
  %1912 = vmatpush1.bf16.msra.mxu0 0
  %1913 = vmatprep.subr.bf16.mxu0 0
  %1914 = vmatpush1.bf16.msra.mxu0 0
  %1915 = vmatprep.subr.bf16.mxu0 0
  %1916 = vmatpush1.bf16.msra.mxu0 0
  %1917 = vmatprep.subr.bf16.mxu0 0
  %1918 = vmatpush1.bf16.msra.mxu0 0
  %1919 = vmatprep.subr.bf16.mxu0 0
  %1920 = vmatpush1.bf16.msra.mxu0 0
  %1921 = vmatprep.subr.bf16.mxu0 0
  %1922 = vmatpush1.bf16.msra.mxu0 0
  %1923 = vmatprep.subr.bf16.mxu0 0
  %1924 = vmatpush1.bf16.msra.mxu0 0
  %1925 = vmatprep.subr.bf16.mxu0 0
  %1926 = vmatpush1.bf16.msra.mxu0 0
  %1927 = vmatprep.mubr.bf16.mxu0 0
  %1928 = vmatmul.mubr.bf16.gmra.mrb[0].mxu0 %v1881
  %v1929 = vpop.f32.mrb[0].mxu0
  %v1930 = vadd.f32 0.0, %v1929
  %v1931 = vpop.f32.mrb[0].mxu0
  %v1932 = vpop.f32.mrb[0].mxu0
  %v1933 = vadd.f32 0.0, %v1932
  %v1934 = vpop.f32.mrb[0].mxu0
  %1935 = vmatprep.mubr.bf16.mxu0 0
  %1936 = vmatmul.mubr.bf16.gmra.mrb[0].mxu0 %v1884
  %v1937 = vpop.f32.mrb[0].mxu0
  %v1938 = vadd.f32 0.0, %v1937
  %v1939 = vpop.f32.mrb[0].mxu0
  %v1940 = vpop.f32.mrb[0].mxu0
  %v1941 = vadd.f32 0.0, %v1940
  %v1942 = vpop.f32.mrb[0].mxu0
  %1943 = vmatprep.mubr.bf16.mxu0 0
  %1944 = vmatmul.mubr.bf16.gmra.mrb[0].mxu0 %v1887
  %v1945 = vpop.f32.mrb[0].mxu0
  %v1946 = vadd.f32 0.0, %v1945
  %v1947 = vpop.f32.mrb[0].mxu0
  %v1948 = vpop.f32.mrb[0].mxu0
  %v1949 = vadd.f32 0.0, %v1948
  %v1950 = vpop.f32.mrb[0].mxu0
  %1951 = vmatprep.mubr.bf16.mxu0 0
  %1952 = vmatmul.mubr.bf16.gmra.mrb[0].mxu0 %v1890
  %v1953 = vpop.f32.mrb[0].mxu0
  %v1954 = vadd.f32 0.0, %v1953
  %v1955 = vpop.f32.mrb[0].mxu0
  %v1956 = vpop.f32.mrb[0].mxu0
  %v1957 = vadd.f32 0.0, %v1956
  %v1958 = vpop.f32.mrb[0].mxu0
  %1959 = vmatprep.mubr.bf16.mxu0 0
  %1960 = vmatmul.mubr.bf16.gmra.mrb[0].mxu0 %v1893
  %v1961 = vpop.f32.mrb[0].mxu0
  %v1962 = vadd.f32 0.0, %v1961
  %v1963 = vpop.f32.mrb[0].mxu0
  %v1964 = vpop.f32.mrb[0].mxu0
  %v1965 = vpop.f32.mrb[0].mxu0
  %1966 = vdwg.mxu0
  %v1967 = vadd.f32 %v1858, %v1930
  %v1968 = vadd.f32 %v1859, %v1933
  %v1969 = vadd.f32 %v1860, %v1938
  %v1970 = vadd.f32 %v1861, %v1941
  %v1971 = vadd.f32 %v1862, %v1946
  %v1972 = vadd.f32 %v1863, %v1949
  %v1973 = vadd.f32 %v1864, %v1954
  %v1974 = vadd.f32 %v1865, %v1957
  %v1975 = vadd.f32 %v1866, %v1962
  %v1976 = vpack.c.bf16 %v1307, %v1302
  %v1977 = vpack.c.bf16 %v1315, %v1310
  %v1978 = vpack.c.bf16 %v1323, %v1318
  %v1979 = vpack.c.bf16 %v1331, %v1326
  %v1980 = vpack.c.bf16 %v1334, %v1334
  %v1981 = vld [vmem:[%s5 + $0x28] sm:$0xf]
  %v1982 = vld [vmem:[%s5 + $0x2c] sm:$0xf]
  %v1985 = vunpack.c.l.b16 %v1981
  %v1986 = vunpack.c.l.b16 %v1982
  %v1987 = vpack.c.b16 %v1986, %v1985
  %v1990 = vsel %vm1468, %v1976, 0
  %v1993 = vsel %vm1468, %v1977, 0
  %v1996 = vsel %vm1468, %v1978, 0
  %v1999 = vsel %vm1468, %v1979, 0
  %v2002 = vsel %vm1468, %v1980, 0
  %2004 = vmatprep.subr.bf16.mxu0 0
  %2005 = vmatpush1.bf16.msra.mxu0 %v1987
  %2006 = vmatprep.subr.bf16.mxu0 0
  %2007 = vmatpush1.bf16.msra.mxu0 0
  %2008 = vmatprep.subr.bf16.mxu0 0
  %2009 = vmatpush1.bf16.msra.mxu0 0
  %2010 = vmatprep.subr.bf16.mxu0 0
  %2011 = vmatpush1.bf16.msra.mxu0 0
  %2012 = vmatprep.subr.bf16.mxu0 0
  %2013 = vmatpush1.bf16.msra.mxu0 0
  %2014 = vmatprep.subr.bf16.mxu0 0
  %2015 = vmatpush1.bf16.msra.mxu0 0
  %2016 = vmatprep.subr.bf16.mxu0 0
  %2017 = vmatpush1.bf16.msra.mxu0 0
  %2018 = vmatprep.subr.bf16.mxu0 0
  %2019 = vmatpush1.bf16.msra.mxu0 0
  %2020 = vmatprep.subr.bf16.mxu0 0
  %2021 = vmatpush1.bf16.msra.mxu0 0
  %2022 = vmatprep.subr.bf16.mxu0 0
  %2023 = vmatpush1.bf16.msra.mxu0 0
  %2024 = vmatprep.subr.bf16.mxu0 0
  %2025 = vmatpush1.bf16.msra.mxu0 0
  %2026 = vmatprep.subr.bf16.mxu0 0
  %2027 = vmatpush1.bf16.msra.mxu0 0
  %2028 = vmatprep.subr.bf16.mxu0 0
  %2029 = vmatpush1.bf16.msra.mxu0 0
  %2030 = vmatprep.subr.bf16.mxu0 0
  %2031 = vmatpush1.bf16.msra.mxu0 0
  %2032 = vmatprep.subr.bf16.mxu0 0
  %2033 = vmatpush1.bf16.msra.mxu0 0
  %2034 = vmatprep.subr.bf16.mxu0 0
  %2035 = vmatpush1.bf16.msra.mxu0 0
  %2036 = vmatprep.mubr.bf16.mxu0 0
  %2037 = vmatmul.mubr.bf16.gmra.mrb[0].mxu0 %v1990
  %v2038 = vpop.f32.mrb[0].mxu0
  %v2039 = vadd.f32 0.0, %v2038
  %v2040 = vpop.f32.mrb[0].mxu0
  %v2041 = vpop.f32.mrb[0].mxu0
  %v2042 = vadd.f32 0.0, %v2041
  %v2043 = vpop.f32.mrb[0].mxu0
  %2044 = vmatprep.mubr.bf16.mxu0 0
  %2045 = vmatmul.mubr.bf16.gmra.mrb[0].mxu0 %v1993
  %v2046 = vpop.f32.mrb[0].mxu0
  %v2047 = vadd.f32 0.0, %v2046
  %v2048 = vpop.f32.mrb[0].mxu0
  %v2049 = vpop.f32.mrb[0].mxu0
  %v2050 = vadd.f32 0.0, %v2049
  %v2051 = vpop.f32.mrb[0].mxu0
  %2052 = vmatprep.mubr.bf16.mxu0 0
  %2053 = vmatmul.mubr.bf16.gmra.mrb[0].mxu0 %v1996
  %v2054 = vpop.f32.mrb[0].mxu0
  %v2055 = vadd.f32 0.0, %v2054
  %v2056 = vpop.f32.mrb[0].mxu0
  %v2057 = vpop.f32.mrb[0].mxu0
  %v2058 = vadd.f32 0.0, %v2057
  %v2059 = vpop.f32.mrb[0].mxu0
  %2060 = vmatprep.mubr.bf16.mxu0 0
  %2061 = vmatmul.mubr.bf16.gmra.mrb[0].mxu0 %v1999
  %v2062 = vpop.f32.mrb[0].mxu0
  %v2063 = vadd.f32 0.0, %v2062
  %v2064 = vpop.f32.mrb[0].mxu0
  %v2065 = vpop.f32.mrb[0].mxu0
  %v2066 = vadd.f32 0.0, %v2065
  %v2067 = vpop.f32.mrb[0].mxu0
  %2068 = vmatprep.mubr.bf16.mxu0 0
  %2069 = vmatmul.mubr.bf16.gmra.mrb[0].mxu0 %v2002
  %v2070 = vpop.f32.mrb[0].mxu0
  %v2071 = vadd.f32 0.0, %v2070
  %v2072 = vpop.f32.mrb[0].mxu0
  %v2073 = vpop.f32.mrb[0].mxu0
  %v2074 = vpop.f32.mrb[0].mxu0
  %2075 = vdwg.mxu0
  %v2076 = vadd.f32 %v1967, %v2039
  %v2077 = vadd.f32 %v1968, %v2042
  %v2078 = vadd.f32 %v1969, %v2047
  %v2079 = vadd.f32 %v1970, %v2050
  %v2080 = vadd.f32 %v1971, %v2055
  %v2081 = vadd.f32 %v1972, %v2058
  %v2082 = vadd.f32 %v1973, %v2063
  %v2083 = vadd.f32 %v1974, %v2066
  %v2084 = vadd.f32 %v1975, %v2071
  %v2085 = vpack.c.bf16 %v1342, %v1339
  %v2086 = vpack.c.bf16 %v1350, %v1347
  %v2087 = vpack.c.bf16 %v1358, %v1355
  %v2088 = vpack.c.bf16 %v1366, %v1363
  %v2089 = vpack.c.bf16 %v1371, %v1371
  %v2090 = vld [vmem:[%s5 + $0x30] sm:$0xf]
  %v2091 = vld [vmem:[%s5 + $0x34] sm:$0xf]
  %v2094 = vunpack.c.l.b16 %v2090
  %v2095 = vunpack.c.l.b16 %v2091
  %v2096 = vpack.c.b16 %v2095, %v2094
  %v2099 = vsel %vm1468, %v2085, 0
  %v2102 = vsel %vm1468, %v2086, 0
  %v2105 = vsel %vm1468, %v2087, 0
  %v2108 = vsel %vm1468, %v2088, 0
  %v2111 = vsel %vm1468, %v2089, 0
  %2113 = vmatprep.subr.bf16.mxu0 0
  %2114 = vmatpush1.bf16.msra.mxu0 %v2096
  %2115 = vmatprep.subr.bf16.mxu0 0
  %2116 = vmatpush1.bf16.msra.mxu0 0
  %2117 = vmatprep.subr.bf16.mxu0 0
  %2118 = vmatpush1.bf16.msra.mxu0 0
  %2119 = vmatprep.subr.bf16.mxu0 0
  %2120 = vmatpush1.bf16.msra.mxu0 0
  %2121 = vmatprep.subr.bf16.mxu0 0
  %2122 = vmatpush1.bf16.msra.mxu0 0
  %2123 = vmatprep.subr.bf16.mxu0 0
  %2124 = vmatpush1.bf16.msra.mxu0 0
  %2125 = vmatprep.subr.bf16.mxu0 0
  %2126 = vmatpush1.bf16.msra.mxu0 0
  %2127 = vmatprep.subr.bf16.mxu0 0
  %2128 = vmatpush1.bf16.msra.mxu0 0
  %2129 = vmatprep.subr.bf16.mxu0 0
  %2130 = vmatpush1.bf16.msra.mxu0 0
  %2131 = vmatprep.subr.bf16.mxu0 0
  %2132 = vmatpush1.bf16.msra.mxu0 0
  %2133 = vmatprep.subr.bf16.mxu0 0
  %2134 = vmatpush1.bf16.msra.mxu0 0
  %2135 = vmatprep.subr.bf16.mxu0 0
  %2136 = vmatpush1.bf16.msra.mxu0 0
  %2137 = vmatprep.subr.bf16.mxu0 0
  %2138 = vmatpush1.bf16.msra.mxu0 0
  %2139 = vmatprep.subr.bf16.mxu0 0
  %2140 = vmatpush1.bf16.msra.mxu0 0
  %2141 = vmatprep.subr.bf16.mxu0 0
  %2142 = vmatpush1.bf16.msra.mxu0 0
  %2143 = vmatprep.subr.bf16.mxu0 0
  %2144 = vmatpush1.bf16.msra.mxu0 0
  %2145 = vmatprep.mubr.bf16.mxu0 0
  %2146 = vmatmul.mubr.bf16.gmra.mrb[0].mxu0 %v2099
  %v2147 = vpop.f32.mrb[0].mxu0
  %v2148 = vadd.f32 0.0, %v2147
  %v2149 = vpop.f32.mrb[0].mxu0
  %v2150 = vpop.f32.mrb[0].mxu0
  %v2151 = vadd.f32 0.0, %v2150
  %v2152 = vpop.f32.mrb[0].mxu0
  %2153 = vmatprep.mubr.bf16.mxu0 0
  %2154 = vmatmul.mubr.bf16.gmra.mrb[0].mxu0 %v2102
  %v2155 = vpop.f32.mrb[0].mxu0
  %v2156 = vadd.f32 0.0, %v2155
  %v2157 = vpop.f32.mrb[0].mxu0
  %v2158 = vpop.f32.mrb[0].mxu0
  %v2159 = vadd.f32 0.0, %v2158
  %v2160 = vpop.f32.mrb[0].mxu0
  %2161 = vmatprep.mubr.bf16.mxu0 0
  %2162 = vmatmul.mubr.bf16.gmra.mrb[0].mxu0 %v2105
  %v2163 = vpop.f32.mrb[0].mxu0
  %v2164 = vadd.f32 0.0, %v2163
  %v2165 = vpop.f32.mrb[0].mxu0
  %v2166 = vpop.f32.mrb[0].mxu0
  %v2167 = vadd.f32 0.0, %v2166
  %v2168 = vpop.f32.mrb[0].mxu0
  %2169 = vmatprep.mubr.bf16.mxu0 0
  %2170 = vmatmul.mubr.bf16.gmra.mrb[0].mxu0 %v2108
  %v2171 = vpop.f32.mrb[0].mxu0
  %v2172 = vadd.f32 0.0, %v2171
  %v2173 = vpop.f32.mrb[0].mxu0
  %v2174 = vpop.f32.mrb[0].mxu0
  %v2175 = vadd.f32 0.0, %v2174
  %v2176 = vpop.f32.mrb[0].mxu0
  %2177 = vmatprep.mubr.bf16.mxu0 0
  %2178 = vmatmul.mubr.bf16.gmra.mrb[0].mxu0 %v2111
  %v2179 = vpop.f32.mrb[0].mxu0
  %v2180 = vadd.f32 0.0, %v2179
  %v2181 = vpop.f32.mrb[0].mxu0
  %v2182 = vpop.f32.mrb[0].mxu0
  %v2183 = vpop.f32.mrb[0].mxu0
  %2184 = vdwg.mxu0
  %v2185 = vadd.f32 %v2076, %v2148
  %v2186 = vadd.f32 %v2077, %v2151
  %v2187 = vadd.f32 %v2078, %v2156
  %v2188 = vadd.f32 %v2079, %v2159
  %v2189 = vadd.f32 %v2080, %v2164
  %v2190 = vadd.f32 %v2081, %v2167
  %v2191 = vadd.f32 %v2082, %v2172
  %v2192 = vadd.f32 %v2083, %v2175
  %v2193 = vadd.f32 %v2084, %v2180
  %v2194 = vpack.c.bf16 %v1379, %v1374
  %v2195 = vpack.c.bf16 %v1387, %v1382
  %v2196 = vpack.c.bf16 %v1395, %v1390
  %v2197 = vpack.c.bf16 %v1403, %v1398
  %v2198 = vpack.c.bf16 %v1406, %v1406
  %v2199 = vld [vmem:[%s5 + $0x38] sm:$0xf]
  %v2200 = vld [vmem:[%s5 + $0x3c] sm:$0xf]
  %v2203 = vunpack.c.l.b16 %v2199
  %v2204 = vunpack.c.l.b16 %v2200
  %v2205 = vpack.c.b16 %v2204, %v2203
  %v2208 = vsel %vm1468, %v2194, 0
  %v2211 = vsel %vm1468, %v2195, 0
  %v2214 = vsel %vm1468, %v2196, 0
  %v2217 = vsel %vm1468, %v2197, 0
  %v2220 = vsel %vm1468, %v2198, 0
  %2222 = vmatprep.subr.bf16.mxu0 0
  %2223 = vmatpush1.bf16.msra.mxu0 %v2205
  %2224 = vmatprep.subr.bf16.mxu0 0
  %2225 = vmatpush1.bf16.msra.mxu0 0
  %2226 = vmatprep.subr.bf16.mxu0 0
  %2227 = vmatpush1.bf16.msra.mxu0 0
  %2228 = vmatprep.subr.bf16.mxu0 0
  %2229 = vmatpush1.bf16.msra.mxu0 0
  %2230 = vmatprep.subr.bf16.mxu0 0
  %2231 = vmatpush1.bf16.msra.mxu0 0
  %2232 = vmatprep.subr.bf16.mxu0 0
  %2233 = vmatpush1.bf16.msra.mxu0 0
  %2234 = vmatprep.subr.bf16.mxu0 0
  %2235 = vmatpush1.bf16.msra.mxu0 0
  %2236 = vmatprep.subr.bf16.mxu0 0
  %2237 = vmatpush1.bf16.msra.mxu0 0
  %2238 = vmatprep.subr.bf16.mxu0 0
  %2239 = vmatpush1.bf16.msra.mxu0 0
  %2240 = vmatprep.subr.bf16.mxu0 0
  %2241 = vmatpush1.bf16.msra.mxu0 0
  %2242 = vmatprep.subr.bf16.mxu0 0
  %2243 = vmatpush1.bf16.msra.mxu0 0
  %2244 = vmatprep.subr.bf16.mxu0 0
  %2245 = vmatpush1.bf16.msra.mxu0 0
  %2246 = vmatprep.subr.bf16.mxu0 0
  %2247 = vmatpush1.bf16.msra.mxu0 0
  %2248 = vmatprep.subr.bf16.mxu0 0
  %2249 = vmatpush1.bf16.msra.mxu0 0
  %2250 = vmatprep.subr.bf16.mxu0 0
  %2251 = vmatpush1.bf16.msra.mxu0 0
  %2252 = vmatprep.subr.bf16.mxu0 0
  %2253 = vmatpush1.bf16.msra.mxu0 0
  %2254 = vmatprep.mubr.bf16.mxu0 0
  %2255 = vmatmul.mubr.bf16.gmra.mrb[0].mxu0 %v2208
  %v2256 = vpop.f32.mrb[0].mxu0
  %v2257 = vadd.f32 0.0, %v2256
  %v2258 = vpop.f32.mrb[0].mxu0
  %v2259 = vpop.f32.mrb[0].mxu0
  %v2260 = vadd.f32 0.0, %v2259
  %v2261 = vpop.f32.mrb[0].mxu0
  %2262 = vmatprep.mubr.bf16.mxu0 0
  %2263 = vmatmul.mubr.bf16.gmra.mrb[0].mxu0 %v2211
  %v2264 = vpop.f32.mrb[0].mxu0
  %v2265 = vadd.f32 0.0, %v2264
  %v2266 = vpop.f32.mrb[0].mxu0
  %v2267 = vpop.f32.mrb[0].mxu0
  %v2268 = vadd.f32 0.0, %v2267
  %v2269 = vpop.f32.mrb[0].mxu0
  %2270 = vmatprep.mubr.bf16.mxu0 0
  %2271 = vmatmul.mubr.bf16.gmra.mrb[0].mxu0 %v2214
  %v2272 = vpop.f32.mrb[0].mxu0
  %v2273 = vadd.f32 0.0, %v2272
  %v2274 = vpop.f32.mrb[0].mxu0
  %v2275 = vpop.f32.mrb[0].mxu0
  %v2276 = vadd.f32 0.0, %v2275
  %v2277 = vpop.f32.mrb[0].mxu0
  %2278 = vmatprep.mubr.bf16.mxu0 0
  %2279 = vmatmul.mubr.bf16.gmra.mrb[0].mxu0 %v2217
  %v2280 = vpop.f32.mrb[0].mxu0
  %v2281 = vadd.f32 0.0, %v2280
  %v2282 = vpop.f32.mrb[0].mxu0
  %v2283 = vpop.f32.mrb[0].mxu0
  %v2284 = vadd.f32 0.0, %v2283
  %v2285 = vpop.f32.mrb[0].mxu0
  %2286 = vmatprep.mubr.bf16.mxu0 0
  %2287 = vmatmul.mubr.bf16.gmra.mrb[0].mxu0 %v2220
  %v2288 = vpop.f32.mrb[0].mxu0
  %v2289 = vadd.f32 0.0, %v2288
  %v2290 = vpop.f32.mrb[0].mxu0
  %v2291 = vpop.f32.mrb[0].mxu0
  %v2292 = vpop.f32.mrb[0].mxu0
  %2293 = vdwg.mxu0
  %v2294 = vadd.f32 %v2185, %v2257
  %v2295 = vadd.f32 %v2186, %v2260
  %v2296 = vadd.f32 %v2187, %v2265
  %v2297 = vadd.f32 %v2188, %v2268
  %v2298 = vadd.f32 %v2189, %v2273
  %v2299 = vadd.f32 %v2190, %v2276
  %v2300 = vadd.f32 %v2191, %v2281
  %v2301 = vadd.f32 %v2192, %v2284
  %v2302 = vadd.f32 %v2193, %v2289
  %v2303 = vpack.c.bf16 %v1414, %v1411
  %v2304 = vpack.c.bf16 %v1422, %v1419
  %v2305 = vpack.c.bf16 %v1430, %v1427
  %v2306 = vpack.c.bf16 %v1438, %v1435
  %v2307 = vpack.c.bf16 %v1443, %v1443
  %v2308 = vld [vmem:[%s5 + $0x40] sm:$0xf]
  %v2309 = vld [vmem:[%s5 + $0x44] sm:$0xf]
  %v2312 = vunpack.c.l.b16 %v2308
  %v2313 = vunpack.c.l.b16 %v2309
  %v2314 = vpack.c.b16 %v2313, %v2312
  %v2317 = vsel %vm1468, %v2303, 0
  %v2320 = vsel %vm1468, %v2304, 0
  %v2323 = vsel %vm1468, %v2305, 0
  %v2326 = vsel %vm1468, %v2306, 0
  %v2329 = vsel %vm1468, %v2307, 0
  %2331 = vmatprep.subr.bf16.mxu0 0
  %2332 = vmatpush1.bf16.msra.mxu0 %v2314
  %2333 = vmatprep.subr.bf16.mxu0 0
  %2334 = vmatpush1.bf16.msra.mxu0 0
  %2335 = vmatprep.subr.bf16.mxu0 0
  %2336 = vmatpush1.bf16.msra.mxu0 0
  %2337 = vmatprep.subr.bf16.mxu0 0
  %2338 = vmatpush1.bf16.msra.mxu0 0
  %2339 = vmatprep.subr.bf16.mxu0 0
  %2340 = vmatpush1.bf16.msra.mxu0 0
  %2341 = vmatprep.subr.bf16.mxu0 0
  %2342 = vmatpush1.bf16.msra.mxu0 0
  %2343 = vmatprep.subr.bf16.mxu0 0
  %2344 = vmatpush1.bf16.msra.mxu0 0
  %2345 = vmatprep.subr.bf16.mxu0 0
  %2346 = vmatpush1.bf16.msra.mxu0 0
  %2347 = vmatprep.subr.bf16.mxu0 0
  %2348 = vmatpush1.bf16.msra.mxu0 0
  %2349 = vmatprep.subr.bf16.mxu0 0
  %2350 = vmatpush1.bf16.msra.mxu0 0
  %2351 = vmatprep.subr.bf16.mxu0 0
  %2352 = vmatpush1.bf16.msra.mxu0 0
  %2353 = vmatprep.subr.bf16.mxu0 0
  %2354 = vmatpush1.bf16.msra.mxu0 0
  %2355 = vmatprep.subr.bf16.mxu0 0
  %2356 = vmatpush1.bf16.msra.mxu0 0
  %2357 = vmatprep.subr.bf16.mxu0 0
  %2358 = vmatpush1.bf16.msra.mxu0 0
  %2359 = vmatprep.subr.bf16.mxu0 0
  %2360 = vmatpush1.bf16.msra.mxu0 0
  %2361 = vmatprep.subr.bf16.mxu0 0
  %2362 = vmatpush1.bf16.msra.mxu0 0
  %2363 = vmatprep.mubr.bf16.mxu0 0
  %2364 = vmatmul.mubr.bf16.gmra.mrb[0].mxu0 %v2317
  %v2365 = vpop.f32.mrb[0].mxu0
  %v2366 = vadd.f32 0.0, %v2365
  %v2367 = vpop.f32.mrb[0].mxu0
  %v2368 = vpop.f32.mrb[0].mxu0
  %v2369 = vadd.f32 0.0, %v2368
  %v2370 = vpop.f32.mrb[0].mxu0
  %2371 = vmatprep.mubr.bf16.mxu0 0
  %2372 = vmatmul.mubr.bf16.gmra.mrb[0].mxu0 %v2320
  %v2373 = vpop.f32.mrb[0].mxu0
  %v2374 = vadd.f32 0.0, %v2373
  %v2375 = vpop.f32.mrb[0].mxu0
  %v2376 = vpop.f32.mrb[0].mxu0
  %v2377 = vadd.f32 0.0, %v2376
  %v2378 = vpop.f32.mrb[0].mxu0
  %2379 = vmatprep.mubr.bf16.mxu0 0
  %2380 = vmatmul.mubr.bf16.gmra.mrb[0].mxu0 %v2323
  %v2381 = vpop.f32.mrb[0].mxu0
  %v2382 = vadd.f32 0.0, %v2381
  %v2383 = vpop.f32.mrb[0].mxu0
  %v2384 = vpop.f32.mrb[0].mxu0
  %v2385 = vadd.f32 0.0, %v2384
  %v2386 = vpop.f32.mrb[0].mxu0
  %2387 = vmatprep.mubr.bf16.mxu0 0
  %2388 = vmatmul.mubr.bf16.gmra.mrb[0].mxu0 %v2326
  %v2389 = vpop.f32.mrb[0].mxu0
  %v2390 = vadd.f32 0.0, %v2389
  %v2391 = vpop.f32.mrb[0].mxu0
  %v2392 = vpop.f32.mrb[0].mxu0
  %v2393 = vadd.f32 0.0, %v2392
  %v2394 = vpop.f32.mrb[0].mxu0
  %2395 = vmatprep.mubr.bf16.mxu0 0
  %2396 = vmatmul.mubr.bf16.gmra.mrb[0].mxu0 %v2329
  %v2397 = vpop.f32.mrb[0].mxu0
  %v2398 = vadd.f32 0.0, %v2397
  %v2399 = vpop.f32.mrb[0].mxu0
  %v2400 = vpop.f32.mrb[0].mxu0
  %v2401 = vpop.f32.mrb[0].mxu0
  %2402 = vdwg.mxu0
  %v2403 = vadd.f32 %v2294, %v2366
  %v2404 = vadd.f32 %v2295, %v2369
  %v2405 = vadd.f32 %v2296, %v2374
  %v2406 = vadd.f32 %v2297, %v2377
  %v2407 = vadd.f32 %v2298, %v2382
  %v2408 = vadd.f32 %v2299, %v2385
  %v2409 = vadd.f32 %v2300, %v2390
  %v2410 = vadd.f32 %v2301, %v2393
  %v2411 = vadd.f32 %v2302, %v2398
  %v2412 = vld [vmem:[%s6] sm:$0x1]
  %v2413 = vlaneseq
  %v2414 = vshrl.u32 %v2413, 7
  %v2415 = vsub.s32 0, %v2414
  %v2416 = vrot.slane %v2412, %v2415
  %v2417 = vmul.f32 %v2403, %v2416
  %v2418 = vmul.f32 %v2404, %v2416
  %v2419 = vmul.f32 %v2405, %v2416
  %v2420 = vmul.f32 %v2406, %v2416
  %v2421 = vmul.f32 %v2407, %v2416
  %v2422 = vmul.f32 %v2408, %v2416
  %v2423 = vmul.f32 %v2409, %v2416
  %v2424 = vmul.f32 %v2410, %v2416
  %v2425 = vmul.f32 %v2411, %v2416
  %v2426 = vld [vmem:[%s6 + $0x1] sm:$0x1]
  %v2427 = vlaneseq
  %v2428 = vshrl.u32 %v2427, 7
  %v2429 = vsub.s32 0, %v2428
  %v2430 = vrot.slane %v2426, %v2429
  %v2431 = vadd.f32 %v2417, %v2430
  %v2432 = vadd.f32 %v2418, %v2430
  %v2433 = vadd.f32 %v2419, %v2430
  %v2434 = vadd.f32 %v2420, %v2430
  %v2435 = vadd.f32 %v2421, %v2430
  %v2436 = vadd.f32 %v2422, %v2430
  %v2437 = vadd.f32 %v2423, %v2430
  %v2438 = vadd.f32 %v2424, %v2430
  %v2439 = vadd.f32 %v2425, %v2430
  %v2440 = vmax.f32 %v2431, 0.0
  %v2441 = vmax.f32 %v2432, 0.0
  %v2442 = vmax.f32 %v2433, 0.0
  %v2443 = vmax.f32 %v2434, 0.0
  %v2444 = vmax.f32 %v2435, 0.0
  %v2445 = vmax.f32 %v2436, 0.0
  %v2446 = vmax.f32 %v2437, 0.0
  %v2447 = vmax.f32 %v2438, 0.0
  %v2448 = vmax.f32 %v2439, 0.0
  %v2449 = vpack.c.bf16 %v2441, %v2440
  %v2450 = vpack.c.bf16 %v2443, %v2442
  %v2451 = vpack.c.bf16 %v2445, %v2444
  %v2452 = vpack.c.bf16 %v2447, %v2446
  %v2453 = vpack.c.bf16 %v2448, %v2448
  %v2454 = vld [vmem:[%s7] sm:$0xf]
  %v2455 = vld [vmem:[%s7 + $0x4] sm:$0xf]
  %v2456 = vld [vmem:[%s7 + $0x8] sm:$0xf]
  %v2457 = vld [vmem:[%s7 + $0xc] sm:$0xf]
  %v2458 = vld [vmem:[%s7 + $0x10] sm:$0xf]
  %v2459 = vld [vmem:[%s7 + $0x14] sm:$0xf]
  %v2460 = vld [vmem:[%s7 + $0x18] sm:$0xf]
  %v2461 = vld [vmem:[%s7 + $0x1c] sm:$0xf]
  %v2462 = vld [vmem:[%s7 + $0x20] sm:$0xf]
  %v2463 = vld [vmem:[%s7 + $0x24] sm:$0xf]
  %v2464 = vld [vmem:[%s7 + $0x28] sm:$0xf]
  %v2465 = vld [vmem:[%s7 + $0x2c] sm:$0xf]
  %v2466 = vld [vmem:[%s7 + $0x30] sm:$0xf]
  %v2467 = vld [vmem:[%s7 + $0x34] sm:$0xf]
  %v2468 = vld [vmem:[%s7 + $0x38] sm:$0xf]
  %v2469 = vld [vmem:[%s7 + $0x3c] sm:$0xf]
  %v2470 = vld [vmem:[%s7 + $0x40] sm:$0xf]
  %v2471 = vld [vmem:[%s7 + $0x44] sm:$0xf]
  %v2472 = vld [vmem:[%s7 + $0x48] sm:$0xf]
  %v2473 = vld [vmem:[%s7 + $0x4c] sm:$0xf]
  %v2474 = vld [vmem:[%s7 + $0x50] sm:$0xf]
  %v2475 = vld [vmem:[%s7 + $0x54] sm:$0xf]
  %v2476 = vld [vmem:[%s7 + $0x58] sm:$0xf]
  %v2477 = vld [vmem:[%s7 + $0x5c] sm:$0xf]
  %v2478 = vld [vmem:[%s7 + $0x60] sm:$0xf]
  %v2479 = vld [vmem:[%s7 + $0x64] sm:$0xf]
  %v2480 = vld [vmem:[%s7 + $0x68] sm:$0xf]
  %v2481 = vld [vmem:[%s7 + $0x6c] sm:$0xf]
  %v2482 = vld [vmem:[%s7 + $0x70] sm:$0xf]
  %v2483 = vld [vmem:[%s7 + $0x74] sm:$0xf]
  %v2484 = vld [vmem:[%s7 + $0x78] sm:$0xf]
  %v2485 = vld [vmem:[%s7 + $0x7c] sm:$0xf]
  %v2486 = vld [vmem:[%s7 + $0x80] sm:$0xf]
  %v2487 = vld [vmem:[%s7 + $0x84] sm:$0xf]
  %v2488 = vld [vmem:[%s7 + $0x88] sm:$0xf]
  %v2489 = vld [vmem:[%s7 + $0x8c] sm:$0xf]
  %v2526 = vunpack.c.l.b16 %v2454
  %v2527 = vunpack.c.l.b16 %v2455
  %v2528 = vunpack.c.l.b16 %v2456
  %v2529 = vunpack.c.l.b16 %v2457
  %v2530 = vunpack.c.l.b16 %v2458
  %v2531 = vunpack.c.l.b16 %v2459
  %v2532 = vunpack.c.l.b16 %v2460
  %v2533 = vunpack.c.l.b16 %v2461
  %v2534 = vunpack.c.l.b16 %v2462
  %v2535 = vunpack.c.l.b16 %v2463
  %v2536 = vunpack.c.l.b16 %v2464
  %v2537 = vunpack.c.l.b16 %v2465
  %v2538 = vunpack.c.l.b16 %v2466
  %v2539 = vunpack.c.l.b16 %v2467
  %v2540 = vunpack.c.l.b16 %v2468
  %v2541 = vunpack.c.l.b16 %v2469
  %v2542 = vunpack.c.l.b16 %v2470
  %v2543 = vunpack.c.l.b16 %v2471
  %v2544 = vunpack.c.l.b16 %v2472
  %v2545 = vunpack.c.l.b16 %v2473
  %v2546 = vunpack.c.l.b16 %v2474
  %v2547 = vunpack.c.l.b16 %v2475
  %v2548 = vunpack.c.l.b16 %v2476
  %v2549 = vunpack.c.l.b16 %v2477
  %v2550 = vunpack.c.l.b16 %v2478
  %v2551 = vunpack.c.l.b16 %v2479
  %v2552 = vunpack.c.l.b16 %v2480
  %v2553 = vunpack.c.l.b16 %v2481
  %v2554 = vunpack.c.l.b16 %v2482
  %v2555 = vunpack.c.l.b16 %v2483
  %v2556 = vunpack.c.l.b16 %v2484
  %v2557 = vunpack.c.l.b16 %v2485
  %v2558 = vunpack.c.l.b16 %v2486
  %v2559 = vunpack.c.l.b16 %v2487
  %v2560 = vunpack.c.l.b16 %v2488
  %v2561 = vunpack.c.l.b16 %v2489
  %v2562 = vpack.c.b16 %v2527, %v2526
  %v2563 = vpack.c.b16 %v2529, %v2528
  %v2564 = vpack.c.b16 %v2531, %v2530
  %v2565 = vpack.c.b16 %v2533, %v2532
  %v2566 = vpack.c.b16 %v2535, %v2534
  %v2567 = vpack.c.b16 %v2537, %v2536
  %v2568 = vpack.c.b16 %v2539, %v2538
  %v2569 = vpack.c.b16 %v2541, %v2540
  %v2570 = vpack.c.b16 %v2543, %v2542
  %v2571 = vpack.c.b16 %v2545, %v2544
  %v2572 = vpack.c.b16 %v2547, %v2546
  %v2573 = vpack.c.b16 %v2549, %v2548
  %v2574 = vpack.c.b16 %v2551, %v2550
  %v2575 = vpack.c.b16 %v2553, %v2552
  %v2576 = vpack.c.b16 %v2555, %v2554
  %v2577 = vpack.c.b16 %v2557, %v2556
  %v2578 = vpack.c.b16 %v2559, %v2558
  %v2579 = vpack.c.b16 %v2561, %v2560
  %vm2580 = vcmask 588800
  %v2582 = vsel %vm2580, %v2562, 0
  %v2585 = vsel %vm2580, %v2563, 0
  %v2588 = vsel %vm2580, %v2564, 0
  %v2591 = vsel %vm2580, %v2565, 0
  %v2594 = vsel %vm2580, %v2566, 0
  %v2597 = vsel %vm2580, %v2567, 0
  %v2600 = vsel %vm2580, %v2568, 0
  %v2603 = vsel %vm2580, %v2569, 0
  %v2606 = vsel %vm2580, %v2570, 0
  %v2609 = vsel %vm2580, %v2571, 0
  %v2612 = vsel %vm2580, %v2572, 0
  %v2615 = vsel %vm2580, %v2573, 0
  %v2618 = vsel %vm2580, %v2574, 0
  %v2621 = vsel %vm2580, %v2575, 0
  %v2624 = vsel %vm2580, %v2576, 0
  %v2627 = vsel %vm2580, %v2577, 0
  %v2630 = vsel %vm2580, %v2578, 0
  %v2633 = vsel %vm2580, %v2579, 0
  %v2636 = vsel %vm1084, %v2453, 0
  %2638 = vmatprep.subr.bf16.mxu0 0
  %2639 = vmatpush1.bf16.msra.mxu0 %v2449
  %2640 = vmatprep.subr.bf16.mxu0 0
  %2641 = vmatpush1.bf16.msra.mxu0 %v2450
  %2642 = vmatprep.subr.bf16.mxu0 0
  %2643 = vmatpush1.bf16.msra.mxu0 %v2451
  %2644 = vmatprep.subr.bf16.mxu0 0
  %2645 = vmatpush1.bf16.msra.mxu0 %v2452
  %2646 = vmatprep.subr.bf16.mxu0 0
  %2647 = vmatpush1.bf16.msra.mxu0 %v2636
  %2648 = vmatprep.subr.bf16.mxu0 0
  %2649 = vmatpush1.bf16.msra.mxu0 0
  %2650 = vmatprep.subr.bf16.mxu0 0
  %2651 = vmatpush1.bf16.msra.mxu0 0
  %2652 = vmatprep.subr.bf16.mxu0 0
  %2653 = vmatpush1.bf16.msra.mxu0 0
  %2654 = vmatprep.subr.bf16.mxu0 0
  %2655 = vmatpush1.bf16.msra.mxu0 0
  %2656 = vmatprep.subr.bf16.mxu0 0
  %2657 = vmatpush1.bf16.msra.mxu0 0
  %2658 = vmatprep.subr.bf16.mxu0 0
  %2659 = vmatpush1.bf16.msra.mxu0 0
  %2660 = vmatprep.subr.bf16.mxu0 0
  %2661 = vmatpush1.bf16.msra.mxu0 0
  %2662 = vmatprep.subr.bf16.mxu0 0
  %2663 = vmatpush1.bf16.msra.mxu0 0
  %2664 = vmatprep.subr.bf16.mxu0 0
  %2665 = vmatpush1.bf16.msra.mxu0 0
  %2666 = vmatprep.subr.bf16.mxu0 0
  %2667 = vmatpush1.bf16.msra.mxu0 0
  %2668 = vmatprep.subr.bf16.mxu0 0
  %2669 = vmatpush1.bf16.msra.mxu0 0
  %2670 = vmatprep.mubr.bf16.mxu0 0
  %2671 = vmatmul.mubr.bf16.gmra.mrb[0].mxu0 %v2582
  %v2672 = vpop.f32.mrb[0].mxu0
  %v2673 = vadd.f32 0.0, %v2672
  %v2674 = vpop.f32.mrb[0].mxu0
  %v2675 = vpop.f32.mrb[0].mxu0
  %v2676 = vadd.f32 0.0, %v2675
  %v2677 = vpop.f32.mrb[0].mxu0
  %2678 = vmatprep.mubr.bf16.mxu0 0
  %2679 = vmatmul.mubr.bf16.gmra.mrb[0].mxu0 %v2585
  %v2680 = vpop.f32.mrb[0].mxu0
  %v2681 = vadd.f32 0.0, %v2680
  %v2682 = vpop.f32.mrb[0].mxu0
  %v2683 = vpop.f32.mrb[0].mxu0
  %v2684 = vadd.f32 0.0, %v2683
  %v2685 = vpop.f32.mrb[0].mxu0
  %2686 = vmatprep.mubr.bf16.mxu0 0
  %2687 = vmatmul.mubr.bf16.gmra.mrb[0].mxu0 %v2588
  %v2688 = vpop.f32.mrb[0].mxu0
  %v2689 = vadd.f32 0.0, %v2688
  %v2690 = vpop.f32.mrb[0].mxu0
  %v2691 = vpop.f32.mrb[0].mxu0
  %v2692 = vadd.f32 0.0, %v2691
  %v2693 = vpop.f32.mrb[0].mxu0
  %2694 = vmatprep.mubr.bf16.mxu0 0
  %2695 = vmatmul.mubr.bf16.gmra.mrb[0].mxu0 %v2591
  %v2696 = vpop.f32.mrb[0].mxu0
  %v2697 = vadd.f32 0.0, %v2696
  %v2698 = vpop.f32.mrb[0].mxu0
  %v2699 = vpop.f32.mrb[0].mxu0
  %v2700 = vadd.f32 0.0, %v2699
  %v2701 = vpop.f32.mrb[0].mxu0
  %2702 = vmatprep.mubr.bf16.mxu0 0
  %2703 = vmatmul.mubr.bf16.gmra.mrb[0].mxu0 %v2594
  %v2704 = vpop.f32.mrb[0].mxu0
  %v2705 = vadd.f32 0.0, %v2704
  %v2706 = vpop.f32.mrb[0].mxu0
  %v2707 = vpop.f32.mrb[0].mxu0
  %v2708 = vadd.f32 0.0, %v2707
  %v2709 = vpop.f32.mrb[0].mxu0
  %2710 = vmatprep.mubr.bf16.mxu0 0
  %2711 = vmatmul.mubr.bf16.gmra.mrb[0].mxu0 %v2597
  %v2712 = vpop.f32.mrb[0].mxu0
  %v2713 = vadd.f32 0.0, %v2712
  %v2714 = vpop.f32.mrb[0].mxu0
  %v2715 = vpop.f32.mrb[0].mxu0
  %v2716 = vadd.f32 0.0, %v2715
  %v2717 = vpop.f32.mrb[0].mxu0
  %2718 = vmatprep.mubr.bf16.mxu0 0
  %2719 = vmatmul.mubr.bf16.gmra.mrb[0].mxu0 %v2600
  %v2720 = vpop.f32.mrb[0].mxu0
  %v2721 = vadd.f32 0.0, %v2720
  %v2722 = vpop.f32.mrb[0].mxu0
  %v2723 = vpop.f32.mrb[0].mxu0
  %v2724 = vadd.f32 0.0, %v2723
  %v2725 = vpop.f32.mrb[0].mxu0
  %2726 = vmatprep.mubr.bf16.mxu0 0
  %2727 = vmatmul.mubr.bf16.gmra.mrb[0].mxu0 %v2603
  %v2728 = vpop.f32.mrb[0].mxu0
  %v2729 = vadd.f32 0.0, %v2728
  %v2730 = vpop.f32.mrb[0].mxu0
  %v2731 = vpop.f32.mrb[0].mxu0
  %v2732 = vadd.f32 0.0, %v2731
  %v2733 = vpop.f32.mrb[0].mxu0
  %2734 = vmatprep.mubr.bf16.mxu0 0
  %2735 = vmatmul.mubr.bf16.gmra.mrb[0].mxu0 %v2606
  %v2736 = vpop.f32.mrb[0].mxu0
  %v2737 = vadd.f32 0.0, %v2736
  %v2738 = vpop.f32.mrb[0].mxu0
  %v2739 = vpop.f32.mrb[0].mxu0
  %v2740 = vadd.f32 0.0, %v2739
  %v2741 = vpop.f32.mrb[0].mxu0
  %2742 = vmatprep.mubr.bf16.mxu0 0
  %2743 = vmatmul.mubr.bf16.gmra.mrb[0].mxu0 %v2609
  %v2744 = vpop.f32.mrb[0].mxu0
  %v2745 = vadd.f32 0.0, %v2744
  %v2746 = vpop.f32.mrb[0].mxu0
  %v2747 = vpop.f32.mrb[0].mxu0
  %v2748 = vadd.f32 0.0, %v2747
  %v2749 = vpop.f32.mrb[0].mxu0
  %2750 = vmatprep.mubr.bf16.mxu0 0
  %2751 = vmatmul.mubr.bf16.gmra.mrb[0].mxu0 %v2612
  %v2752 = vpop.f32.mrb[0].mxu0
  %v2753 = vadd.f32 0.0, %v2752
  %v2754 = vpop.f32.mrb[0].mxu0
  %v2755 = vpop.f32.mrb[0].mxu0
  %v2756 = vadd.f32 0.0, %v2755
  %v2757 = vpop.f32.mrb[0].mxu0
  %2758 = vmatprep.mubr.bf16.mxu0 0
  %2759 = vmatmul.mubr.bf16.gmra.mrb[0].mxu0 %v2615
  %v2760 = vpop.f32.mrb[0].mxu0
  %v2761 = vadd.f32 0.0, %v2760
  %v2762 = vpop.f32.mrb[0].mxu0
  %v2763 = vpop.f32.mrb[0].mxu0
  %v2764 = vadd.f32 0.0, %v2763
  %v2765 = vpop.f32.mrb[0].mxu0
  %2766 = vmatprep.mubr.bf16.mxu0 0
  %2767 = vmatmul.mubr.bf16.gmra.mrb[0].mxu0 %v2618
  %v2768 = vpop.f32.mrb[0].mxu0
  %v2769 = vadd.f32 0.0, %v2768
  %v2770 = vpop.f32.mrb[0].mxu0
  %v2771 = vpop.f32.mrb[0].mxu0
  %v2772 = vadd.f32 0.0, %v2771
  %v2773 = vpop.f32.mrb[0].mxu0
  %2774 = vmatprep.mubr.bf16.mxu0 0
  %2775 = vmatmul.mubr.bf16.gmra.mrb[0].mxu0 %v2621
  %v2776 = vpop.f32.mrb[0].mxu0
  %v2777 = vadd.f32 0.0, %v2776
  %v2778 = vpop.f32.mrb[0].mxu0
  %v2779 = vpop.f32.mrb[0].mxu0
  %v2780 = vadd.f32 0.0, %v2779
  %v2781 = vpop.f32.mrb[0].mxu0
  %2782 = vmatprep.mubr.bf16.mxu0 0
  %2783 = vmatmul.mubr.bf16.gmra.mrb[0].mxu0 %v2624
  %v2784 = vpop.f32.mrb[0].mxu0
  %v2785 = vadd.f32 0.0, %v2784
  %v2786 = vpop.f32.mrb[0].mxu0
  %v2787 = vpop.f32.mrb[0].mxu0
  %v2788 = vadd.f32 0.0, %v2787
  %v2789 = vpop.f32.mrb[0].mxu0
  %2790 = vmatprep.mubr.bf16.mxu0 0
  %2791 = vmatmul.mubr.bf16.gmra.mrb[0].mxu0 %v2627
  %v2792 = vpop.f32.mrb[0].mxu0
  %v2793 = vadd.f32 0.0, %v2792
  %v2794 = vpop.f32.mrb[0].mxu0
  %v2795 = vpop.f32.mrb[0].mxu0
  %v2796 = vadd.f32 0.0, %v2795
  %v2797 = vpop.f32.mrb[0].mxu0
  %2798 = vmatprep.mubr.bf16.mxu0 0
  %2799 = vmatmul.mubr.bf16.gmra.mrb[0].mxu0 %v2630
  %v2800 = vpop.f32.mrb[0].mxu0
  %v2801 = vadd.f32 0.0, %v2800
  %v2802 = vpop.f32.mrb[0].mxu0
  %v2803 = vpop.f32.mrb[0].mxu0
  %v2804 = vadd.f32 0.0, %v2803
  %v2805 = vpop.f32.mrb[0].mxu0
  %2806 = vmatprep.mubr.bf16.mxu0 0
  %2807 = vmatmul.mubr.bf16.gmra.mrb[0].mxu0 %v2633
  %v2808 = vpop.f32.mrb[0].mxu0
  %v2809 = vadd.f32 0.0, %v2808
  %v2810 = vpop.f32.mrb[0].mxu0
  %v2811 = vpop.f32.mrb[0].mxu0
  %v2812 = vadd.f32 0.0, %v2811
  %v2813 = vpop.f32.mrb[0].mxu0
  %2814 = vdwg.mxu0
  %v2815 = vld [vmem:[%s1] sm:$0xf]
  %v2816 = vld [vmem:[%s9] sm:$0xf]
  %v2817 = vpack.c.bf16 %v2673, %v2673
  %v2818 = vld [vmem:[%s8] sm:$0xf]
  %v2819 = vld [vmem:[%s8 + $0x4] sm:$0xf]
  %v2822 = vunpack.c.l.b16 %v2818
  %v2823 = vunpack.c.l.b16 %v2819
  %v2824 = vpack.c.b16 %v2823, %v2822
  %v2827 = vsel %vm1468, %v2817, 0
  %2829 = vmatprep.subr.bf16.mxu0 0
  %2830 = vmatpush1.bf16.msra.mxu0 %v2824
  %2831 = vmatprep.subr.bf16.mxu0 0
  %2832 = vmatpush1.bf16.msra.mxu0 0
  %2833 = vmatprep.subr.bf16.mxu0 0
  %2834 = vmatpush1.bf16.msra.mxu0 0
  %2835 = vmatprep.subr.bf16.mxu0 0
  %2836 = vmatpush1.bf16.msra.mxu0 0
  %2837 = vmatprep.subr.bf16.mxu0 0
  %2838 = vmatpush1.bf16.msra.mxu0 0
  %2839 = vmatprep.subr.bf16.mxu0 0
  %2840 = vmatpush1.bf16.msra.mxu0 0
  %2841 = vmatprep.subr.bf16.mxu0 0
  %2842 = vmatpush1.bf16.msra.mxu0 0
  %2843 = vmatprep.subr.bf16.mxu0 0
  %2844 = vmatpush1.bf16.msra.mxu0 0
  %2845 = vmatprep.subr.bf16.mxu0 0
  %2846 = vmatpush1.bf16.msra.mxu0 0
  %2847 = vmatprep.subr.bf16.mxu0 0
  %2848 = vmatpush1.bf16.msra.mxu0 0
  %2849 = vmatprep.subr.bf16.mxu0 0
  %2850 = vmatpush1.bf16.msra.mxu0 0
  %2851 = vmatprep.subr.bf16.mxu0 0
  %2852 = vmatpush1.bf16.msra.mxu0 0
  %2853 = vmatprep.subr.bf16.mxu0 0
  %2854 = vmatpush1.bf16.msra.mxu0 0
  %2855 = vmatprep.subr.bf16.mxu0 0
  %2856 = vmatpush1.bf16.msra.mxu0 0
  %2857 = vmatprep.subr.bf16.mxu0 0
  %2858 = vmatpush1.bf16.msra.mxu0 0
  %2859 = vmatprep.subr.bf16.mxu0 0
  %2860 = vmatpush1.bf16.msra.mxu0 0
  %2861 = vmatprep.mubr.bf16.mxu0 0
  %2862 = vmatmul.mubr.bf16.gmra.mrb[0].mxu0 %v2827
  %v2863 = vpop.f32.mrb[0].mxu0
  %v2864 = vadd.f32 0.0, %v2863
  %v2865 = vpop.f32.mrb[0].mxu0
  %v2866 = vpop.f32.mrb[0].mxu0
  %v2867 = vpop.f32.mrb[0].mxu0
  %2868 = vdwg.mxu0
  %vm2869 = vcmask 64512
  %v2871 = vsel %vm2869, %v2815, 0
  %v2874 = vsel %vm1084, %v2816, 0
  %2876 = vmatprep.subr.bf16.mxu0 0
  %2877 = vmatpush1.bf16.msra.mxu0 %v2874
  %2878 = vmatprep.subr.bf16.mxu0 0
  %2879 = vmatpush1.bf16.msra.mxu0 0
  %2880 = vmatprep.subr.bf16.mxu0 0
  %2881 = vmatpush1.bf16.msra.mxu0 0
  %2882 = vmatprep.subr.bf16.mxu0 0
  %2883 = vmatpush1.bf16.msra.mxu0 0
  %2884 = vmatprep.subr.bf16.mxu0 0
  %2885 = vmatpush1.bf16.msra.mxu0 0
  %2886 = vmatprep.subr.bf16.mxu0 0
  %2887 = vmatpush1.bf16.msra.mxu0 0
  %2888 = vmatprep.subr.bf16.mxu0 0
  %2889 = vmatpush1.bf16.msra.mxu0 0
  %2890 = vmatprep.subr.bf16.mxu0 0
  %2891 = vmatpush1.bf16.msra.mxu0 0
  %2892 = vmatprep.subr.bf16.mxu0 0
  %2893 = vmatpush1.bf16.msra.mxu0 0
  %2894 = vmatprep.subr.bf16.mxu0 0
  %2895 = vmatpush1.bf16.msra.mxu0 0
  %2896 = vmatprep.subr.bf16.mxu0 0
  %2897 = vmatpush1.bf16.msra.mxu0 0
  %2898 = vmatprep.subr.bf16.mxu0 0
  %2899 = vmatpush1.bf16.msra.mxu0 0
  %2900 = vmatprep.subr.bf16.mxu0 0
  %2901 = vmatpush1.bf16.msra.mxu0 0
  %2902 = vmatprep.subr.bf16.mxu0 0
  %2903 = vmatpush1.bf16.msra.mxu0 0
  %2904 = vmatprep.subr.bf16.mxu0 0
  %2905 = vmatpush1.bf16.msra.mxu0 0
  %2906 = vmatprep.subr.bf16.mxu0 0
  %2907 = vmatpush1.bf16.msra.mxu0 0
  %2908 = vmatprep.mubr.bf16.mxu0 0
  %2909 = vmatmul.mubr.bf16.gmra.mrb[0].mxu0 %v2871
  %v2910 = vpop.f32.mrb[0].mxu0
  %v2911 = vadd.f32 %v2864, %v2910
  %v2912 = vpop.f32.mrb[0].mxu0
  %v2913 = vpop.f32.mrb[0].mxu0
  %v2914 = vpop.f32.mrb[0].mxu0
  %2915 = vdwg.mxu0
  %v2916 = vpack.c.bf16 %v2676, %v2676
  %v2917 = vld [vmem:[%s8 + $0x8] sm:$0xf]
  %v2918 = vld [vmem:[%s8 + $0xc] sm:$0xf]
  %v2921 = vunpack.c.l.b16 %v2917
  %v2922 = vunpack.c.l.b16 %v2918
  %v2923 = vpack.c.b16 %v2922, %v2921
  %v2926 = vsel %vm1468, %v2916, 0
  %2928 = vmatprep.subr.bf16.mxu0 0
  %2929 = vmatpush1.bf16.msra.mxu0 %v2923
  %2930 = vmatprep.subr.bf16.mxu0 0
  %2931 = vmatpush1.bf16.msra.mxu0 0
  %2932 = vmatprep.subr.bf16.mxu0 0
  %2933 = vmatpush1.bf16.msra.mxu0 0
  %2934 = vmatprep.subr.bf16.mxu0 0
  %2935 = vmatpush1.bf16.msra.mxu0 0
  %2936 = vmatprep.subr.bf16.mxu0 0
  %2937 = vmatpush1.bf16.msra.mxu0 0
  %2938 = vmatprep.subr.bf16.mxu0 0
  %2939 = vmatpush1.bf16.msra.mxu0 0
  %2940 = vmatprep.subr.bf16.mxu0 0
  %2941 = vmatpush1.bf16.msra.mxu0 0
  %2942 = vmatprep.subr.bf16.mxu0 0
  %2943 = vmatpush1.bf16.msra.mxu0 0
  %2944 = vmatprep.subr.bf16.mxu0 0
  %2945 = vmatpush1.bf16.msra.mxu0 0
  %2946 = vmatprep.subr.bf16.mxu0 0
  %2947 = vmatpush1.bf16.msra.mxu0 0
  %2948 = vmatprep.subr.bf16.mxu0 0
  %2949 = vmatpush1.bf16.msra.mxu0 0
  %2950 = vmatprep.subr.bf16.mxu0 0
  %2951 = vmatpush1.bf16.msra.mxu0 0
  %2952 = vmatprep.subr.bf16.mxu0 0
  %2953 = vmatpush1.bf16.msra.mxu0 0
  %2954 = vmatprep.subr.bf16.mxu0 0
  %2955 = vmatpush1.bf16.msra.mxu0 0
  %2956 = vmatprep.subr.bf16.mxu0 0
  %2957 = vmatpush1.bf16.msra.mxu0 0
  %2958 = vmatprep.subr.bf16.mxu0 0
  %2959 = vmatpush1.bf16.msra.mxu0 0
  %2960 = vmatprep.mubr.bf16.mxu0 0
  %2961 = vmatmul.mubr.bf16.gmra.mrb[0].mxu0 %v2926
  %v2962 = vpop.f32.mrb[0].mxu0
  %v2963 = vadd.f32 0.0, %v2962
  %v2964 = vpop.f32.mrb[0].mxu0
  %v2965 = vpop.f32.mrb[0].mxu0
  %v2966 = vpop.f32.mrb[0].mxu0
  %2967 = vdwg.mxu0
  %v2968 = vadd.f32 %v2911, %v2963
  %v2969 = vpack.c.bf16 %v2681, %v2681
  %v2970 = vld [vmem:[%s8 + $0x10] sm:$0xf]
  %v2971 = vld [vmem:[%s8 + $0x14] sm:$0xf]
  %v2974 = vunpack.c.l.b16 %v2970
  %v2975 = vunpack.c.l.b16 %v2971
  %v2976 = vpack.c.b16 %v2975, %v2974
  %v2979 = vsel %vm1468, %v2969, 0
  %2981 = vmatprep.subr.bf16.mxu0 0
  %2982 = vmatpush1.bf16.msra.mxu0 %v2976
  %2983 = vmatprep.subr.bf16.mxu0 0
  %2984 = vmatpush1.bf16.msra.mxu0 0
  %2985 = vmatprep.subr.bf16.mxu0 0
  %2986 = vmatpush1.bf16.msra.mxu0 0
  %2987 = vmatprep.subr.bf16.mxu0 0
  %2988 = vmatpush1.bf16.msra.mxu0 0
  %2989 = vmatprep.subr.bf16.mxu0 0
  %2990 = vmatpush1.bf16.msra.mxu0 0
  %2991 = vmatprep.subr.bf16.mxu0 0
  %2992 = vmatpush1.bf16.msra.mxu0 0
  %2993 = vmatprep.subr.bf16.mxu0 0
  %2994 = vmatpush1.bf16.msra.mxu0 0
  %2995 = vmatprep.subr.bf16.mxu0 0
  %2996 = vmatpush1.bf16.msra.mxu0 0
  %2997 = vmatprep.subr.bf16.mxu0 0
  %2998 = vmatpush1.bf16.msra.mxu0 0
  %2999 = vmatprep.subr.bf16.mxu0 0
  %3000 = vmatpush1.bf16.msra.mxu0 0
  %3001 = vmatprep.subr.bf16.mxu0 0
  %3002 = vmatpush1.bf16.msra.mxu0 0
  %3003 = vmatprep.subr.bf16.mxu0 0
  %3004 = vmatpush1.bf16.msra.mxu0 0
  %3005 = vmatprep.subr.bf16.mxu0 0
  %3006 = vmatpush1.bf16.msra.mxu0 0
  %3007 = vmatprep.subr.bf16.mxu0 0
  %3008 = vmatpush1.bf16.msra.mxu0 0
  %3009 = vmatprep.subr.bf16.mxu0 0
  %3010 = vmatpush1.bf16.msra.mxu0 0
  %3011 = vmatprep.subr.bf16.mxu0 0
  %3012 = vmatpush1.bf16.msra.mxu0 0
  %3013 = vmatprep.mubr.bf16.mxu0 0
  %3014 = vmatmul.mubr.bf16.gmra.mrb[0].mxu0 %v2979
  %v3015 = vpop.f32.mrb[0].mxu0
  %v3016 = vadd.f32 0.0, %v3015
  %v3017 = vpop.f32.mrb[0].mxu0
  %v3018 = vpop.f32.mrb[0].mxu0
  %v3019 = vpop.f32.mrb[0].mxu0
  %3020 = vdwg.mxu0
  %v3021 = vadd.f32 %v2968, %v3016
  %v3022 = vpack.c.bf16 %v2684, %v2684
  %v3023 = vld [vmem:[%s8 + $0x18] sm:$0xf]
  %v3024 = vld [vmem:[%s8 + $0x1c] sm:$0xf]
  %v3027 = vunpack.c.l.b16 %v3023
  %v3028 = vunpack.c.l.b16 %v3024
  %v3029 = vpack.c.b16 %v3028, %v3027
  %v3032 = vsel %vm1468, %v3022, 0
  %3034 = vmatprep.subr.bf16.mxu0 0
  %3035 = vmatpush1.bf16.msra.mxu0 %v3029
  %3036 = vmatprep.subr.bf16.mxu0 0
  %3037 = vmatpush1.bf16.msra.mxu0 0
  %3038 = vmatprep.subr.bf16.mxu0 0
  %3039 = vmatpush1.bf16.msra.mxu0 0
  %3040 = vmatprep.subr.bf16.mxu0 0
  %3041 = vmatpush1.bf16.msra.mxu0 0
  %3042 = vmatprep.subr.bf16.mxu0 0
  %3043 = vmatpush1.bf16.msra.mxu0 0
  %3044 = vmatprep.subr.bf16.mxu0 0
  %3045 = vmatpush1.bf16.msra.mxu0 0
  %3046 = vmatprep.subr.bf16.mxu0 0
  %3047 = vmatpush1.bf16.msra.mxu0 0
  %3048 = vmatprep.subr.bf16.mxu0 0
  %3049 = vmatpush1.bf16.msra.mxu0 0
  %3050 = vmatprep.subr.bf16.mxu0 0
  %3051 = vmatpush1.bf16.msra.mxu0 0
  %3052 = vmatprep.subr.bf16.mxu0 0
  %3053 = vmatpush1.bf16.msra.mxu0 0
  %3054 = vmatprep.subr.bf16.mxu0 0
  %3055 = vmatpush1.bf16.msra.mxu0 0
  %3056 = vmatprep.subr.bf16.mxu0 0
  %3057 = vmatpush1.bf16.msra.mxu0 0
  %3058 = vmatprep.subr.bf16.mxu0 0
  %3059 = vmatpush1.bf16.msra.mxu0 0
  %3060 = vmatprep.subr.bf16.mxu0 0
  %3061 = vmatpush1.bf16.msra.mxu0 0
  %3062 = vmatprep.subr.bf16.mxu0 0
  %3063 = vmatpush1.bf16.msra.mxu0 0
  %3064 = vmatprep.subr.bf16.mxu0 0
  %3065 = vmatpush1.bf16.msra.mxu0 0
  %3066 = vmatprep.mubr.bf16.mxu0 0
  %3067 = vmatmul.mubr.bf16.gmra.mrb[0].mxu0 %v3032
  %v3068 = vpop.f32.mrb[0].mxu0
  %v3069 = vadd.f32 0.0, %v3068
  %v3070 = vpop.f32.mrb[0].mxu0
  %v3071 = vpop.f32.mrb[0].mxu0
  %v3072 = vpop.f32.mrb[0].mxu0
  %3073 = vdwg.mxu0
  %v3074 = vadd.f32 %v3021, %v3069
  %v3075 = vpack.c.bf16 %v2689, %v2689
  %v3076 = vld [vmem:[%s8 + $0x20] sm:$0xf]
  %v3077 = vld [vmem:[%s8 + $0x24] sm:$0xf]
  %v3080 = vunpack.c.l.b16 %v3076
  %v3081 = vunpack.c.l.b16 %v3077
  %v3082 = vpack.c.b16 %v3081, %v3080
  %v3085 = vsel %vm1468, %v3075, 0
  %3087 = vmatprep.subr.bf16.mxu0 0
  %3088 = vmatpush1.bf16.msra.mxu0 %v3082
  %3089 = vmatprep.subr.bf16.mxu0 0
  %3090 = vmatpush1.bf16.msra.mxu0 0
  %3091 = vmatprep.subr.bf16.mxu0 0
  %3092 = vmatpush1.bf16.msra.mxu0 0
  %3093 = vmatprep.subr.bf16.mxu0 0
  %3094 = vmatpush1.bf16.msra.mxu0 0
  %3095 = vmatprep.subr.bf16.mxu0 0
  %3096 = vmatpush1.bf16.msra.mxu0 0
  %3097 = vmatprep.subr.bf16.mxu0 0
  %3098 = vmatpush1.bf16.msra.mxu0 0
  %3099 = vmatprep.subr.bf16.mxu0 0
  %3100 = vmatpush1.bf16.msra.mxu0 0
  %3101 = vmatprep.subr.bf16.mxu0 0
  %3102 = vmatpush1.bf16.msra.mxu0 0
  %3103 = vmatprep.subr.bf16.mxu0 0
  %3104 = vmatpush1.bf16.msra.mxu0 0
  %3105 = vmatprep.subr.bf16.mxu0 0
  %3106 = vmatpush1.bf16.msra.mxu0 0
  %3107 = vmatprep.subr.bf16.mxu0 0
  %3108 = vmatpush1.bf16.msra.mxu0 0
  %3109 = vmatprep.subr.bf16.mxu0 0
  %3110 = vmatpush1.bf16.msra.mxu0 0
  %3111 = vmatprep.subr.bf16.mxu0 0
  %3112 = vmatpush1.bf16.msra.mxu0 0
  %3113 = vmatprep.subr.bf16.mxu0 0
  %3114 = vmatpush1.bf16.msra.mxu0 0
  %3115 = vmatprep.subr.bf16.mxu0 0
  %3116 = vmatpush1.bf16.msra.mxu0 0
  %3117 = vmatprep.subr.bf16.mxu0 0
  %3118 = vmatpush1.bf16.msra.mxu0 0
  %3119 = vmatprep.mubr.bf16.mxu0 0
  %3120 = vmatmul.mubr.bf16.gmra.mrb[0].mxu0 %v3085
  %v3121 = vpop.f32.mrb[0].mxu0
  %v3122 = vadd.f32 0.0, %v3121
  %v3123 = vpop.f32.mrb[0].mxu0
  %v3124 = vpop.f32.mrb[0].mxu0
  %v3125 = vpop.f32.mrb[0].mxu0
  %3126 = vdwg.mxu0
  %v3127 = vadd.f32 %v3074, %v3122
  %v3128 = vpack.c.bf16 %v2692, %v2692
  %v3129 = vld [vmem:[%s8 + $0x28] sm:$0xf]
  %v3130 = vld [vmem:[%s8 + $0x2c] sm:$0xf]
  %v3133 = vunpack.c.l.b16 %v3129
  %v3134 = vunpack.c.l.b16 %v3130
  %v3135 = vpack.c.b16 %v3134, %v3133
  %v3138 = vsel %vm1468, %v3128, 0
  %3140 = vmatprep.subr.bf16.mxu0 0
  %3141 = vmatpush1.bf16.msra.mxu0 %v3135
  %3142 = vmatprep.subr.bf16.mxu0 0
  %3143 = vmatpush1.bf16.msra.mxu0 0
  %3144 = vmatprep.subr.bf16.mxu0 0
  %3145 = vmatpush1.bf16.msra.mxu0 0
  %3146 = vmatprep.subr.bf16.mxu0 0
  %3147 = vmatpush1.bf16.msra.mxu0 0
  %3148 = vmatprep.subr.bf16.mxu0 0
  %3149 = vmatpush1.bf16.msra.mxu0 0
  %3150 = vmatprep.subr.bf16.mxu0 0
  %3151 = vmatpush1.bf16.msra.mxu0 0
  %3152 = vmatprep.subr.bf16.mxu0 0
  %3153 = vmatpush1.bf16.msra.mxu0 0
  %3154 = vmatprep.subr.bf16.mxu0 0
  %3155 = vmatpush1.bf16.msra.mxu0 0
  %3156 = vmatprep.subr.bf16.mxu0 0
  %3157 = vmatpush1.bf16.msra.mxu0 0
  %3158 = vmatprep.subr.bf16.mxu0 0
  %3159 = vmatpush1.bf16.msra.mxu0 0
  %3160 = vmatprep.subr.bf16.mxu0 0
  %3161 = vmatpush1.bf16.msra.mxu0 0
  %3162 = vmatprep.subr.bf16.mxu0 0
  %3163 = vmatpush1.bf16.msra.mxu0 0
  %3164 = vmatprep.subr.bf16.mxu0 0
  %3165 = vmatpush1.bf16.msra.mxu0 0
  %3166 = vmatprep.subr.bf16.mxu0 0
  %3167 = vmatpush1.bf16.msra.mxu0 0
  %3168 = vmatprep.subr.bf16.mxu0 0
  %3169 = vmatpush1.bf16.msra.mxu0 0
  %3170 = vmatprep.subr.bf16.mxu0 0
  %3171 = vmatpush1.bf16.msra.mxu0 0
  %3172 = vmatprep.mubr.bf16.mxu0 0
  %3173 = vmatmul.mubr.bf16.gmra.mrb[0].mxu0 %v3138
  %v3174 = vpop.f32.mrb[0].mxu0
  %v3175 = vadd.f32 0.0, %v3174
  %v3176 = vpop.f32.mrb[0].mxu0
  %v3177 = vpop.f32.mrb[0].mxu0
  %v3178 = vpop.f32.mrb[0].mxu0
  %3179 = vdwg.mxu0
  %v3180 = vadd.f32 %v3127, %v3175
  %v3181 = vpack.c.bf16 %v2697, %v2697
  %v3182 = vld [vmem:[%s8 + $0x30] sm:$0xf]
  %v3183 = vld [vmem:[%s8 + $0x34] sm:$0xf]
  %v3186 = vunpack.c.l.b16 %v3182
  %v3187 = vunpack.c.l.b16 %v3183
  %v3188 = vpack.c.b16 %v3187, %v3186
  %v3191 = vsel %vm1468, %v3181, 0
  %3193 = vmatprep.subr.bf16.mxu0 0
  %3194 = vmatpush1.bf16.msra.mxu0 %v3188
  %3195 = vmatprep.subr.bf16.mxu0 0
  %3196 = vmatpush1.bf16.msra.mxu0 0
  %3197 = vmatprep.subr.bf16.mxu0 0
  %3198 = vmatpush1.bf16.msra.mxu0 0
  %3199 = vmatprep.subr.bf16.mxu0 0
  %3200 = vmatpush1.bf16.msra.mxu0 0
  %3201 = vmatprep.subr.bf16.mxu0 0
  %3202 = vmatpush1.bf16.msra.mxu0 0
  %3203 = vmatprep.subr.bf16.mxu0 0
  %3204 = vmatpush1.bf16.msra.mxu0 0
  %3205 = vmatprep.subr.bf16.mxu0 0
  %3206 = vmatpush1.bf16.msra.mxu0 0
  %3207 = vmatprep.subr.bf16.mxu0 0
  %3208 = vmatpush1.bf16.msra.mxu0 0
  %3209 = vmatprep.subr.bf16.mxu0 0
  %3210 = vmatpush1.bf16.msra.mxu0 0
  %3211 = vmatprep.subr.bf16.mxu0 0
  %3212 = vmatpush1.bf16.msra.mxu0 0
  %3213 = vmatprep.subr.bf16.mxu0 0
  %3214 = vmatpush1.bf16.msra.mxu0 0
  %3215 = vmatprep.subr.bf16.mxu0 0
  %3216 = vmatpush1.bf16.msra.mxu0 0
  %3217 = vmatprep.subr.bf16.mxu0 0
  %3218 = vmatpush1.bf16.msra.mxu0 0
  %3219 = vmatprep.subr.bf16.mxu0 0
  %3220 = vmatpush1.bf16.msra.mxu0 0
  %3221 = vmatprep.subr.bf16.mxu0 0
  %3222 = vmatpush1.bf16.msra.mxu0 0
  %3223 = vmatprep.subr.bf16.mxu0 0
  %3224 = vmatpush1.bf16.msra.mxu0 0
  %3225 = vmatprep.mubr.bf16.mxu0 0
  %3226 = vmatmul.mubr.bf16.gmra.mrb[0].mxu0 %v3191
  %v3227 = vpop.f32.mrb[0].mxu0
  %v3228 = vadd.f32 0.0, %v3227
  %v3229 = vpop.f32.mrb[0].mxu0
  %v3230 = vpop.f32.mrb[0].mxu0
  %v3231 = vpop.f32.mrb[0].mxu0
  %3232 = vdwg.mxu0
  %v3233 = vadd.f32 %v3180, %v3228
  %v3234 = vpack.c.bf16 %v2700, %v2700
  %v3235 = vld [vmem:[%s8 + $0x38] sm:$0xf]
  %v3236 = vld [vmem:[%s8 + $0x3c] sm:$0xf]
  %v3239 = vunpack.c.l.b16 %v3235
  %v3240 = vunpack.c.l.b16 %v3236
  %v3241 = vpack.c.b16 %v3240, %v3239
  %v3244 = vsel %vm1468, %v3234, 0
  %3246 = vmatprep.subr.bf16.mxu0 0
  %3247 = vmatpush1.bf16.msra.mxu0 %v3241
  %3248 = vmatprep.subr.bf16.mxu0 0
  %3249 = vmatpush1.bf16.msra.mxu0 0
  %3250 = vmatprep.subr.bf16.mxu0 0
  %3251 = vmatpush1.bf16.msra.mxu0 0
  %3252 = vmatprep.subr.bf16.mxu0 0
  %3253 = vmatpush1.bf16.msra.mxu0 0
  %3254 = vmatprep.subr.bf16.mxu0 0
  %3255 = vmatpush1.bf16.msra.mxu0 0
  %3256 = vmatprep.subr.bf16.mxu0 0
  %3257 = vmatpush1.bf16.msra.mxu0 0
  %3258 = vmatprep.subr.bf16.mxu0 0
  %3259 = vmatpush1.bf16.msra.mxu0 0
  %3260 = vmatprep.subr.bf16.mxu0 0
  %3261 = vmatpush1.bf16.msra.mxu0 0
  %3262 = vmatprep.subr.bf16.mxu0 0
  %3263 = vmatpush1.bf16.msra.mxu0 0
  %3264 = vmatprep.subr.bf16.mxu0 0
  %3265 = vmatpush1.bf16.msra.mxu0 0
  %3266 = vmatprep.subr.bf16.mxu0 0
  %3267 = vmatpush1.bf16.msra.mxu0 0
  %3268 = vmatprep.subr.bf16.mxu0 0
  %3269 = vmatpush1.bf16.msra.mxu0 0
  %3270 = vmatprep.subr.bf16.mxu0 0
  %3271 = vmatpush1.bf16.msra.mxu0 0
  %3272 = vmatprep.subr.bf16.mxu0 0
  %3273 = vmatpush1.bf16.msra.mxu0 0
  %3274 = vmatprep.subr.bf16.mxu0 0
  %3275 = vmatpush1.bf16.msra.mxu0 0
  %3276 = vmatprep.subr.bf16.mxu0 0
  %3277 = vmatpush1.bf16.msra.mxu0 0
  %3278 = vmatprep.mubr.bf16.mxu0 0
  %3279 = vmatmul.mubr.bf16.gmra.mrb[0].mxu0 %v3244
  %v3280 = vpop.f32.mrb[0].mxu0
  %v3281 = vadd.f32 0.0, %v3280
  %v3282 = vpop.f32.mrb[0].mxu0
  %v3283 = vpop.f32.mrb[0].mxu0
  %v3284 = vpop.f32.mrb[0].mxu0
  %3285 = vdwg.mxu0
  %v3286 = vadd.f32 %v3233, %v3281
  %v3287 = vpack.c.bf16 %v2705, %v2705
  %v3288 = vld [vmem:[%s8 + $0x40] sm:$0xf]
  %v3289 = vld [vmem:[%s8 + $0x44] sm:$0xf]
  %v3292 = vunpack.c.l.b16 %v3288
  %v3293 = vunpack.c.l.b16 %v3289
  %v3294 = vpack.c.b16 %v3293, %v3292
  %v3297 = vsel %vm1468, %v3287, 0
  %3299 = vmatprep.subr.bf16.mxu0 0
  %3300 = vmatpush1.bf16.msra.mxu0 %v3294
  %3301 = vmatprep.subr.bf16.mxu0 0
  %3302 = vmatpush1.bf16.msra.mxu0 0
  %3303 = vmatprep.subr.bf16.mxu0 0
  %3304 = vmatpush1.bf16.msra.mxu0 0
  %3305 = vmatprep.subr.bf16.mxu0 0
  %3306 = vmatpush1.bf16.msra.mxu0 0
  %3307 = vmatprep.subr.bf16.mxu0 0
  %3308 = vmatpush1.bf16.msra.mxu0 0
  %3309 = vmatprep.subr.bf16.mxu0 0
  %3310 = vmatpush1.bf16.msra.mxu0 0
  %3311 = vmatprep.subr.bf16.mxu0 0
  %3312 = vmatpush1.bf16.msra.mxu0 0
  %3313 = vmatprep.subr.bf16.mxu0 0
  %3314 = vmatpush1.bf16.msra.mxu0 0
  %3315 = vmatprep.subr.bf16.mxu0 0
  %3316 = vmatpush1.bf16.msra.mxu0 0
  %3317 = vmatprep.subr.bf16.mxu0 0
  %3318 = vmatpush1.bf16.msra.mxu0 0
  %3319 = vmatprep.subr.bf16.mxu0 0
  %3320 = vmatpush1.bf16.msra.mxu0 0
  %3321 = vmatprep.subr.bf16.mxu0 0
  %3322 = vmatpush1.bf16.msra.mxu0 0
  %3323 = vmatprep.subr.bf16.mxu0 0
  %3324 = vmatpush1.bf16.msra.mxu0 0
  %3325 = vmatprep.subr.bf16.mxu0 0
  %3326 = vmatpush1.bf16.msra.mxu0 0
  %3327 = vmatprep.subr.bf16.mxu0 0
  %3328 = vmatpush1.bf16.msra.mxu0 0
  %3329 = vmatprep.subr.bf16.mxu0 0
  %3330 = vmatpush1.bf16.msra.mxu0 0
  %3331 = vmatprep.mubr.bf16.mxu0 0
  %3332 = vmatmul.mubr.bf16.gmra.mrb[0].mxu0 %v3297
  %v3333 = vpop.f32.mrb[0].mxu0
  %v3334 = vadd.f32 0.0, %v3333
  %v3335 = vpop.f32.mrb[0].mxu0
  %v3336 = vpop.f32.mrb[0].mxu0
  %v3337 = vpop.f32.mrb[0].mxu0
  %3338 = vdwg.mxu0
  %v3339 = vadd.f32 %v3286, %v3334
  %v3340 = vpack.c.bf16 %v2708, %v2708
  %v3341 = vld [vmem:[%s8 + $0x48] sm:$0xf]
  %v3342 = vld [vmem:[%s8 + $0x4c] sm:$0xf]
  %v3345 = vunpack.c.l.b16 %v3341
  %v3346 = vunpack.c.l.b16 %v3342
  %v3347 = vpack.c.b16 %v3346, %v3345
  %v3350 = vsel %vm1468, %v3340, 0
  %3352 = vmatprep.subr.bf16.mxu0 0
  %3353 = vmatpush1.bf16.msra.mxu0 %v3347
  %3354 = vmatprep.subr.bf16.mxu0 0
  %3355 = vmatpush1.bf16.msra.mxu0 0
  %3356 = vmatprep.subr.bf16.mxu0 0
  %3357 = vmatpush1.bf16.msra.mxu0 0
  %3358 = vmatprep.subr.bf16.mxu0 0
  %3359 = vmatpush1.bf16.msra.mxu0 0
  %3360 = vmatprep.subr.bf16.mxu0 0
  %3361 = vmatpush1.bf16.msra.mxu0 0
  %3362 = vmatprep.subr.bf16.mxu0 0
  %3363 = vmatpush1.bf16.msra.mxu0 0
  %3364 = vmatprep.subr.bf16.mxu0 0
  %3365 = vmatpush1.bf16.msra.mxu0 0
  %3366 = vmatprep.subr.bf16.mxu0 0
  %3367 = vmatpush1.bf16.msra.mxu0 0
  %3368 = vmatprep.subr.bf16.mxu0 0
  %3369 = vmatpush1.bf16.msra.mxu0 0
  %3370 = vmatprep.subr.bf16.mxu0 0
  %3371 = vmatpush1.bf16.msra.mxu0 0
  %3372 = vmatprep.subr.bf16.mxu0 0
  %3373 = vmatpush1.bf16.msra.mxu0 0
  %3374 = vmatprep.subr.bf16.mxu0 0
  %3375 = vmatpush1.bf16.msra.mxu0 0
  %3376 = vmatprep.subr.bf16.mxu0 0
  %3377 = vmatpush1.bf16.msra.mxu0 0
  %3378 = vmatprep.subr.bf16.mxu0 0
  %3379 = vmatpush1.bf16.msra.mxu0 0
  %3380 = vmatprep.subr.bf16.mxu0 0
  %3381 = vmatpush1.bf16.msra.mxu0 0
  %3382 = vmatprep.subr.bf16.mxu0 0
  %3383 = vmatpush1.bf16.msra.mxu0 0
  %3384 = vmatprep.mubr.bf16.mxu0 0
  %3385 = vmatmul.mubr.bf16.gmra.mrb[0].mxu0 %v3350
  %v3386 = vpop.f32.mrb[0].mxu0
  %v3387 = vadd.f32 0.0, %v3386
  %v3388 = vpop.f32.mrb[0].mxu0
  %v3389 = vpop.f32.mrb[0].mxu0
  %v3390 = vpop.f32.mrb[0].mxu0
  %3391 = vdwg.mxu0
  %v3392 = vadd.f32 %v3339, %v3387
  %v3393 = vpack.c.bf16 %v2713, %v2713
  %v3394 = vld [vmem:[%s8 + $0x50] sm:$0xf]
  %v3395 = vld [vmem:[%s8 + $0x54] sm:$0xf]
  %v3398 = vunpack.c.l.b16 %v3394
  %v3399 = vunpack.c.l.b16 %v3395
  %v3400 = vpack.c.b16 %v3399, %v3398
  %v3403 = vsel %vm1468, %v3393, 0
  %3405 = vmatprep.subr.bf16.mxu0 0
  %3406 = vmatpush1.bf16.msra.mxu0 %v3400
  %3407 = vmatprep.subr.bf16.mxu0 0
  %3408 = vmatpush1.bf16.msra.mxu0 0
  %3409 = vmatprep.subr.bf16.mxu0 0
  %3410 = vmatpush1.bf16.msra.mxu0 0
  %3411 = vmatprep.subr.bf16.mxu0 0
  %3412 = vmatpush1.bf16.msra.mxu0 0
  %3413 = vmatprep.subr.bf16.mxu0 0
  %3414 = vmatpush1.bf16.msra.mxu0 0
  %3415 = vmatprep.subr.bf16.mxu0 0
  %3416 = vmatpush1.bf16.msra.mxu0 0
  %3417 = vmatprep.subr.bf16.mxu0 0
  %3418 = vmatpush1.bf16.msra.mxu0 0
  %3419 = vmatprep.subr.bf16.mxu0 0
  %3420 = vmatpush1.bf16.msra.mxu0 0
  %3421 = vmatprep.subr.bf16.mxu0 0
  %3422 = vmatpush1.bf16.msra.mxu0 0
  %3423 = vmatprep.subr.bf16.mxu0 0
  %3424 = vmatpush1.bf16.msra.mxu0 0
  %3425 = vmatprep.subr.bf16.mxu0 0
  %3426 = vmatpush1.bf16.msra.mxu0 0
  %3427 = vmatprep.subr.bf16.mxu0 0
  %3428 = vmatpush1.bf16.msra.mxu0 0
  %3429 = vmatprep.subr.bf16.mxu0 0
  %3430 = vmatpush1.bf16.msra.mxu0 0
  %3431 = vmatprep.subr.bf16.mxu0 0
  %3432 = vmatpush1.bf16.msra.mxu0 0
  %3433 = vmatprep.subr.bf16.mxu0 0
  %3434 = vmatpush1.bf16.msra.mxu0 0
  %3435 = vmatprep.subr.bf16.mxu0 0
  %3436 = vmatpush1.bf16.msra.mxu0 0
  %3437 = vmatprep.mubr.bf16.mxu0 0
  %3438 = vmatmul.mubr.bf16.gmra.mrb[0].mxu0 %v3403
  %v3439 = vpop.f32.mrb[0].mxu0
  %v3440 = vadd.f32 0.0, %v3439
  %v3441 = vpop.f32.mrb[0].mxu0
  %v3442 = vpop.f32.mrb[0].mxu0
  %v3443 = vpop.f32.mrb[0].mxu0
  %3444 = vdwg.mxu0
  %v3445 = vadd.f32 %v3392, %v3440
  %v3446 = vpack.c.bf16 %v2716, %v2716
  %v3447 = vld [vmem:[%s8 + $0x58] sm:$0xf]
  %v3448 = vld [vmem:[%s8 + $0x5c] sm:$0xf]
  %v3451 = vunpack.c.l.b16 %v3447
  %v3452 = vunpack.c.l.b16 %v3448
  %v3453 = vpack.c.b16 %v3452, %v3451
  %v3456 = vsel %vm1468, %v3446, 0
  %3458 = vmatprep.subr.bf16.mxu0 0
  %3459 = vmatpush1.bf16.msra.mxu0 %v3453
  %3460 = vmatprep.subr.bf16.mxu0 0
  %3461 = vmatpush1.bf16.msra.mxu0 0
  %3462 = vmatprep.subr.bf16.mxu0 0
  %3463 = vmatpush1.bf16.msra.mxu0 0
  %3464 = vmatprep.subr.bf16.mxu0 0
  %3465 = vmatpush1.bf16.msra.mxu0 0
  %3466 = vmatprep.subr.bf16.mxu0 0
  %3467 = vmatpush1.bf16.msra.mxu0 0
  %3468 = vmatprep.subr.bf16.mxu0 0
  %3469 = vmatpush1.bf16.msra.mxu0 0
  %3470 = vmatprep.subr.bf16.mxu0 0
  %3471 = vmatpush1.bf16.msra.mxu0 0
  %3472 = vmatprep.subr.bf16.mxu0 0
  %3473 = vmatpush1.bf16.msra.mxu0 0
  %3474 = vmatprep.subr.bf16.mxu0 0
  %3475 = vmatpush1.bf16.msra.mxu0 0
  %3476 = vmatprep.subr.bf16.mxu0 0
  %3477 = vmatpush1.bf16.msra.mxu0 0
  %3478 = vmatprep.subr.bf16.mxu0 0
  %3479 = vmatpush1.bf16.msra.mxu0 0
  %3480 = vmatprep.subr.bf16.mxu0 0
  %3481 = vmatpush1.bf16.msra.mxu0 0
  %3482 = vmatprep.subr.bf16.mxu0 0
  %3483 = vmatpush1.bf16.msra.mxu0 0
  %3484 = vmatprep.subr.bf16.mxu0 0
  %3485 = vmatpush1.bf16.msra.mxu0 0
  %3486 = vmatprep.subr.bf16.mxu0 0
  %3487 = vmatpush1.bf16.msra.mxu0 0
  %3488 = vmatprep.subr.bf16.mxu0 0
  %3489 = vmatpush1.bf16.msra.mxu0 0
  %3490 = vmatprep.mubr.bf16.mxu0 0
  %3491 = vmatmul.mubr.bf16.gmra.mrb[0].mxu0 %v3456
  %v3492 = vpop.f32.mrb[0].mxu0
  %v3493 = vadd.f32 0.0, %v3492
  %v3494 = vpop.f32.mrb[0].mxu0
  %v3495 = vpop.f32.mrb[0].mxu0
  %v3496 = vpop.f32.mrb[0].mxu0
  %3497 = vdwg.mxu0
  %v3498 = vadd.f32 %v3445, %v3493
  %v3499 = vpack.c.bf16 %v2721, %v2721
  %v3500 = vld [vmem:[%s8 + $0x60] sm:$0xf]
  %v3501 = vld [vmem:[%s8 + $0x64] sm:$0xf]
  %v3504 = vunpack.c.l.b16 %v3500
  %v3505 = vunpack.c.l.b16 %v3501
  %v3506 = vpack.c.b16 %v3505, %v3504
  %v3509 = vsel %vm1468, %v3499, 0
  %3511 = vmatprep.subr.bf16.mxu0 0
  %3512 = vmatpush1.bf16.msra.mxu0 %v3506
  %3513 = vmatprep.subr.bf16.mxu0 0
  %3514 = vmatpush1.bf16.msra.mxu0 0
  %3515 = vmatprep.subr.bf16.mxu0 0
  %3516 = vmatpush1.bf16.msra.mxu0 0
  %3517 = vmatprep.subr.bf16.mxu0 0
  %3518 = vmatpush1.bf16.msra.mxu0 0
  %3519 = vmatprep.subr.bf16.mxu0 0
  %3520 = vmatpush1.bf16.msra.mxu0 0
  %3521 = vmatprep.subr.bf16.mxu0 0
  %3522 = vmatpush1.bf16.msra.mxu0 0
  %3523 = vmatprep.subr.bf16.mxu0 0
  %3524 = vmatpush1.bf16.msra.mxu0 0
  %3525 = vmatprep.subr.bf16.mxu0 0
  %3526 = vmatpush1.bf16.msra.mxu0 0
  %3527 = vmatprep.subr.bf16.mxu0 0
  %3528 = vmatpush1.bf16.msra.mxu0 0
  %3529 = vmatprep.subr.bf16.mxu0 0
  %3530 = vmatpush1.bf16.msra.mxu0 0
  %3531 = vmatprep.subr.bf16.mxu0 0
  %3532 = vmatpush1.bf16.msra.mxu0 0
  %3533 = vmatprep.subr.bf16.mxu0 0
  %3534 = vmatpush1.bf16.msra.mxu0 0
  %3535 = vmatprep.subr.bf16.mxu0 0
  %3536 = vmatpush1.bf16.msra.mxu0 0
  %3537 = vmatprep.subr.bf16.mxu0 0
  %3538 = vmatpush1.bf16.msra.mxu0 0
  %3539 = vmatprep.subr.bf16.mxu0 0
  %3540 = vmatpush1.bf16.msra.mxu0 0
  %3541 = vmatprep.subr.bf16.mxu0 0
  %3542 = vmatpush1.bf16.msra.mxu0 0
  %3543 = vmatprep.mubr.bf16.mxu0 0
  %3544 = vmatmul.mubr.bf16.gmra.mrb[0].mxu0 %v3509
  %v3545 = vpop.f32.mrb[0].mxu0
  %v3546 = vadd.f32 0.0, %v3545
  %v3547 = vpop.f32.mrb[0].mxu0
  %v3548 = vpop.f32.mrb[0].mxu0
  %v3549 = vpop.f32.mrb[0].mxu0
  %3550 = vdwg.mxu0
  %v3551 = vadd.f32 %v3498, %v3546
  %v3552 = vpack.c.bf16 %v2724, %v2724
  %v3553 = vld [vmem:[%s8 + $0x68] sm:$0xf]
  %v3554 = vld [vmem:[%s8 + $0x6c] sm:$0xf]
  %v3557 = vunpack.c.l.b16 %v3553
  %v3558 = vunpack.c.l.b16 %v3554
  %v3559 = vpack.c.b16 %v3558, %v3557
  %v3562 = vsel %vm1468, %v3552, 0
  %3564 = vmatprep.subr.bf16.mxu0 0
  %3565 = vmatpush1.bf16.msra.mxu0 %v3559
  %3566 = vmatprep.subr.bf16.mxu0 0
  %3567 = vmatpush1.bf16.msra.mxu0 0
  %3568 = vmatprep.subr.bf16.mxu0 0
  %3569 = vmatpush1.bf16.msra.mxu0 0
  %3570 = vmatprep.subr.bf16.mxu0 0
  %3571 = vmatpush1.bf16.msra.mxu0 0
  %3572 = vmatprep.subr.bf16.mxu0 0
  %3573 = vmatpush1.bf16.msra.mxu0 0
  %3574 = vmatprep.subr.bf16.mxu0 0
  %3575 = vmatpush1.bf16.msra.mxu0 0
  %3576 = vmatprep.subr.bf16.mxu0 0
  %3577 = vmatpush1.bf16.msra.mxu0 0
  %3578 = vmatprep.subr.bf16.mxu0 0
  %3579 = vmatpush1.bf16.msra.mxu0 0
  %3580 = vmatprep.subr.bf16.mxu0 0
  %3581 = vmatpush1.bf16.msra.mxu0 0
  %3582 = vmatprep.subr.bf16.mxu0 0
  %3583 = vmatpush1.bf16.msra.mxu0 0
  %3584 = vmatprep.subr.bf16.mxu0 0
  %3585 = vmatpush1.bf16.msra.mxu0 0
  %3586 = vmatprep.subr.bf16.mxu0 0
  %3587 = vmatpush1.bf16.msra.mxu0 0
  %3588 = vmatprep.subr.bf16.mxu0 0
  %3589 = vmatpush1.bf16.msra.mxu0 0
  %3590 = vmatprep.subr.bf16.mxu0 0
  %3591 = vmatpush1.bf16.msra.mxu0 0
  %3592 = vmatprep.subr.bf16.mxu0 0
  %3593 = vmatpush1.bf16.msra.mxu0 0
  %3594 = vmatprep.subr.bf16.mxu0 0
  %3595 = vmatpush1.bf16.msra.mxu0 0
  %3596 = vmatprep.mubr.bf16.mxu0 0
  %3597 = vmatmul.mubr.bf16.gmra.mrb[0].mxu0 %v3562
  %v3598 = vpop.f32.mrb[0].mxu0
  %v3599 = vadd.f32 0.0, %v3598
  %v3600 = vpop.f32.mrb[0].mxu0
  %v3601 = vpop.f32.mrb[0].mxu0
  %v3602 = vpop.f32.mrb[0].mxu0
  %3603 = vdwg.mxu0
  %v3604 = vadd.f32 %v3551, %v3599
  %v3605 = vpack.c.bf16 %v2729, %v2729
  %v3606 = vld [vmem:[%s8 + $0x70] sm:$0xf]
  %v3607 = vld [vmem:[%s8 + $0x74] sm:$0xf]
  %v3610 = vunpack.c.l.b16 %v3606
  %v3611 = vunpack.c.l.b16 %v3607
  %v3612 = vpack.c.b16 %v3611, %v3610
  %v3615 = vsel %vm1468, %v3605, 0
  %3617 = vmatprep.subr.bf16.mxu0 0
  %3618 = vmatpush1.bf16.msra.mxu0 %v3612
  %3619 = vmatprep.subr.bf16.mxu0 0
  %3620 = vmatpush1.bf16.msra.mxu0 0
  %3621 = vmatprep.subr.bf16.mxu0 0
  %3622 = vmatpush1.bf16.msra.mxu0 0
  %3623 = vmatprep.subr.bf16.mxu0 0
  %3624 = vmatpush1.bf16.msra.mxu0 0
  %3625 = vmatprep.subr.bf16.mxu0 0
  %3626 = vmatpush1.bf16.msra.mxu0 0
  %3627 = vmatprep.subr.bf16.mxu0 0
  %3628 = vmatpush1.bf16.msra.mxu0 0
  %3629 = vmatprep.subr.bf16.mxu0 0
  %3630 = vmatpush1.bf16.msra.mxu0 0
  %3631 = vmatprep.subr.bf16.mxu0 0
  %3632 = vmatpush1.bf16.msra.mxu0 0
  %3633 = vmatprep.subr.bf16.mxu0 0
  %3634 = vmatpush1.bf16.msra.mxu0 0
  %3635 = vmatprep.subr.bf16.mxu0 0
  %3636 = vmatpush1.bf16.msra.mxu0 0
  %3637 = vmatprep.subr.bf16.mxu0 0
  %3638 = vmatpush1.bf16.msra.mxu0 0
  %3639 = vmatprep.subr.bf16.mxu0 0
  %3640 = vmatpush1.bf16.msra.mxu0 0
  %3641 = vmatprep.subr.bf16.mxu0 0
  %3642 = vmatpush1.bf16.msra.mxu0 0
  %3643 = vmatprep.subr.bf16.mxu0 0
  %3644 = vmatpush1.bf16.msra.mxu0 0
  %3645 = vmatprep.subr.bf16.mxu0 0
  %3646 = vmatpush1.bf16.msra.mxu0 0
  %3647 = vmatprep.subr.bf16.mxu0 0
  %3648 = vmatpush1.bf16.msra.mxu0 0
  %3649 = vmatprep.mubr.bf16.mxu0 0
  %3650 = vmatmul.mubr.bf16.gmra.mrb[0].mxu0 %v3615
  %v3651 = vpop.f32.mrb[0].mxu0
  %v3652 = vadd.f32 0.0, %v3651
  %v3653 = vpop.f32.mrb[0].mxu0
  %v3654 = vpop.f32.mrb[0].mxu0
  %v3655 = vpop.f32.mrb[0].mxu0
  %3656 = vdwg.mxu0
  %v3657 = vadd.f32 %v3604, %v3652
  %v3658 = vpack.c.bf16 %v2732, %v2732
  %v3659 = vld [vmem:[%s8 + $0x78] sm:$0xf]
  %v3660 = vld [vmem:[%s8 + $0x7c] sm:$0xf]
  %v3663 = vunpack.c.l.b16 %v3659
  %v3664 = vunpack.c.l.b16 %v3660
  %v3665 = vpack.c.b16 %v3664, %v3663
  %v3668 = vsel %vm1468, %v3658, 0
  %3670 = vmatprep.subr.bf16.mxu0 0
  %3671 = vmatpush1.bf16.msra.mxu0 %v3665
  %3672 = vmatprep.subr.bf16.mxu0 0
  %3673 = vmatpush1.bf16.msra.mxu0 0
  %3674 = vmatprep.subr.bf16.mxu0 0
  %3675 = vmatpush1.bf16.msra.mxu0 0
  %3676 = vmatprep.subr.bf16.mxu0 0
  %3677 = vmatpush1.bf16.msra.mxu0 0
  %3678 = vmatprep.subr.bf16.mxu0 0
  %3679 = vmatpush1.bf16.msra.mxu0 0
  %3680 = vmatprep.subr.bf16.mxu0 0
  %3681 = vmatpush1.bf16.msra.mxu0 0
  %3682 = vmatprep.subr.bf16.mxu0 0
  %3683 = vmatpush1.bf16.msra.mxu0 0
  %3684 = vmatprep.subr.bf16.mxu0 0
  %3685 = vmatpush1.bf16.msra.mxu0 0
  %3686 = vmatprep.subr.bf16.mxu0 0
  %3687 = vmatpush1.bf16.msra.mxu0 0
  %3688 = vmatprep.subr.bf16.mxu0 0
  %3689 = vmatpush1.bf16.msra.mxu0 0
  %3690 = vmatprep.subr.bf16.mxu0 0
  %3691 = vmatpush1.bf16.msra.mxu0 0
  %3692 = vmatprep.subr.bf16.mxu0 0
  %3693 = vmatpush1.bf16.msra.mxu0 0
  %3694 = vmatprep.subr.bf16.mxu0 0
  %3695 = vmatpush1.bf16.msra.mxu0 0
  %3696 = vmatprep.subr.bf16.mxu0 0
  %3697 = vmatpush1.bf16.msra.mxu0 0
  %3698 = vmatprep.subr.bf16.mxu0 0
  %3699 = vmatpush1.bf16.msra.mxu0 0
  %3700 = vmatprep.subr.bf16.mxu0 0
  %3701 = vmatpush1.bf16.msra.mxu0 0
  %3702 = vmatprep.mubr.bf16.mxu0 0
  %3703 = vmatmul.mubr.bf16.gmra.mrb[0].mxu0 %v3668
  %v3704 = vpop.f32.mrb[0].mxu0
  %v3705 = vadd.f32 0.0, %v3704
  %v3706 = vpop.f32.mrb[0].mxu0
  %v3707 = vpop.f32.mrb[0].mxu0
  %v3708 = vpop.f32.mrb[0].mxu0
  %3709 = vdwg.mxu0
  %v3710 = vadd.f32 %v3657, %v3705
  %v3711 = vpack.c.bf16 %v2737, %v2737
  %v3712 = vld [vmem:[%s8 + $0x80] sm:$0xf]
  %v3713 = vld [vmem:[%s8 + $0x84] sm:$0xf]
  %v3716 = vunpack.c.l.b16 %v3712
  %v3717 = vunpack.c.l.b16 %v3713
  %v3718 = vpack.c.b16 %v3717, %v3716
  %v3721 = vsel %vm1468, %v3711, 0
  %3723 = vmatprep.subr.bf16.mxu0 0
  %3724 = vmatpush1.bf16.msra.mxu0 %v3718
  %3725 = vmatprep.subr.bf16.mxu0 0
  %3726 = vmatpush1.bf16.msra.mxu0 0
  %3727 = vmatprep.subr.bf16.mxu0 0
  %3728 = vmatpush1.bf16.msra.mxu0 0
  %3729 = vmatprep.subr.bf16.mxu0 0
  %3730 = vmatpush1.bf16.msra.mxu0 0
  %3731 = vmatprep.subr.bf16.mxu0 0
  %3732 = vmatpush1.bf16.msra.mxu0 0
  %3733 = vmatprep.subr.bf16.mxu0 0
  %3734 = vmatpush1.bf16.msra.mxu0 0
  %3735 = vmatprep.subr.bf16.mxu0 0
  %3736 = vmatpush1.bf16.msra.mxu0 0
  %3737 = vmatprep.subr.bf16.mxu0 0
  %3738 = vmatpush1.bf16.msra.mxu0 0
  %3739 = vmatprep.subr.bf16.mxu0 0
  %3740 = vmatpush1.bf16.msra.mxu0 0
  %3741 = vmatprep.subr.bf16.mxu0 0
  %3742 = vmatpush1.bf16.msra.mxu0 0
  %3743 = vmatprep.subr.bf16.mxu0 0
  %3744 = vmatpush1.bf16.msra.mxu0 0
  %3745 = vmatprep.subr.bf16.mxu0 0
  %3746 = vmatpush1.bf16.msra.mxu0 0
  %3747 = vmatprep.subr.bf16.mxu0 0
  %3748 = vmatpush1.bf16.msra.mxu0 0
  %3749 = vmatprep.subr.bf16.mxu0 0
  %3750 = vmatpush1.bf16.msra.mxu0 0
  %3751 = vmatprep.subr.bf16.mxu0 0
  %3752 = vmatpush1.bf16.msra.mxu0 0
  %3753 = vmatprep.subr.bf16.mxu0 0
  %3754 = vmatpush1.bf16.msra.mxu0 0
  %3755 = vmatprep.mubr.bf16.mxu0 0
  %3756 = vmatmul.mubr.bf16.gmra.mrb[0].mxu0 %v3721
  %v3757 = vpop.f32.mrb[0].mxu0
  %v3758 = vadd.f32 0.0, %v3757
  %v3759 = vpop.f32.mrb[0].mxu0
  %v3760 = vpop.f32.mrb[0].mxu0
  %v3761 = vpop.f32.mrb[0].mxu0
  %3762 = vdwg.mxu0
  %v3763 = vadd.f32 %v3710, %v3758
  %v3764 = vpack.c.bf16 %v2740, %v2740
  %v3765 = vld [vmem:[%s8 + $0x88] sm:$0xf]
  %v3766 = vld [vmem:[%s8 + $0x8c] sm:$0xf]
  %v3769 = vunpack.c.l.b16 %v3765
  %v3770 = vunpack.c.l.b16 %v3766
  %v3771 = vpack.c.b16 %v3770, %v3769
  %v3774 = vsel %vm1468, %v3764, 0
  %3776 = vmatprep.subr.bf16.mxu0 0
  %3777 = vmatpush1.bf16.msra.mxu0 %v3771
  %3778 = vmatprep.subr.bf16.mxu0 0
  %3779 = vmatpush1.bf16.msra.mxu0 0
  %3780 = vmatprep.subr.bf16.mxu0 0
  %3781 = vmatpush1.bf16.msra.mxu0 0
  %3782 = vmatprep.subr.bf16.mxu0 0
  %3783 = vmatpush1.bf16.msra.mxu0 0
  %3784 = vmatprep.subr.bf16.mxu0 0
  %3785 = vmatpush1.bf16.msra.mxu0 0
  %3786 = vmatprep.subr.bf16.mxu0 0
  %3787 = vmatpush1.bf16.msra.mxu0 0
  %3788 = vmatprep.subr.bf16.mxu0 0
  %3789 = vmatpush1.bf16.msra.mxu0 0
  %3790 = vmatprep.subr.bf16.mxu0 0
  %3791 = vmatpush1.bf16.msra.mxu0 0
  %3792 = vmatprep.subr.bf16.mxu0 0
  %3793 = vmatpush1.bf16.msra.mxu0 0
  %3794 = vmatprep.subr.bf16.mxu0 0
  %3795 = vmatpush1.bf16.msra.mxu0 0
  %3796 = vmatprep.subr.bf16.mxu0 0
  %3797 = vmatpush1.bf16.msra.mxu0 0
  %3798 = vmatprep.subr.bf16.mxu0 0
  %3799 = vmatpush1.bf16.msra.mxu0 0
  %3800 = vmatprep.subr.bf16.mxu0 0
  %3801 = vmatpush1.bf16.msra.mxu0 0
  %3802 = vmatprep.subr.bf16.mxu0 0
  %3803 = vmatpush1.bf16.msra.mxu0 0
  %3804 = vmatprep.subr.bf16.mxu0 0
  %3805 = vmatpush1.bf16.msra.mxu0 0
  %3806 = vmatprep.subr.bf16.mxu0 0
  %3807 = vmatpush1.bf16.msra.mxu0 0
  %3808 = vmatprep.mubr.bf16.mxu0 0
  %3809 = vmatmul.mubr.bf16.gmra.mrb[0].mxu0 %v3774
  %v3810 = vpop.f32.mrb[0].mxu0
  %v3811 = vadd.f32 0.0, %v3810
  %v3812 = vpop.f32.mrb[0].mxu0
  %v3813 = vpop.f32.mrb[0].mxu0
  %v3814 = vpop.f32.mrb[0].mxu0
  %3815 = vdwg.mxu0
  %v3816 = vadd.f32 %v3763, %v3811
  %v3817 = vpack.c.bf16 %v2745, %v2745
  %v3818 = vld [vmem:[%s8 + $0x90] sm:$0xf]
  %v3819 = vld [vmem:[%s8 + $0x94] sm:$0xf]
  %v3822 = vunpack.c.l.b16 %v3818
  %v3823 = vunpack.c.l.b16 %v3819
  %v3824 = vpack.c.b16 %v3823, %v3822
  %v3827 = vsel %vm1468, %v3817, 0
  %3829 = vmatprep.subr.bf16.mxu0 0
  %3830 = vmatpush1.bf16.msra.mxu0 %v3824
  %3831 = vmatprep.subr.bf16.mxu0 0
  %3832 = vmatpush1.bf16.msra.mxu0 0
  %3833 = vmatprep.subr.bf16.mxu0 0
  %3834 = vmatpush1.bf16.msra.mxu0 0
  %3835 = vmatprep.subr.bf16.mxu0 0
  %3836 = vmatpush1.bf16.msra.mxu0 0
  %3837 = vmatprep.subr.bf16.mxu0 0
  %3838 = vmatpush1.bf16.msra.mxu0 0
  %3839 = vmatprep.subr.bf16.mxu0 0
  %3840 = vmatpush1.bf16.msra.mxu0 0
  %3841 = vmatprep.subr.bf16.mxu0 0
  %3842 = vmatpush1.bf16.msra.mxu0 0
  %3843 = vmatprep.subr.bf16.mxu0 0
  %3844 = vmatpush1.bf16.msra.mxu0 0
  %3845 = vmatprep.subr.bf16.mxu0 0
  %3846 = vmatpush1.bf16.msra.mxu0 0
  %3847 = vmatprep.subr.bf16.mxu0 0
  %3848 = vmatpush1.bf16.msra.mxu0 0
  %3849 = vmatprep.subr.bf16.mxu0 0
  %3850 = vmatpush1.bf16.msra.mxu0 0
  %3851 = vmatprep.subr.bf16.mxu0 0
  %3852 = vmatpush1.bf16.msra.mxu0 0
  %3853 = vmatprep.subr.bf16.mxu0 0
  %3854 = vmatpush1.bf16.msra.mxu0 0
  %3855 = vmatprep.subr.bf16.mxu0 0
  %3856 = vmatpush1.bf16.msra.mxu0 0
  %3857 = vmatprep.subr.bf16.mxu0 0
  %3858 = vmatpush1.bf16.msra.mxu0 0
  %3859 = vmatprep.subr.bf16.mxu0 0
  %3860 = vmatpush1.bf16.msra.mxu0 0
  %3861 = vmatprep.mubr.bf16.mxu0 0
  %3862 = vmatmul.mubr.bf16.gmra.mrb[0].mxu0 %v3827
  %v3863 = vpop.f32.mrb[0].mxu0
  %v3864 = vadd.f32 0.0, %v3863
  %v3865 = vpop.f32.mrb[0].mxu0
  %v3866 = vpop.f32.mrb[0].mxu0
  %v3867 = vpop.f32.mrb[0].mxu0
  %3868 = vdwg.mxu0
  %v3869 = vadd.f32 %v3816, %v3864
  %v3870 = vpack.c.bf16 %v2748, %v2748
  %v3871 = vld [vmem:[%s8 + $0x98] sm:$0xf]
  %v3872 = vld [vmem:[%s8 + $0x9c] sm:$0xf]
  %v3875 = vunpack.c.l.b16 %v3871
  %v3876 = vunpack.c.l.b16 %v3872
  %v3877 = vpack.c.b16 %v3876, %v3875
  %v3880 = vsel %vm1468, %v3870, 0
  %3882 = vmatprep.subr.bf16.mxu0 0
  %3883 = vmatpush1.bf16.msra.mxu0 %v3877
  %3884 = vmatprep.subr.bf16.mxu0 0
  %3885 = vmatpush1.bf16.msra.mxu0 0
  %3886 = vmatprep.subr.bf16.mxu0 0
  %3887 = vmatpush1.bf16.msra.mxu0 0
  %3888 = vmatprep.subr.bf16.mxu0 0
  %3889 = vmatpush1.bf16.msra.mxu0 0
  %3890 = vmatprep.subr.bf16.mxu0 0
  %3891 = vmatpush1.bf16.msra.mxu0 0
  %3892 = vmatprep.subr.bf16.mxu0 0
  %3893 = vmatpush1.bf16.msra.mxu0 0
  %3894 = vmatprep.subr.bf16.mxu0 0
  %3895 = vmatpush1.bf16.msra.mxu0 0
  %3896 = vmatprep.subr.bf16.mxu0 0
  %3897 = vmatpush1.bf16.msra.mxu0 0
  %3898 = vmatprep.subr.bf16.mxu0 0
  %3899 = vmatpush1.bf16.msra.mxu0 0
  %3900 = vmatprep.subr.bf16.mxu0 0
  %3901 = vmatpush1.bf16.msra.mxu0 0
  %3902 = vmatprep.subr.bf16.mxu0 0
  %3903 = vmatpush1.bf16.msra.mxu0 0
  %3904 = vmatprep.subr.bf16.mxu0 0
  %3905 = vmatpush1.bf16.msra.mxu0 0
  %3906 = vmatprep.subr.bf16.mxu0 0
  %3907 = vmatpush1.bf16.msra.mxu0 0
  %3908 = vmatprep.subr.bf16.mxu0 0
  %3909 = vmatpush1.bf16.msra.mxu0 0
  %3910 = vmatprep.subr.bf16.mxu0 0
  %3911 = vmatpush1.bf16.msra.mxu0 0
  %3912 = vmatprep.subr.bf16.mxu0 0
  %3913 = vmatpush1.bf16.msra.mxu0 0
  %3914 = vmatprep.mubr.bf16.mxu0 0
  %3915 = vmatmul.mubr.bf16.gmra.mrb[0].mxu0 %v3880
  %v3916 = vpop.f32.mrb[0].mxu0
  %v3917 = vadd.f32 0.0, %v3916
  %v3918 = vpop.f32.mrb[0].mxu0
  %v3919 = vpop.f32.mrb[0].mxu0
  %v3920 = vpop.f32.mrb[0].mxu0
  %3921 = vdwg.mxu0
  %v3922 = vadd.f32 %v3869, %v3917
  %v3923 = vpack.c.bf16 %v2753, %v2753
  %v3924 = vld [vmem:[%s8 + $0xa0] sm:$0xf]
  %v3925 = vld [vmem:[%s8 + $0xa4] sm:$0xf]
  %v3928 = vunpack.c.l.b16 %v3924
  %v3929 = vunpack.c.l.b16 %v3925
  %v3930 = vpack.c.b16 %v3929, %v3928
  %v3933 = vsel %vm1468, %v3923, 0
  %3935 = vmatprep.subr.bf16.mxu0 0
  %3936 = vmatpush1.bf16.msra.mxu0 %v3930
  %3937 = vmatprep.subr.bf16.mxu0 0
  %3938 = vmatpush1.bf16.msra.mxu0 0
  %3939 = vmatprep.subr.bf16.mxu0 0
  %3940 = vmatpush1.bf16.msra.mxu0 0
  %3941 = vmatprep.subr.bf16.mxu0 0
  %3942 = vmatpush1.bf16.msra.mxu0 0
  %3943 = vmatprep.subr.bf16.mxu0 0
  %3944 = vmatpush1.bf16.msra.mxu0 0
  %3945 = vmatprep.subr.bf16.mxu0 0
  %3946 = vmatpush1.bf16.msra.mxu0 0
  %3947 = vmatprep.subr.bf16.mxu0 0
  %3948 = vmatpush1.bf16.msra.mxu0 0
  %3949 = vmatprep.subr.bf16.mxu0 0
  %3950 = vmatpush1.bf16.msra.mxu0 0
  %3951 = vmatprep.subr.bf16.mxu0 0
  %3952 = vmatpush1.bf16.msra.mxu0 0
  %3953 = vmatprep.subr.bf16.mxu0 0
  %3954 = vmatpush1.bf16.msra.mxu0 0
  %3955 = vmatprep.subr.bf16.mxu0 0
  %3956 = vmatpush1.bf16.msra.mxu0 0
  %3957 = vmatprep.subr.bf16.mxu0 0
  %3958 = vmatpush1.bf16.msra.mxu0 0
  %3959 = vmatprep.subr.bf16.mxu0 0
  %3960 = vmatpush1.bf16.msra.mxu0 0
  %3961 = vmatprep.subr.bf16.mxu0 0
  %3962 = vmatpush1.bf16.msra.mxu0 0
  %3963 = vmatprep.subr.bf16.mxu0 0
  %3964 = vmatpush1.bf16.msra.mxu0 0
  %3965 = vmatprep.subr.bf16.mxu0 0
  %3966 = vmatpush1.bf16.msra.mxu0 0
  %3967 = vmatprep.mubr.bf16.mxu0 0
  %3968 = vmatmul.mubr.bf16.gmra.mrb[0].mxu0 %v3933
  %v3969 = vpop.f32.mrb[0].mxu0
  %v3970 = vadd.f32 0.0, %v3969
  %v3971 = vpop.f32.mrb[0].mxu0
  %v3972 = vpop.f32.mrb[0].mxu0
  %v3973 = vpop.f32.mrb[0].mxu0
  %3974 = vdwg.mxu0
  %v3975 = vadd.f32 %v3922, %v3970
  %v3976 = vpack.c.bf16 %v2756, %v2756
  %v3977 = vld [vmem:[%s8 + $0xa8] sm:$0xf]
  %v3978 = vld [vmem:[%s8 + $0xac] sm:$0xf]
  %v3981 = vunpack.c.l.b16 %v3977
  %v3982 = vunpack.c.l.b16 %v3978
  %v3983 = vpack.c.b16 %v3982, %v3981
  %v3986 = vsel %vm1468, %v3976, 0
  %3988 = vmatprep.subr.bf16.mxu0 0
  %3989 = vmatpush1.bf16.msra.mxu0 %v3983
  %3990 = vmatprep.subr.bf16.mxu0 0
  %3991 = vmatpush1.bf16.msra.mxu0 0
  %3992 = vmatprep.subr.bf16.mxu0 0
  %3993 = vmatpush1.bf16.msra.mxu0 0
  %3994 = vmatprep.subr.bf16.mxu0 0
  %3995 = vmatpush1.bf16.msra.mxu0 0
  %3996 = vmatprep.subr.bf16.mxu0 0
  %3997 = vmatpush1.bf16.msra.mxu0 0
  %3998 = vmatprep.subr.bf16.mxu0 0
  %3999 = vmatpush1.bf16.msra.mxu0 0
  %4000 = vmatprep.subr.bf16.mxu0 0
  %4001 = vmatpush1.bf16.msra.mxu0 0
  %4002 = vmatprep.subr.bf16.mxu0 0
  %4003 = vmatpush1.bf16.msra.mxu0 0
  %4004 = vmatprep.subr.bf16.mxu0 0
  %4005 = vmatpush1.bf16.msra.mxu0 0
  %4006 = vmatprep.subr.bf16.mxu0 0
  %4007 = vmatpush1.bf16.msra.mxu0 0
  %4008 = vmatprep.subr.bf16.mxu0 0
  %4009 = vmatpush1.bf16.msra.mxu0 0
  %4010 = vmatprep.subr.bf16.mxu0 0
  %4011 = vmatpush1.bf16.msra.mxu0 0
  %4012 = vmatprep.subr.bf16.mxu0 0
  %4013 = vmatpush1.bf16.msra.mxu0 0
  %4014 = vmatprep.subr.bf16.mxu0 0
  %4015 = vmatpush1.bf16.msra.mxu0 0
  %4016 = vmatprep.subr.bf16.mxu0 0
  %4017 = vmatpush1.bf16.msra.mxu0 0
  %4018 = vmatprep.subr.bf16.mxu0 0
  %4019 = vmatpush1.bf16.msra.mxu0 0
  %4020 = vmatprep.mubr.bf16.mxu0 0
  %4021 = vmatmul.mubr.bf16.gmra.mrb[0].mxu0 %v3986
  %v4022 = vpop.f32.mrb[0].mxu0
  %v4023 = vadd.f32 0.0, %v4022
  %v4024 = vpop.f32.mrb[0].mxu0
  %v4025 = vpop.f32.mrb[0].mxu0
  %v4026 = vpop.f32.mrb[0].mxu0
  %4027 = vdwg.mxu0
  %v4028 = vadd.f32 %v3975, %v4023
  %v4029 = vpack.c.bf16 %v2761, %v2761
  %v4030 = vld [vmem:[%s8 + $0xb0] sm:$0xf]
  %v4031 = vld [vmem:[%s8 + $0xb4] sm:$0xf]
  %v4034 = vunpack.c.l.b16 %v4030
  %v4035 = vunpack.c.l.b16 %v4031
  %v4036 = vpack.c.b16 %v4035, %v4034
  %v4039 = vsel %vm1468, %v4029, 0
  %4041 = vmatprep.subr.bf16.mxu0 0
  %4042 = vmatpush1.bf16.msra.mxu0 %v4036
  %4043 = vmatprep.subr.bf16.mxu0 0
  %4044 = vmatpush1.bf16.msra.mxu0 0
  %4045 = vmatprep.subr.bf16.mxu0 0
  %4046 = vmatpush1.bf16.msra.mxu0 0
  %4047 = vmatprep.subr.bf16.mxu0 0
  %4048 = vmatpush1.bf16.msra.mxu0 0
  %4049 = vmatprep.subr.bf16.mxu0 0
  %4050 = vmatpush1.bf16.msra.mxu0 0
  %4051 = vmatprep.subr.bf16.mxu0 0
  %4052 = vmatpush1.bf16.msra.mxu0 0
  %4053 = vmatprep.subr.bf16.mxu0 0
  %4054 = vmatpush1.bf16.msra.mxu0 0
  %4055 = vmatprep.subr.bf16.mxu0 0
  %4056 = vmatpush1.bf16.msra.mxu0 0
  %4057 = vmatprep.subr.bf16.mxu0 0
  %4058 = vmatpush1.bf16.msra.mxu0 0
  %4059 = vmatprep.subr.bf16.mxu0 0
  %4060 = vmatpush1.bf16.msra.mxu0 0
  %4061 = vmatprep.subr.bf16.mxu0 0
  %4062 = vmatpush1.bf16.msra.mxu0 0
  %4063 = vmatprep.subr.bf16.mxu0 0
  %4064 = vmatpush1.bf16.msra.mxu0 0
  %4065 = vmatprep.subr.bf16.mxu0 0
  %4066 = vmatpush1.bf16.msra.mxu0 0
  %4067 = vmatprep.subr.bf16.mxu0 0
  %4068 = vmatpush1.bf16.msra.mxu0 0
  %4069 = vmatprep.subr.bf16.mxu0 0
  %4070 = vmatpush1.bf16.msra.mxu0 0
  %4071 = vmatprep.subr.bf16.mxu0 0
  %4072 = vmatpush1.bf16.msra.mxu0 0
  %4073 = vmatprep.mubr.bf16.mxu0 0
  %4074 = vmatmul.mubr.bf16.gmra.mrb[0].mxu0 %v4039
  %v4075 = vpop.f32.mrb[0].mxu0
  %v4076 = vadd.f32 0.0, %v4075
  %v4077 = vpop.f32.mrb[0].mxu0
  %v4078 = vpop.f32.mrb[0].mxu0
  %v4079 = vpop.f32.mrb[0].mxu0
  %4080 = vdwg.mxu0
  %v4081 = vadd.f32 %v4028, %v4076
  %v4082 = vpack.c.bf16 %v2764, %v2764
  %v4083 = vld [vmem:[%s8 + $0xb8] sm:$0xf]
  %v4084 = vld [vmem:[%s8 + $0xbc] sm:$0xf]
  %v4087 = vunpack.c.l.b16 %v4083
  %v4088 = vunpack.c.l.b16 %v4084
  %v4089 = vpack.c.b16 %v4088, %v4087
  %v4092 = vsel %vm1468, %v4082, 0
  %4094 = vmatprep.subr.bf16.mxu0 0
  %4095 = vmatpush1.bf16.msra.mxu0 %v4089
  %4096 = vmatprep.subr.bf16.mxu0 0
  %4097 = vmatpush1.bf16.msra.mxu0 0
  %4098 = vmatprep.subr.bf16.mxu0 0
  %4099 = vmatpush1.bf16.msra.mxu0 0
  %4100 = vmatprep.subr.bf16.mxu0 0
  %4101 = vmatpush1.bf16.msra.mxu0 0
  %4102 = vmatprep.subr.bf16.mxu0 0
  %4103 = vmatpush1.bf16.msra.mxu0 0
  %4104 = vmatprep.subr.bf16.mxu0 0
  %4105 = vmatpush1.bf16.msra.mxu0 0
  %4106 = vmatprep.subr.bf16.mxu0 0
  %4107 = vmatpush1.bf16.msra.mxu0 0
  %4108 = vmatprep.subr.bf16.mxu0 0
  %4109 = vmatpush1.bf16.msra.mxu0 0
  %4110 = vmatprep.subr.bf16.mxu0 0
  %4111 = vmatpush1.bf16.msra.mxu0 0
  %4112 = vmatprep.subr.bf16.mxu0 0
  %4113 = vmatpush1.bf16.msra.mxu0 0
  %4114 = vmatprep.subr.bf16.mxu0 0
  %4115 = vmatpush1.bf16.msra.mxu0 0
  %4116 = vmatprep.subr.bf16.mxu0 0
  %4117 = vmatpush1.bf16.msra.mxu0 0
  %4118 = vmatprep.subr.bf16.mxu0 0
  %4119 = vmatpush1.bf16.msra.mxu0 0
  %4120 = vmatprep.subr.bf16.mxu0 0
  %4121 = vmatpush1.bf16.msra.mxu0 0
  %4122 = vmatprep.subr.bf16.mxu0 0
  %4123 = vmatpush1.bf16.msra.mxu0 0
  %4124 = vmatprep.subr.bf16.mxu0 0
  %4125 = vmatpush1.bf16.msra.mxu0 0
  %4126 = vmatprep.mubr.bf16.mxu0 0
  %4127 = vmatmul.mubr.bf16.gmra.mrb[0].mxu0 %v4092
  %v4128 = vpop.f32.mrb[0].mxu0
  %v4129 = vadd.f32 0.0, %v4128
  %v4130 = vpop.f32.mrb[0].mxu0
  %v4131 = vpop.f32.mrb[0].mxu0
  %v4132 = vpop.f32.mrb[0].mxu0
  %4133 = vdwg.mxu0
  %v4134 = vadd.f32 %v4081, %v4129
  %v4135 = vpack.c.bf16 %v2769, %v2769
  %v4136 = vld [vmem:[%s8 + $0xc0] sm:$0xf]
  %v4137 = vld [vmem:[%s8 + $0xc4] sm:$0xf]
  %v4140 = vunpack.c.l.b16 %v4136
  %v4141 = vunpack.c.l.b16 %v4137
  %v4142 = vpack.c.b16 %v4141, %v4140
  %v4145 = vsel %vm1468, %v4135, 0
  %4147 = vmatprep.subr.bf16.mxu0 0
  %4148 = vmatpush1.bf16.msra.mxu0 %v4142
  %4149 = vmatprep.subr.bf16.mxu0 0
  %4150 = vmatpush1.bf16.msra.mxu0 0
  %4151 = vmatprep.subr.bf16.mxu0 0
  %4152 = vmatpush1.bf16.msra.mxu0 0
  %4153 = vmatprep.subr.bf16.mxu0 0
  %4154 = vmatpush1.bf16.msra.mxu0 0
  %4155 = vmatprep.subr.bf16.mxu0 0
  %4156 = vmatpush1.bf16.msra.mxu0 0
  %4157 = vmatprep.subr.bf16.mxu0 0
  %4158 = vmatpush1.bf16.msra.mxu0 0
  %4159 = vmatprep.subr.bf16.mxu0 0
  %4160 = vmatpush1.bf16.msra.mxu0 0
  %4161 = vmatprep.subr.bf16.mxu0 0
  %4162 = vmatpush1.bf16.msra.mxu0 0
  %4163 = vmatprep.subr.bf16.mxu0 0
  %4164 = vmatpush1.bf16.msra.mxu0 0
  %4165 = vmatprep.subr.bf16.mxu0 0
  %4166 = vmatpush1.bf16.msra.mxu0 0
  %4167 = vmatprep.subr.bf16.mxu0 0
  %4168 = vmatpush1.bf16.msra.mxu0 0
  %4169 = vmatprep.subr.bf16.mxu0 0
  %4170 = vmatpush1.bf16.msra.mxu0 0
  %4171 = vmatprep.subr.bf16.mxu0 0
  %4172 = vmatpush1.bf16.msra.mxu0 0
  %4173 = vmatprep.subr.bf16.mxu0 0
  %4174 = vmatpush1.bf16.msra.mxu0 0
  %4175 = vmatprep.subr.bf16.mxu0 0
  %4176 = vmatpush1.bf16.msra.mxu0 0
  %4177 = vmatprep.subr.bf16.mxu0 0
  %4178 = vmatpush1.bf16.msra.mxu0 0
  %4179 = vmatprep.mubr.bf16.mxu0 0
  %4180 = vmatmul.mubr.bf16.gmra.mrb[0].mxu0 %v4145
  %v4181 = vpop.f32.mrb[0].mxu0
  %v4182 = vadd.f32 0.0, %v4181
  %v4183 = vpop.f32.mrb[0].mxu0
  %v4184 = vpop.f32.mrb[0].mxu0
  %v4185 = vpop.f32.mrb[0].mxu0
  %4186 = vdwg.mxu0
  %v4187 = vadd.f32 %v4134, %v4182
  %v4188 = vpack.c.bf16 %v2772, %v2772
  %v4189 = vld [vmem:[%s8 + $0xc8] sm:$0xf]
  %v4190 = vld [vmem:[%s8 + $0xcc] sm:$0xf]
  %v4193 = vunpack.c.l.b16 %v4189
  %v4194 = vunpack.c.l.b16 %v4190
  %v4195 = vpack.c.b16 %v4194, %v4193
  %v4198 = vsel %vm1468, %v4188, 0
  %4200 = vmatprep.subr.bf16.mxu0 0
  %4201 = vmatpush1.bf16.msra.mxu0 %v4195
  %4202 = vmatprep.subr.bf16.mxu0 0
  %4203 = vmatpush1.bf16.msra.mxu0 0
  %4204 = vmatprep.subr.bf16.mxu0 0
  %4205 = vmatpush1.bf16.msra.mxu0 0
  %4206 = vmatprep.subr.bf16.mxu0 0
  %4207 = vmatpush1.bf16.msra.mxu0 0
  %4208 = vmatprep.subr.bf16.mxu0 0
  %4209 = vmatpush1.bf16.msra.mxu0 0
  %4210 = vmatprep.subr.bf16.mxu0 0
  %4211 = vmatpush1.bf16.msra.mxu0 0
  %4212 = vmatprep.subr.bf16.mxu0 0
  %4213 = vmatpush1.bf16.msra.mxu0 0
  %4214 = vmatprep.subr.bf16.mxu0 0
  %4215 = vmatpush1.bf16.msra.mxu0 0
  %4216 = vmatprep.subr.bf16.mxu0 0
  %4217 = vmatpush1.bf16.msra.mxu0 0
  %4218 = vmatprep.subr.bf16.mxu0 0
  %4219 = vmatpush1.bf16.msra.mxu0 0
  %4220 = vmatprep.subr.bf16.mxu0 0
  %4221 = vmatpush1.bf16.msra.mxu0 0
  %4222 = vmatprep.subr.bf16.mxu0 0
  %4223 = vmatpush1.bf16.msra.mxu0 0
  %4224 = vmatprep.subr.bf16.mxu0 0
  %4225 = vmatpush1.bf16.msra.mxu0 0
  %4226 = vmatprep.subr.bf16.mxu0 0
  %4227 = vmatpush1.bf16.msra.mxu0 0
  %4228 = vmatprep.subr.bf16.mxu0 0
  %4229 = vmatpush1.bf16.msra.mxu0 0
  %4230 = vmatprep.subr.bf16.mxu0 0
  %4231 = vmatpush1.bf16.msra.mxu0 0
  %4232 = vmatprep.mubr.bf16.mxu0 0
  %4233 = vmatmul.mubr.bf16.gmra.mrb[0].mxu0 %v4198
  %v4234 = vpop.f32.mrb[0].mxu0
  %v4235 = vadd.f32 0.0, %v4234
  %v4236 = vpop.f32.mrb[0].mxu0
  %v4237 = vpop.f32.mrb[0].mxu0
  %v4238 = vpop.f32.mrb[0].mxu0
  %4239 = vdwg.mxu0
  %v4240 = vadd.f32 %v4187, %v4235
  %v4241 = vpack.c.bf16 %v2777, %v2777
  %v4242 = vld [vmem:[%s8 + $0xd0] sm:$0xf]
  %v4243 = vld [vmem:[%s8 + $0xd4] sm:$0xf]
  %v4246 = vunpack.c.l.b16 %v4242
  %v4247 = vunpack.c.l.b16 %v4243
  %v4248 = vpack.c.b16 %v4247, %v4246
  %v4251 = vsel %vm1468, %v4241, 0
  %4253 = vmatprep.subr.bf16.mxu0 0
  %4254 = vmatpush1.bf16.msra.mxu0 %v4248
  %4255 = vmatprep.subr.bf16.mxu0 0
  %4256 = vmatpush1.bf16.msra.mxu0 0
  %4257 = vmatprep.subr.bf16.mxu0 0
  %4258 = vmatpush1.bf16.msra.mxu0 0
  %4259 = vmatprep.subr.bf16.mxu0 0
  %4260 = vmatpush1.bf16.msra.mxu0 0
  %4261 = vmatprep.subr.bf16.mxu0 0
  %4262 = vmatpush1.bf16.msra.mxu0 0
  %4263 = vmatprep.subr.bf16.mxu0 0
  %4264 = vmatpush1.bf16.msra.mxu0 0
  %4265 = vmatprep.subr.bf16.mxu0 0
  %4266 = vmatpush1.bf16.msra.mxu0 0
  %4267 = vmatprep.subr.bf16.mxu0 0
  %4268 = vmatpush1.bf16.msra.mxu0 0
  %4269 = vmatprep.subr.bf16.mxu0 0
  %4270 = vmatpush1.bf16.msra.mxu0 0
  %4271 = vmatprep.subr.bf16.mxu0 0
  %4272 = vmatpush1.bf16.msra.mxu0 0
  %4273 = vmatprep.subr.bf16.mxu0 0
  %4274 = vmatpush1.bf16.msra.mxu0 0
  %4275 = vmatprep.subr.bf16.mxu0 0
  %4276 = vmatpush1.bf16.msra.mxu0 0
  %4277 = vmatprep.subr.bf16.mxu0 0
  %4278 = vmatpush1.bf16.msra.mxu0 0
  %4279 = vmatprep.subr.bf16.mxu0 0
  %4280 = vmatpush1.bf16.msra.mxu0 0
  %4281 = vmatprep.subr.bf16.mxu0 0
  %4282 = vmatpush1.bf16.msra.mxu0 0
  %4283 = vmatprep.subr.bf16.mxu0 0
  %4284 = vmatpush1.bf16.msra.mxu0 0
  %4285 = vmatprep.mubr.bf16.mxu0 0
  %4286 = vmatmul.mubr.bf16.gmra.mrb[0].mxu0 %v4251
  %v4287 = vpop.f32.mrb[0].mxu0
  %v4288 = vadd.f32 0.0, %v4287
  %v4289 = vpop.f32.mrb[0].mxu0
  %v4290 = vpop.f32.mrb[0].mxu0
  %v4291 = vpop.f32.mrb[0].mxu0
  %4292 = vdwg.mxu0
  %v4293 = vadd.f32 %v4240, %v4288
  %v4294 = vpack.c.bf16 %v2780, %v2780
  %v4295 = vld [vmem:[%s8 + $0xd8] sm:$0xf]
  %v4296 = vld [vmem:[%s8 + $0xdc] sm:$0xf]
  %v4299 = vunpack.c.l.b16 %v4295
  %v4300 = vunpack.c.l.b16 %v4296
  %v4301 = vpack.c.b16 %v4300, %v4299
  %v4304 = vsel %vm1468, %v4294, 0
  %4306 = vmatprep.subr.bf16.mxu0 0
  %4307 = vmatpush1.bf16.msra.mxu0 %v4301
  %4308 = vmatprep.subr.bf16.mxu0 0
  %4309 = vmatpush1.bf16.msra.mxu0 0
  %4310 = vmatprep.subr.bf16.mxu0 0
  %4311 = vmatpush1.bf16.msra.mxu0 0
  %4312 = vmatprep.subr.bf16.mxu0 0
  %4313 = vmatpush1.bf16.msra.mxu0 0
  %4314 = vmatprep.subr.bf16.mxu0 0
  %4315 = vmatpush1.bf16.msra.mxu0 0
  %4316 = vmatprep.subr.bf16.mxu0 0
  %4317 = vmatpush1.bf16.msra.mxu0 0
  %4318 = vmatprep.subr.bf16.mxu0 0
  %4319 = vmatpush1.bf16.msra.mxu0 0
  %4320 = vmatprep.subr.bf16.mxu0 0
  %4321 = vmatpush1.bf16.msra.mxu0 0
  %4322 = vmatprep.subr.bf16.mxu0 0
  %4323 = vmatpush1.bf16.msra.mxu0 0
  %4324 = vmatprep.subr.bf16.mxu0 0
  %4325 = vmatpush1.bf16.msra.mxu0 0
  %4326 = vmatprep.subr.bf16.mxu0 0
  %4327 = vmatpush1.bf16.msra.mxu0 0
  %4328 = vmatprep.subr.bf16.mxu0 0
  %4329 = vmatpush1.bf16.msra.mxu0 0
  %4330 = vmatprep.subr.bf16.mxu0 0
  %4331 = vmatpush1.bf16.msra.mxu0 0
  %4332 = vmatprep.subr.bf16.mxu0 0
  %4333 = vmatpush1.bf16.msra.mxu0 0
  %4334 = vmatprep.subr.bf16.mxu0 0
  %4335 = vmatpush1.bf16.msra.mxu0 0
  %4336 = vmatprep.subr.bf16.mxu0 0
  %4337 = vmatpush1.bf16.msra.mxu0 0
  %4338 = vmatprep.mubr.bf16.mxu0 0
  %4339 = vmatmul.mubr.bf16.gmra.mrb[0].mxu0 %v4304
  %v4340 = vpop.f32.mrb[0].mxu0
  %v4341 = vadd.f32 0.0, %v4340
  %v4342 = vpop.f32.mrb[0].mxu0
  %v4343 = vpop.f32.mrb[0].mxu0
  %v4344 = vpop.f32.mrb[0].mxu0
  %4345 = vdwg.mxu0
  %v4346 = vadd.f32 %v4293, %v4341
  %v4347 = vpack.c.bf16 %v2785, %v2785
  %v4348 = vld [vmem:[%s8 + $0xe0] sm:$0xf]
  %v4349 = vld [vmem:[%s8 + $0xe4] sm:$0xf]
  %v4352 = vunpack.c.l.b16 %v4348
  %v4353 = vunpack.c.l.b16 %v4349
  %v4354 = vpack.c.b16 %v4353, %v4352
  %v4357 = vsel %vm1468, %v4347, 0
  %4359 = vmatprep.subr.bf16.mxu0 0
  %4360 = vmatpush1.bf16.msra.mxu0 %v4354
  %4361 = vmatprep.subr.bf16.mxu0 0
  %4362 = vmatpush1.bf16.msra.mxu0 0
  %4363 = vmatprep.subr.bf16.mxu0 0
  %4364 = vmatpush1.bf16.msra.mxu0 0
  %4365 = vmatprep.subr.bf16.mxu0 0
  %4366 = vmatpush1.bf16.msra.mxu0 0
  %4367 = vmatprep.subr.bf16.mxu0 0
  %4368 = vmatpush1.bf16.msra.mxu0 0
  %4369 = vmatprep.subr.bf16.mxu0 0
  %4370 = vmatpush1.bf16.msra.mxu0 0
  %4371 = vmatprep.subr.bf16.mxu0 0
  %4372 = vmatpush1.bf16.msra.mxu0 0
  %4373 = vmatprep.subr.bf16.mxu0 0
  %4374 = vmatpush1.bf16.msra.mxu0 0
  %4375 = vmatprep.subr.bf16.mxu0 0
  %4376 = vmatpush1.bf16.msra.mxu0 0
  %4377 = vmatprep.subr.bf16.mxu0 0
  %4378 = vmatpush1.bf16.msra.mxu0 0
  %4379 = vmatprep.subr.bf16.mxu0 0
  %4380 = vmatpush1.bf16.msra.mxu0 0
  %4381 = vmatprep.subr.bf16.mxu0 0
  %4382 = vmatpush1.bf16.msra.mxu0 0
  %4383 = vmatprep.subr.bf16.mxu0 0
  %4384 = vmatpush1.bf16.msra.mxu0 0
  %4385 = vmatprep.subr.bf16.mxu0 0
  %4386 = vmatpush1.bf16.msra.mxu0 0
  %4387 = vmatprep.subr.bf16.mxu0 0
  %4388 = vmatpush1.bf16.msra.mxu0 0
  %4389 = vmatprep.subr.bf16.mxu0 0
  %4390 = vmatpush1.bf16.msra.mxu0 0
  %4391 = vmatprep.mubr.bf16.mxu0 0
  %4392 = vmatmul.mubr.bf16.gmra.mrb[0].mxu0 %v4357
  %v4393 = vpop.f32.mrb[0].mxu0
  %v4394 = vadd.f32 0.0, %v4393
  %v4395 = vpop.f32.mrb[0].mxu0
  %v4396 = vpop.f32.mrb[0].mxu0
  %v4397 = vpop.f32.mrb[0].mxu0
  %4398 = vdwg.mxu0
  %v4399 = vadd.f32 %v4346, %v4394
  %v4400 = vpack.c.bf16 %v2788, %v2788
  %v4401 = vld [vmem:[%s8 + $0xe8] sm:$0xf]
  %v4402 = vld [vmem:[%s8 + $0xec] sm:$0xf]
  %v4405 = vunpack.c.l.b16 %v4401
  %v4406 = vunpack.c.l.b16 %v4402
  %v4407 = vpack.c.b16 %v4406, %v4405
  %v4410 = vsel %vm1468, %v4400, 0
  %4412 = vmatprep.subr.bf16.mxu0 0
  %4413 = vmatpush1.bf16.msra.mxu0 %v4407
  %4414 = vmatprep.subr.bf16.mxu0 0
  %4415 = vmatpush1.bf16.msra.mxu0 0
  %4416 = vmatprep.subr.bf16.mxu0 0
  %4417 = vmatpush1.bf16.msra.mxu0 0
  %4418 = vmatprep.subr.bf16.mxu0 0
  %4419 = vmatpush1.bf16.msra.mxu0 0
  %4420 = vmatprep.subr.bf16.mxu0 0
  %4421 = vmatpush1.bf16.msra.mxu0 0
  %4422 = vmatprep.subr.bf16.mxu0 0
  %4423 = vmatpush1.bf16.msra.mxu0 0
  %4424 = vmatprep.subr.bf16.mxu0 0
  %4425 = vmatpush1.bf16.msra.mxu0 0
  %4426 = vmatprep.subr.bf16.mxu0 0
  %4427 = vmatpush1.bf16.msra.mxu0 0
  %4428 = vmatprep.subr.bf16.mxu0 0
  %4429 = vmatpush1.bf16.msra.mxu0 0
  %4430 = vmatprep.subr.bf16.mxu0 0
  %4431 = vmatpush1.bf16.msra.mxu0 0
  %4432 = vmatprep.subr.bf16.mxu0 0
  %4433 = vmatpush1.bf16.msra.mxu0 0
  %4434 = vmatprep.subr.bf16.mxu0 0
  %4435 = vmatpush1.bf16.msra.mxu0 0
  %4436 = vmatprep.subr.bf16.mxu0 0
  %4437 = vmatpush1.bf16.msra.mxu0 0
  %4438 = vmatprep.subr.bf16.mxu0 0
  %4439 = vmatpush1.bf16.msra.mxu0 0
  %4440 = vmatprep.subr.bf16.mxu0 0
  %4441 = vmatpush1.bf16.msra.mxu0 0
  %4442 = vmatprep.subr.bf16.mxu0 0
  %4443 = vmatpush1.bf16.msra.mxu0 0
  %4444 = vmatprep.mubr.bf16.mxu0 0
  %4445 = vmatmul.mubr.bf16.gmra.mrb[0].mxu0 %v4410
  %v4446 = vpop.f32.mrb[0].mxu0
  %v4447 = vadd.f32 0.0, %v4446
  %v4448 = vpop.f32.mrb[0].mxu0
  %v4449 = vpop.f32.mrb[0].mxu0
  %v4450 = vpop.f32.mrb[0].mxu0
  %4451 = vdwg.mxu0
  %v4452 = vadd.f32 %v4399, %v4447
  %v4453 = vpack.c.bf16 %v2793, %v2793
  %v4454 = vld [vmem:[%s8 + $0xf0] sm:$0xf]
  %v4455 = vld [vmem:[%s8 + $0xf4] sm:$0xf]
  %v4458 = vunpack.c.l.b16 %v4454
  %v4459 = vunpack.c.l.b16 %v4455
  %v4460 = vpack.c.b16 %v4459, %v4458
  %v4463 = vsel %vm1468, %v4453, 0
  %4465 = vmatprep.subr.bf16.mxu0 0
  %4466 = vmatpush1.bf16.msra.mxu0 %v4460
  %4467 = vmatprep.subr.bf16.mxu0 0
  %4468 = vmatpush1.bf16.msra.mxu0 0
  %4469 = vmatprep.subr.bf16.mxu0 0
  %4470 = vmatpush1.bf16.msra.mxu0 0
  %4471 = vmatprep.subr.bf16.mxu0 0
  %4472 = vmatpush1.bf16.msra.mxu0 0
  %4473 = vmatprep.subr.bf16.mxu0 0
  %4474 = vmatpush1.bf16.msra.mxu0 0
  %4475 = vmatprep.subr.bf16.mxu0 0
  %4476 = vmatpush1.bf16.msra.mxu0 0
  %4477 = vmatprep.subr.bf16.mxu0 0
  %4478 = vmatpush1.bf16.msra.mxu0 0
  %4479 = vmatprep.subr.bf16.mxu0 0
  %4480 = vmatpush1.bf16.msra.mxu0 0
  %4481 = vmatprep.subr.bf16.mxu0 0
  %4482 = vmatpush1.bf16.msra.mxu0 0
  %4483 = vmatprep.subr.bf16.mxu0 0
  %4484 = vmatpush1.bf16.msra.mxu0 0
  %4485 = vmatprep.subr.bf16.mxu0 0
  %4486 = vmatpush1.bf16.msra.mxu0 0
  %4487 = vmatprep.subr.bf16.mxu0 0
  %4488 = vmatpush1.bf16.msra.mxu0 0
  %4489 = vmatprep.subr.bf16.mxu0 0
  %4490 = vmatpush1.bf16.msra.mxu0 0
  %4491 = vmatprep.subr.bf16.mxu0 0
  %4492 = vmatpush1.bf16.msra.mxu0 0
  %4493 = vmatprep.subr.bf16.mxu0 0
  %4494 = vmatpush1.bf16.msra.mxu0 0
  %4495 = vmatprep.subr.bf16.mxu0 0
  %4496 = vmatpush1.bf16.msra.mxu0 0
  %4497 = vmatprep.mubr.bf16.mxu0 0
  %4498 = vmatmul.mubr.bf16.gmra.mrb[0].mxu0 %v4463
  %v4499 = vpop.f32.mrb[0].mxu0
  %v4500 = vadd.f32 0.0, %v4499
  %v4501 = vpop.f32.mrb[0].mxu0
  %v4502 = vpop.f32.mrb[0].mxu0
  %v4503 = vpop.f32.mrb[0].mxu0
  %4504 = vdwg.mxu0
  %v4505 = vadd.f32 %v4452, %v4500
  %v4506 = vpack.c.bf16 %v2796, %v2796
  %v4507 = vld [vmem:[%s8 + $0xf8] sm:$0xf]
  %v4508 = vld [vmem:[%s8 + $0xfc] sm:$0xf]
  %v4511 = vunpack.c.l.b16 %v4507
  %v4512 = vunpack.c.l.b16 %v4508
  %v4513 = vpack.c.b16 %v4512, %v4511
  %v4516 = vsel %vm1468, %v4506, 0
  %4518 = vmatprep.subr.bf16.mxu0 0
  %4519 = vmatpush1.bf16.msra.mxu0 %v4513
  %4520 = vmatprep.subr.bf16.mxu0 0
  %4521 = vmatpush1.bf16.msra.mxu0 0
  %4522 = vmatprep.subr.bf16.mxu0 0
  %4523 = vmatpush1.bf16.msra.mxu0 0
  %4524 = vmatprep.subr.bf16.mxu0 0
  %4525 = vmatpush1.bf16.msra.mxu0 0
  %4526 = vmatprep.subr.bf16.mxu0 0
  %4527 = vmatpush1.bf16.msra.mxu0 0
  %4528 = vmatprep.subr.bf16.mxu0 0
  %4529 = vmatpush1.bf16.msra.mxu0 0
  %4530 = vmatprep.subr.bf16.mxu0 0
  %4531 = vmatpush1.bf16.msra.mxu0 0
  %4532 = vmatprep.subr.bf16.mxu0 0
  %4533 = vmatpush1.bf16.msra.mxu0 0
  %4534 = vmatprep.subr.bf16.mxu0 0
  %4535 = vmatpush1.bf16.msra.mxu0 0
  %4536 = vmatprep.subr.bf16.mxu0 0
  %4537 = vmatpush1.bf16.msra.mxu0 0
  %4538 = vmatprep.subr.bf16.mxu0 0
  %4539 = vmatpush1.bf16.msra.mxu0 0
  %4540 = vmatprep.subr.bf16.mxu0 0
  %4541 = vmatpush1.bf16.msra.mxu0 0
  %4542 = vmatprep.subr.bf16.mxu0 0
  %4543 = vmatpush1.bf16.msra.mxu0 0
  %4544 = vmatprep.subr.bf16.mxu0 0
  %4545 = vmatpush1.bf16.msra.mxu0 0
  %4546 = vmatprep.subr.bf16.mxu0 0
  %4547 = vmatpush1.bf16.msra.mxu0 0
  %4548 = vmatprep.subr.bf16.mxu0 0
  %4549 = vmatpush1.bf16.msra.mxu0 0
  %4550 = vmatprep.mubr.bf16.mxu0 0
  %4551 = vmatmul.mubr.bf16.gmra.mrb[0].mxu0 %v4516
  %v4552 = vpop.f32.mrb[0].mxu0
  %v4553 = vadd.f32 0.0, %v4552
  %v4554 = vpop.f32.mrb[0].mxu0
  %v4555 = vpop.f32.mrb[0].mxu0
  %v4556 = vpop.f32.mrb[0].mxu0
  %4557 = vdwg.mxu0
  %v4558 = vadd.f32 %v4505, %v4553
  %v4559 = vpack.c.bf16 %v2801, %v2801
  %v4560 = vld [vmem:[%s8 + $0x100] sm:$0xf]
  %v4561 = vld [vmem:[%s8 + $0x104] sm:$0xf]
  %v4564 = vunpack.c.l.b16 %v4560
  %v4565 = vunpack.c.l.b16 %v4561
  %v4566 = vpack.c.b16 %v4565, %v4564
  %v4569 = vsel %vm1468, %v4559, 0
  %4571 = vmatprep.subr.bf16.mxu0 0
  %4572 = vmatpush1.bf16.msra.mxu0 %v4566
  %4573 = vmatprep.subr.bf16.mxu0 0
  %4574 = vmatpush1.bf16.msra.mxu0 0
  %4575 = vmatprep.subr.bf16.mxu0 0
  %4576 = vmatpush1.bf16.msra.mxu0 0
  %4577 = vmatprep.subr.bf16.mxu0 0
  %4578 = vmatpush1.bf16.msra.mxu0 0
  %4579 = vmatprep.subr.bf16.mxu0 0
  %4580 = vmatpush1.bf16.msra.mxu0 0
  %4581 = vmatprep.subr.bf16.mxu0 0
  %4582 = vmatpush1.bf16.msra.mxu0 0
  %4583 = vmatprep.subr.bf16.mxu0 0
  %4584 = vmatpush1.bf16.msra.mxu0 0
  %4585 = vmatprep.subr.bf16.mxu0 0
  %4586 = vmatpush1.bf16.msra.mxu0 0
  %4587 = vmatprep.subr.bf16.mxu0 0
  %4588 = vmatpush1.bf16.msra.mxu0 0
  %4589 = vmatprep.subr.bf16.mxu0 0
  %4590 = vmatpush1.bf16.msra.mxu0 0
  %4591 = vmatprep.subr.bf16.mxu0 0
  %4592 = vmatpush1.bf16.msra.mxu0 0
  %4593 = vmatprep.subr.bf16.mxu0 0
  %4594 = vmatpush1.bf16.msra.mxu0 0
  %4595 = vmatprep.subr.bf16.mxu0 0
  %4596 = vmatpush1.bf16.msra.mxu0 0
  %4597 = vmatprep.subr.bf16.mxu0 0
  %4598 = vmatpush1.bf16.msra.mxu0 0
  %4599 = vmatprep.subr.bf16.mxu0 0
  %4600 = vmatpush1.bf16.msra.mxu0 0
  %4601 = vmatprep.subr.bf16.mxu0 0
  %4602 = vmatpush1.bf16.msra.mxu0 0
  %4603 = vmatprep.mubr.bf16.mxu0 0
  %4604 = vmatmul.mubr.bf16.gmra.mrb[0].mxu0 %v4569
  %v4605 = vpop.f32.mrb[0].mxu0
  %v4606 = vadd.f32 0.0, %v4605
  %v4607 = vpop.f32.mrb[0].mxu0
  %v4608 = vpop.f32.mrb[0].mxu0
  %v4609 = vpop.f32.mrb[0].mxu0
  %4610 = vdwg.mxu0
  %v4611 = vadd.f32 %v4558, %v4606
  %v4612 = vpack.c.bf16 %v2804, %v2804
  %v4613 = vld [vmem:[%s8 + $0x108] sm:$0xf]
  %v4614 = vld [vmem:[%s8 + $0x10c] sm:$0xf]
  %v4617 = vunpack.c.l.b16 %v4613
  %v4618 = vunpack.c.l.b16 %v4614
  %v4619 = vpack.c.b16 %v4618, %v4617
  %v4622 = vsel %vm1468, %v4612, 0
  %4624 = vmatprep.subr.bf16.mxu0 0
  %4625 = vmatpush1.bf16.msra.mxu0 %v4619
  %4626 = vmatprep.subr.bf16.mxu0 0
  %4627 = vmatpush1.bf16.msra.mxu0 0
  %4628 = vmatprep.subr.bf16.mxu0 0
  %4629 = vmatpush1.bf16.msra.mxu0 0
  %4630 = vmatprep.subr.bf16.mxu0 0
  %4631 = vmatpush1.bf16.msra.mxu0 0
  %4632 = vmatprep.subr.bf16.mxu0 0
  %4633 = vmatpush1.bf16.msra.mxu0 0
  %4634 = vmatprep.subr.bf16.mxu0 0
  %4635 = vmatpush1.bf16.msra.mxu0 0
  %4636 = vmatprep.subr.bf16.mxu0 0
  %4637 = vmatpush1.bf16.msra.mxu0 0
  %4638 = vmatprep.subr.bf16.mxu0 0
  %4639 = vmatpush1.bf16.msra.mxu0 0
  %4640 = vmatprep.subr.bf16.mxu0 0
  %4641 = vmatpush1.bf16.msra.mxu0 0
  %4642 = vmatprep.subr.bf16.mxu0 0
  %4643 = vmatpush1.bf16.msra.mxu0 0
  %4644 = vmatprep.subr.bf16.mxu0 0
  %4645 = vmatpush1.bf16.msra.mxu0 0
  %4646 = vmatprep.subr.bf16.mxu0 0
  %4647 = vmatpush1.bf16.msra.mxu0 0
  %4648 = vmatprep.subr.bf16.mxu0 0
  %4649 = vmatpush1.bf16.msra.mxu0 0
  %4650 = vmatprep.subr.bf16.mxu0 0
  %4651 = vmatpush1.bf16.msra.mxu0 0
  %4652 = vmatprep.subr.bf16.mxu0 0
  %4653 = vmatpush1.bf16.msra.mxu0 0
  %4654 = vmatprep.subr.bf16.mxu0 0
  %4655 = vmatpush1.bf16.msra.mxu0 0
  %4656 = vmatprep.mubr.bf16.mxu0 0
  %4657 = vmatmul.mubr.bf16.gmra.mrb[0].mxu0 %v4622
  %v4658 = vpop.f32.mrb[0].mxu0
  %v4659 = vadd.f32 0.0, %v4658
  %v4660 = vpop.f32.mrb[0].mxu0
  %v4661 = vpop.f32.mrb[0].mxu0
  %v4662 = vpop.f32.mrb[0].mxu0
  %4663 = vdwg.mxu0
  %v4664 = vadd.f32 %v4611, %v4659
  %v4665 = vpack.c.bf16 %v2809, %v2809
  %v4666 = vld [vmem:[%s8 + $0x110] sm:$0xf]
  %v4667 = vld [vmem:[%s8 + $0x114] sm:$0xf]
  %v4670 = vunpack.c.l.b16 %v4666
  %v4671 = vunpack.c.l.b16 %v4667
  %v4672 = vpack.c.b16 %v4671, %v4670
  %v4675 = vsel %vm1468, %v4665, 0
  %4677 = vmatprep.subr.bf16.mxu0 0
  %4678 = vmatpush1.bf16.msra.mxu0 %v4672
  %4679 = vmatprep.subr.bf16.mxu0 0
  %4680 = vmatpush1.bf16.msra.mxu0 0
  %4681 = vmatprep.subr.bf16.mxu0 0
  %4682 = vmatpush1.bf16.msra.mxu0 0
  %4683 = vmatprep.subr.bf16.mxu0 0
  %4684 = vmatpush1.bf16.msra.mxu0 0
  %4685 = vmatprep.subr.bf16.mxu0 0
  %4686 = vmatpush1.bf16.msra.mxu0 0
  %4687 = vmatprep.subr.bf16.mxu0 0
  %4688 = vmatpush1.bf16.msra.mxu0 0
  %4689 = vmatprep.subr.bf16.mxu0 0
  %4690 = vmatpush1.bf16.msra.mxu0 0
  %4691 = vmatprep.subr.bf16.mxu0 0
  %4692 = vmatpush1.bf16.msra.mxu0 0
  %4693 = vmatprep.subr.bf16.mxu0 0
  %4694 = vmatpush1.bf16.msra.mxu0 0
  %4695 = vmatprep.subr.bf16.mxu0 0
  %4696 = vmatpush1.bf16.msra.mxu0 0
  %4697 = vmatprep.subr.bf16.mxu0 0
  %4698 = vmatpush1.bf16.msra.mxu0 0
  %4699 = vmatprep.subr.bf16.mxu0 0
  %4700 = vmatpush1.bf16.msra.mxu0 0
  %4701 = vmatprep.subr.bf16.mxu0 0
  %4702 = vmatpush1.bf16.msra.mxu0 0
  %4703 = vmatprep.subr.bf16.mxu0 0
  %4704 = vmatpush1.bf16.msra.mxu0 0
  %4705 = vmatprep.subr.bf16.mxu0 0
  %4706 = vmatpush1.bf16.msra.mxu0 0
  %4707 = vmatprep.subr.bf16.mxu0 0
  %4708 = vmatpush1.bf16.msra.mxu0 0
  %4709 = vmatprep.mubr.bf16.mxu0 0
  %4710 = vmatmul.mubr.bf16.gmra.mrb[0].mxu0 %v4675
  %v4711 = vpop.f32.mrb[0].mxu0
  %v4712 = vadd.f32 0.0, %v4711
  %v4713 = vpop.f32.mrb[0].mxu0
  %v4714 = vpop.f32.mrb[0].mxu0
  %v4715 = vpop.f32.mrb[0].mxu0
  %4716 = vdwg.mxu0
  %v4717 = vadd.f32 %v4664, %v4712
  %v4718 = vpack.c.bf16 %v2812, %v2812
  %v4719 = vld [vmem:[%s8 + $0x118] sm:$0xf]
  %v4720 = vld [vmem:[%s8 + $0x11c] sm:$0xf]
  %v4723 = vunpack.c.l.b16 %v4719
  %v4724 = vunpack.c.l.b16 %v4720
  %v4725 = vpack.c.b16 %v4724, %v4723
  %v4728 = vsel %vm1468, %v4718, 0
  %4730 = vmatprep.subr.bf16.mxu0 0
  %4731 = vmatpush1.bf16.msra.mxu0 %v4725
  %4732 = vmatprep.subr.bf16.mxu0 0
  %4733 = vmatpush1.bf16.msra.mxu0 0
  %4734 = vmatprep.subr.bf16.mxu0 0
  %4735 = vmatpush1.bf16.msra.mxu0 0
  %4736 = vmatprep.subr.bf16.mxu0 0
  %4737 = vmatpush1.bf16.msra.mxu0 0
  %4738 = vmatprep.subr.bf16.mxu0 0
  %4739 = vmatpush1.bf16.msra.mxu0 0
  %4740 = vmatprep.subr.bf16.mxu0 0
  %4741 = vmatpush1.bf16.msra.mxu0 0
  %4742 = vmatprep.subr.bf16.mxu0 0
  %4743 = vmatpush1.bf16.msra.mxu0 0
  %4744 = vmatprep.subr.bf16.mxu0 0
  %4745 = vmatpush1.bf16.msra.mxu0 0
  %4746 = vmatprep.subr.bf16.mxu0 0
  %4747 = vmatpush1.bf16.msra.mxu0 0
  %4748 = vmatprep.subr.bf16.mxu0 0
  %4749 = vmatpush1.bf16.msra.mxu0 0
  %4750 = vmatprep.subr.bf16.mxu0 0
  %4751 = vmatpush1.bf16.msra.mxu0 0
  %4752 = vmatprep.subr.bf16.mxu0 0
  %4753 = vmatpush1.bf16.msra.mxu0 0
  %4754 = vmatprep.subr.bf16.mxu0 0
  %4755 = vmatpush1.bf16.msra.mxu0 0
  %4756 = vmatprep.subr.bf16.mxu0 0
  %4757 = vmatpush1.bf16.msra.mxu0 0
  %4758 = vmatprep.subr.bf16.mxu0 0
  %4759 = vmatpush1.bf16.msra.mxu0 0
  %4760 = vmatprep.subr.bf16.mxu0 0
  %4761 = vmatpush1.bf16.msra.mxu0 0
  %4762 = vmatprep.mubr.bf16.mxu0 0
  %4763 = vmatmul.mubr.bf16.gmra.mrb[0].mxu0 %v4728
  %v4764 = vpop.f32.mrb[0].mxu0
  %v4765 = vadd.f32 0.0, %v4764
  %v4766 = vpop.f32.mrb[0].mxu0
  %v4767 = vpop.f32.mrb[0].mxu0
  %v4768 = vpop.f32.mrb[0].mxu0
  %4769 = vdwg.mxu0
  %v4770 = vadd.f32 %v4717, %v4765
  %v4771 = vld [vmem:[%s10] sm:$0x1]
  %v4773 = vlaneseq
  %v4774 = vshrl.u32 %v4773, 7
  %v4775 = vsub.s32 0, %v4774
  %v4776 = vrot.slane %v4771, %v4775
  %v4778 = vadd.f32 %v4770, %v4776
  %v4779 = vmax.f32 %v4778, 0.0
  %v4780 = vpack.c.bf16 %v4779, %v4779
  %v4781 = vld [vmem:[%s11] sm:$0xf]
  %v4782 = vld [vmem:[%s11 + $0x4] sm:$0xf]
  %v4783 = vld [vmem:[%s11 + $0x8] sm:$0xf]
  %v4784 = vld [vmem:[%s11 + $0xc] sm:$0xf]
  %v4785 = vld [vmem:[%s11 + $0x10] sm:$0xf]
  %v4786 = vld [vmem:[%s11 + $0x14] sm:$0xf]
  %v4787 = vld [vmem:[%s11 + $0x18] sm:$0xf]
  %v4788 = vld [vmem:[%s11 + $0x1c] sm:$0xf]
  %v4789 = vld [vmem:[%s11 + $0x20] sm:$0xf]
  %v4790 = vld [vmem:[%s11 + $0x24] sm:$0xf]
  %v4791 = vld [vmem:[%s11 + $0x28] sm:$0xf]
  %v4792 = vld [vmem:[%s11 + $0x2c] sm:$0xf]
  %v4793 = vld [vmem:[%s11 + $0x30] sm:$0xf]
  %v4794 = vld [vmem:[%s11 + $0x34] sm:$0xf]
  %v4795 = vld [vmem:[%s11 + $0x38] sm:$0xf]
  %v4796 = vld [vmem:[%s11 + $0x3c] sm:$0xf]
  %v4797 = vld [vmem:[%s12] sm:$0x1]
  %v4799 = vlaneseq
  %v4800 = vshrl.u32 %v4799, 7
  %v4801 = vsub.s32 0, %v4800
  %v4802 = vrot.slane %v4797, %v4801
  %v4820 = vunpack.c.l.b16 %v4781
  %v4821 = vunpack.c.l.b16 %v4782
  %v4822 = vunpack.c.l.b16 %v4783
  %v4823 = vunpack.c.l.b16 %v4784
  %v4824 = vunpack.c.l.b16 %v4785
  %v4825 = vunpack.c.l.b16 %v4786
  %v4826 = vunpack.c.l.b16 %v4787
  %v4827 = vunpack.c.l.b16 %v4788
  %v4828 = vunpack.c.l.b16 %v4789
  %v4829 = vunpack.c.l.b16 %v4790
  %v4830 = vunpack.c.l.b16 %v4791
  %v4831 = vunpack.c.l.b16 %v4792
  %v4832 = vunpack.c.l.b16 %v4793
  %v4833 = vunpack.c.l.b16 %v4794
  %v4834 = vunpack.c.l.b16 %v4795
  %v4835 = vunpack.c.l.b16 %v4796
  %v4836 = vpack.c.b16 %v4821, %v4820
  %v4837 = vpack.c.b16 %v4823, %v4822
  %v4838 = vpack.c.b16 %v4825, %v4824
  %v4839 = vpack.c.b16 %v4827, %v4826
  %v4840 = vpack.c.b16 %v4829, %v4828
  %v4841 = vpack.c.b16 %v4831, %v4830
  %v4842 = vpack.c.b16 %v4833, %v4832
  %v4843 = vpack.c.b16 %v4835, %v4834
  %4852 = vmatprep.subr.bf16.mxu0 0
  %4853 = vmatpush1.bf16.msra.mxu0 %v4836
  %4854 = vmatprep.subr.bf16.mxu0 0
  %4855 = vmatpush1.bf16.msra.mxu0 %v4837
  %4856 = vmatprep.subr.bf16.mxu0 0
  %4857 = vmatpush1.bf16.msra.mxu0 %v4838
  %4858 = vmatprep.subr.bf16.mxu0 0
  %4859 = vmatpush1.bf16.msra.mxu0 %v4839
  %4860 = vmatprep.subr.bf16.mxu0 0
  %4861 = vmatpush1.bf16.msra.mxu0 %v4840
  %4862 = vmatprep.subr.bf16.mxu0 0
  %4863 = vmatpush1.bf16.msra.mxu0 %v4841
  %4864 = vmatprep.subr.bf16.mxu0 0
  %4865 = vmatpush1.bf16.msra.mxu0 %v4842
  %4866 = vmatprep.subr.bf16.mxu0 0
  %4867 = vmatpush1.bf16.msra.mxu0 %v4843
  %4868 = vmatprep.subr.bf16.mxu0 0
  %4869 = vmatpush1.bf16.msra.mxu0 0
  %4870 = vmatprep.subr.bf16.mxu0 0
  %4871 = vmatpush1.bf16.msra.mxu0 0
  %4872 = vmatprep.subr.bf16.mxu0 0
  %4873 = vmatpush1.bf16.msra.mxu0 0
  %4874 = vmatprep.subr.bf16.mxu0 0
  %4875 = vmatpush1.bf16.msra.mxu0 0
  %4876 = vmatprep.subr.bf16.mxu0 0
  %4877 = vmatpush1.bf16.msra.mxu0 0
  %4878 = vmatprep.subr.bf16.mxu0 0
  %4879 = vmatpush1.bf16.msra.mxu0 0
  %4880 = vmatprep.subr.bf16.mxu0 0
  %4881 = vmatpush1.bf16.msra.mxu0 0
  %4882 = vmatprep.subr.bf16.mxu0 0
  %4883 = vmatpush1.bf16.msra.mxu0 0
  %4884 = vmatprep.mubr.bf16.mxu0 0
  %4885 = vmatmul.mubr.bf16.gmra.mrb[0].mxu0 %v4780
  %v4886 = vpop.f32.mrb[0].mxu0
  %v4887 = vadd.f32 %v4802, %v4886
  %v4888 = vpop.f32.mrb[0].mxu0
  %v4889 = vpop.f32.mrb[0].mxu0
  %v4890 = vpop.f32.mrb[0].mxu0
  %4891 = vdwg.mxu0
  %v4892 = vlaneseq
  %v4893 = vshrl.u32 %v4892, 7
  %v4894 = vlaneseq
  %v4895 = vand.u32 %v4894, 127
  %vm4896 = vcmp.lt.s32.totalorder %v4893, 2
  %vm4897 = vcmp.lt.s32.totalorder %v4895, 5
  %vm4898 = vmand %vm4896, %vm4897
  %v4899 = vsel %vm4898, %v4887, 0.0
  %4900 = vadd.xlane.f32.xlu0 %v4899
  %v4901 = vpop.xlane.xlu0 %4900
  %v4902 = vrot.slane %v4901, 4
  %v4903 = vadd.f32 %v4901, %v4902
  %v4904 = vrot.slane %v4903, 2
  %v4905 = vadd.f32 %v4903, %v4904
  %v4906 = vrot.slane %v4905, 1
  %v4907 = vadd.f32 %v4905, %v4906
  %s4908 = vtos %v4907
  %s4909 = smul.f32 %s4908, 0.1
  %4911 = vset.pattern.permute.xlu0 5
  %4912 = vperm.xlu0 %4911, %v4887
  %v4913 = vpop.permute.xlu0 %4912
  %v4915 = vadd.f32 %v4887, %v4913
  %v4916 = vstv %s4909
  %v4917 = vsub.f32 %v4915, %v4916
  %4918 = vst [vmem:[%s13] sm:$0xff] %v4917
  // Predicated region
  $region54: #{forward.1} parent=0 // pred_check
    _
  $region55: #{forward.1} parent=0 // pred_check_branch
    %4920 = sbr.rel (0) target = $region57
  $region56: #{forward.1} parent=0 // pred_region
    _
  $region57: #{forward.1} parent=0 // pred_fallthru
    _
  // Predicated region
  $region58: #{forward.1} parent=0 // pred_check
    _
  $region59: #{forward.1} parent=0 // pred_check_branch
    %4922 = sbr.rel (0) target = $region61
  $region60: #{forward.1} parent=0 // pred_region
    _
  $region61: #{forward.1} parent=0 // pred_fallthru
    _

</llo_original>
